<compile_context>
chip_gen: v5e
topology: v5e:2x2
jax: 0.10.0
libtpu: 0.0.40
codegen_flags: <defaults>
</compile_context>

<pallas_src>
import collections
import functools

import jax
import jax.numpy as jnp
from jax.experimental import pallas as pl
from jax.experimental.pallas import tpu as pltpu


def _round_up(v, m):
    return ((v + m - 1) // m) * m


def _ceil_div(a, b):
    return -(-a // b)


# --------------------------------------------------------------------------------------------
# Exact-erf GELU (PyTorch nn.GELU default).  erf via Abramowitz&Stegun 7.1.26 (|err| < 1.5e-7):
# only VPU ops + one EUP exp, guaranteed to lower in Mosaic (no reliance on a lax.erf rule).
# --------------------------------------------------------------------------------------------
def _erf_poly(x):
    p = 0.3275911
    a1, a2, a3, a4, a5 = (0.254829592, -0.284496736, 1.421413741, -1.453152027, 1.061405429)
    s = jnp.where(x < 0.0, -1.0, 1.0)
    ax = jnp.abs(x)
    t = 1.0 / (1.0 + p * ax)
    poly = t * (a1 + t * (a2 + t * (a3 + t * (a4 + t * a5))))
    return s * (1.0 - poly * jnp.exp(-ax * ax))


def _gelu(x):
    return 0.5 * x * (1.0 + _erf_poly(x * 0.7071067811865476))


# --------------------------------------------------------------------------------------------
# Static metadata describing where each packed parameter lives inside the slab (hashable, so it
# can be a jit-static argument).
# --------------------------------------------------------------------------------------------
LayerMeta = collections.namedtuple(
    "LayerMeta",
    ["c_in", "c_out", "t_in", "t_out", "ksize", "dilation", "pad_l", "pad_r", "win",
     "wconv_offs", "bconv_off", "gamma_off", "beta_off", "wskip_off", "bskip_off",
     "sel_offs", "is_last"])
HeadMeta = collections.namedtuple("HeadMeta", ["c_last", "latent", "a_off", "wlat_off", "blat_off"])
PackMeta = collections.namedtuple(
    "PackMeta", ["nb", "layers", "head", "slab_rows", "slab_cols", "pad_rows", "pad_cols"])


def pack_skip_encoder_params(params, *, timesteps, kernel_size=3, nb=1):
    """Pack all parameters (+ static selection matrices) into ONE f32 slab.

    Weights are block-diagonalized / tiled for the per-grid-step batch `nb` so the kernel can
    process the whole batch with single matmuls (batch stacked along sublanes).
    Done once, outside jit.  Returns (slab, PackMeta).
    """
    n_layers = len(timesteps) - 1
    assert len(params["layers"]) == n_layers

    pieces = []        # list of (row_offset, 2-D f32 array)
    row_off = 0

    def add(a):
        nonlocal row_off
        a = jnp.asarray(a, jnp.float32)
        assert a.ndim == 2
        off = row_off
        pieces.append((off, a))
        row_off += _round_up(a.shape[0], 8)        # keep every piece sublane-tile aligned
        return off

    eye_nb = jnp.eye(nb, dtype=jnp.float32)
    layers_meta = []
    c_prev = params["layers"][0]["wconv"].shape[1]
    t_prev = timesteps[0]
    max_pad_rows, max_pad_cols = 8, 128

    for l in range(n_layers):
        p = params["layers"][l]
        d = l + 1
        c_out, c_in, k = p["wconv"].shape
        assert c_in == c_prev and k == kernel_size
        t_in, t_out = t_prev, timesteps[l + 1]
        total = d * (kernel_size - 1)
        pad_l, pad_r = total // 2, total - total // 2   # PyTorch 'same': extra pad on the right

        wconv_offs = tuple(add(jnp.kron(eye_nb, p["wconv"][:, :, tap])) for tap in range(k))
        bconv_off = add(jnp.tile(p["bconv"][:, None], (nb, 1)))
        gamma_off = add(p["gamma"][None, :])
        beta_off = add(p["beta"][None, :])
        wskip_off = add(jnp.kron(eye_nb, p["wskip"][:, :, 0]))
        bskip_off = add(jnp.tile(p["bskip"][:, None], (nb, 1)))

        is_last = (l == n_layers - 1)
        win, sel_offs = 0, ()
        if (not is_last) and (t_in % t_out == 0):
            win = t_in // t_out
            jj = jnp.arange(t_in)[:, None]
            ii = jnp.arange(t_out)[None, :]
            sel_offs = tuple(add((jj == ii * win + off_l).astype(jnp.float32))
                             for off_l in range(win))

        layers_meta.append(LayerMeta(c_in, c_out, t_in, t_out, kernel_size, d, pad_l, pad_r,
                                     win, wconv_offs, bconv_off, gamma_off, beta_off,
                                     wskip_off, bskip_off, sel_offs, is_last))
        max_pad_rows = max(max_pad_rows, _round_up(nb * c_in, 8))
        max_pad_cols = max(max_pad_cols, _round_up(t_in + pad_l + pad_r, 128))
        c_prev, t_prev = c_out, t_out

    # Head: TensorToVectorBlock.  z[e,:] = A @ (pooled * tiled(wlat^T)) + blat  gives a lane-dense
    # (nb, latent) result with no explicit transpose (only matmul + broadcast-mul).
    c_last = c_prev
    latent = params["wlat"].shape[0]
    a_off = add(jnp.kron(eye_nb, jnp.ones((1, c_last), jnp.float32)))      # (nb, nb*c_last)
    wlat_off = add(jnp.tile(params["wlat"].T, (nb, 1)))                    # (nb*c_last, latent)
    blat_off = add(params["blat"][None, :])                                # (1, latent)
    head = HeadMeta(c_last, latent, a_off, wlat_off, blat_off)

    slab_rows = _round_up(row_off, 8)
    slab_cols = _round_up(max(a.shape[1] for _, a in pieces), 128)
    slab = jnp.zeros((slab_rows, slab_cols), jnp.float32)
    for off, a in pieces:
        slab = slab.at[off:off + a.shape[0], :a.shape[1]].set(a)

    meta = PackMeta(nb, tuple(layers_meta), head, slab_rows, slab_cols,
                    max_pad_rows, max_pad_cols)
    return slab, meta


# --------------------------------------------------------------------------------------------
# Fused encoder kernel: every SkipConnection(ConvBlock1d)+AdaptiveMaxPool layer plus the
# TensorToVectorBlock head in ONE body.  Batch is stacked along sublanes (rows = nb * channels).
# refs: x_ref (nb*C0, T0), slab_ref (packed params), out_ref (nb, latent), pad_ref (VMEM scratch)
# --------------------------------------------------------------------------------------------
def _skip_encoder_kernel(x_ref, slab_ref, out_ref, pad_ref, *, meta):
    nb = meta.nb
    h = x_ref[...].astype(jnp.float32)                       # (nb*C0, T0)

    for lm in meta.layers:
        rows_in = nb * lm.c_in
        rows_out = nb * lm.c_out
        t_in, d = lm.t_in, lm.dilation
        width = lm.pad_l + t_in + lm.pad_r

        # ---- 'same' padding: static-offset stores into a pre-allocated VMEM slab -------------
        if lm.pad_l:
            pad_ref[0:rows_in, 0:lm.pad_l] = jnp.zeros((rows_in, lm.pad_l), jnp.float32)
        pad_ref[0:rows_in, lm.pad_l:lm.pad_l + t_in] = h
        if lm.pad_r:
            pad_ref[0:rows_in, lm.pad_l + t_in:width] = jnp.zeros((rows_in, lm.pad_r), jnp.float32)

        # ---- dilated Conv1d: K shifted matmuls, whole batch at once (block-diag weights) ------
        acc = None
        for tap in range(lm.ksize):
            w = slab_ref[lm.wconv_offs[tap]:lm.wconv_offs[tap] + rows_out, 0:rows_in]
            part = jnp.dot(w, pad_ref[0:rows_in, tap * d:tap * d + t_in],
                           preferred_element_type=jnp.float32)
            acc = part if acc is None else acc + part
        acc = acc + slab_ref[lm.bconv_off:lm.bconv_off + rows_out, 0:1]

        # ---- LayerNorm over the time axis (per (batch, channel) row) --------------------------
        mean = jnp.mean(acc, axis=-1, keepdims=True)
        var = jnp.mean(jnp.square(acc - mean), axis=-1, keepdims=True)
        y = (acc - mean) * jax.lax.rsqrt(var + 1e-5)
        y = (y * slab_ref[lm.gamma_off:lm.gamma_off + 1, 0:t_in]
             + slab_ref[lm.beta_off:lm.beta_off + 1, 0:t_in])

        # ---- GELU (exact erf form, PyTorch default) -------------------------------------------
        y = _gelu(y)

        # ---- SkipConnection: 1x1 conv projection of the (unpadded) layer input ----------------
        y = y + jnp.dot(slab_ref[lm.wskip_off:lm.wskip_off + rows_out, 0:rows_in], h,
                        preferred_element_type=jnp.float32)
        y = y + slab_ref[lm.bskip_off:lm.bskip_off + rows_out, 0:1]

        # ---- AdaptiveMaxPool1d -----------------------------------------------------------------
        if lm.is_last:
            # Last AdaptiveMaxPool(t_out) + head's AdaptiveMaxPool(1) fuse to one global max.
            h = jnp.max(y, axis=-1, keepdims=True)                       # (nb*C_last, 1)
        elif lm.win:
            # Divisible windows: max of `win` lane-selection matmuls (no concat / roll / stride).
            parts = [jnp.dot(y, slab_ref[so:so + t_in, 0:lm.t_out],
                             preferred_element_type=jnp.float32) for so in lm.sel_offs]
            h = functools.reduce(jnp.maximum, parts)                     # (rows_out, t_out)
        else:
            # Ragged fallback: PyTorch floor/ceil window boundaries.
            cols = [jnp.max(y[:, (i * t_in) // lm.t_out:_ceil_div((i + 1) * t_in, lm.t_out)],
                            axis=-1, keepdims=True) for i in range(lm.t_out)]
            h = jnp.concatenate(cols, axis=-1) if lm.t_out > 1 else cols[0]

    # ---- head: Flatten + Linear, emitted lane-dense as (nb, latent) ----------------------------
    hm = meta.head
    rows = nb * hm.c_last
    zin = h * slab_ref[hm.wlat_off:hm.wlat_off + rows, 0:hm.latent]      # (nb*C_last, latent)
    z = jnp.dot(slab_ref[hm.a_off:hm.a_off + nb, 0:rows], zin,
                preferred_element_type=jnp.float32)                      # (nb, latent)
    z = z + slab_ref[hm.blat_off:hm.blat_off + 1, 0:hm.latent]
    out_ref[...] = z.astype(out_ref.dtype)


# --------------------------------------------------------------------------------------------
# Wrapper: layout plumbing + single pallas_call for the whole forward pass.
# --------------------------------------------------------------------------------------------
@functools.partial(jax.jit, static_argnames=("meta", "batch_blocks"))
def skip_encoder_forward(x, slab, *, meta, batch_blocks=1):
    # batch_blocks: number of grid steps the batch is split into.  Keep 1 on v5e/v6e (single
    # TensorCore -> splitting only adds per-step overhead).  On v7x only use 2 when per-core work
    # exceeds fixed per-step overhead AND (nb*C0) % 8 == 0 and nb % 8 == 0.
    n, c0, t0 = x.shape
    nb = meta.nb
    assert n == nb * batch_blocks, "batch must equal meta.nb * batch_blocks (repack if changed)"
    assert c0 == meta.layers[0].c_in and t0 == meta.layers[0].t_in
    latent = meta.head.latent
    if batch_blocks > 1:
        assert (nb * c0) % 8 == 0 and nb % 8 == 0, "grid-split blocks must be sublane-aligned"

    x2 = x.reshape(n * c0, t0)                       # batch stacked along sublanes (free reshape)

    # Advisory cost estimate so XLA schedules the tiny custom call sensibly.
    flops, trans = 0, 0
    for lm in meta.layers:
        ri, ro = nb * lm.c_in, nb * lm.c_out
        flops += 2 * ro * ri * lm.t_in * (lm.ksize + 1) + 10 * ro * lm.t_in
        if lm.win and not lm.is_last:
            flops += 2 * ro * lm.t_in * lm.t_out * lm.win
        trans += ro * lm.t_in
    flops += 2 * nb * (nb * meta.head.c_last) * latent
    bytes_accessed = int(x2.size * x2.dtype.itemsize + slab.size * slab.dtype.itemsize
                         + n * latent * x.dtype.itemsize)

    kern = functools.partial(_skip_encoder_kernel, meta=meta)
    out = pl.pallas_call(
        kern,
        out_shape=jax.ShapeDtypeStruct((n, latent), x.dtype),
        grid=(batch_blocks,),
        in_specs=[
            pl.BlockSpec((nb * c0, t0), lambda i: (i, 0)),                        # input block
            pl.BlockSpec((meta.slab_rows, meta.slab_cols), lambda i: (0, 0)),     # packed params
        ],
        out_specs=pl.BlockSpec((nb, latent), lambda i: (i, 0)),                   # lane-dense out
        scratch_shapes=[pltpu.VMEM((meta.pad_rows, meta.pad_cols), jnp.float32)], # pad slab
        compiler_params=pltpu.CompilerParams(dimension_semantics=("parallel",)),
        cost_estimate=pl.CostEstimate(flops=int(flops), transcendentals=int(trans),
                                      bytes_accessed=bytes_accessed),
    )(x2, slab)
    return out                                                                    # (N, latent)


# --------------------------------------------------------------------------------------------
# Parameter construction (PyTorch Conv1d/LayerNorm/Linear layouts) and a pure-JAX reference.
# --------------------------------------------------------------------------------------------
def init_params(key, channels, timesteps, latent_dim, kernel_size):
    layers = []
    for i in range(len(timesteps) - 1):
        key, k1, k2, k3, k4 = jax.random.split(key, 5)
        c_in, c_out, t_in = channels[i], channels[i + 1], timesteps[i]
        layers.append(dict(
            wconv=0.1 * jax.random.normal(k1, (c_out, c_in, kernel_size), jnp.float32),
            bconv=0.01 * jax.random.normal(k2, (c_out,), jnp.float32),
            gamma=jnp.ones((t_in,), jnp.float32),
            beta=jnp.zeros((t_in,), jnp.float32),
            wskip=0.1 * jax.random.normal(k3, (c_out, c_in, 1), jnp.float32),
            bskip=0.01 * jax.random.normal(k4, (c_out,), jnp.float32),
        ))
    key, k1, k2 = jax.random.split(key, 3)
    return dict(layers=layers,
                wlat=0.1 * jax.random.normal(k1, (latent_dim, channels[-1]), jnp.float32),
                blat=0.01 * jax.random.normal(k2, (latent_dim,), jnp.float32))


def _reference_forward(x, params, timesteps, kernel_size):
    """Pure-JAX (XLA) reference implementing the same math (exact-erf GELU)."""
    hi = jax.lax.Precision.HIGHEST
    h = x
    for l in range(len(timesteps) - 1):
        p = params["layers"][l]
        d = l + 1
        total = d * (kernel_size - 1)
        padl, padr = total // 2, total - total // 2
        t_in = h.shape[-1]
        hp = jnp.pad(h, ((0, 0), (0, 0), (padl, padr)))
        conv = sum(jnp.einsum("oc,nct->not", p["wconv"][:, :, tap],
                              hp[:, :, tap * d: tap * d + t_in], precision=hi)
                   for tap in range(kernel_size)) + p["bconv"][None, :, None]
        mean = conv.mean(-1, keepdims=True)
        var = jnp.square(conv - mean).mean(-1, keepdims=True)
        y = (conv - mean) * jax.lax.rsqrt(var + 1e-5)
        y = y * p["gamma"][None, None, :] + p["beta"][None, None, :]
        y = 0.5 * y * (1.0 + jax.scipy.special.erf(y / jnp.sqrt(2.0)))
        y = y + jnp.einsum("oc,nct->not", p["wskip"][:, :, 0], h, precision=hi) \
              + p["bskip"][None, :, None]
        t_out = timesteps[l + 1]
        cols = [y[:, :, (i * t_in) // t_out:_ceil_div((i + 1) * t_in, t_out)].max(-1)
                for i in range(t_out)]
        h = jnp.stack(cols, axis=-1)
    pooled = h.max(-1)                                    # AdaptiveMaxPool1d(1) + Flatten
    return jnp.dot(pooled, params["wlat"].T, precision=hi) + params["blat"][None, :]


if __name__ == "__main__":
    # Consistent in-kernel / reference matmul precision (f32).
    jax.config.update("jax_default_matmul_precision", "highest")

    latent_dim = 8
    channels = (4, 8, 16)
    timesteps = (16, 8, 4)
    kernel_size = 3
    batch = 2

    key = jax.random.PRNGKey(0)
    key_p, key_x = jax.random.split(key)
    params = init_params(key_p, channels, timesteps, latent_dim, kernel_size)
    x = jax.random.normal(key_x, (batch, channels[0], timesteps[0]), jnp.float32)

    slab, meta = pack_skip_encoder_params(params, timesteps=timesteps,
                                          kernel_size=kernel_size, nb=batch)

    z = skip_encoder_forward(x, slab, meta=meta, batch_blocks=1)
    z = jax.block_until_ready(z)
    assert z.shape == (batch, latent_dim), z.shape

    z_ref = _reference_forward(x, params, timesteps, kernel_size)
    # Tolerance covers MXU f32-pass rounding and the 1.5e-7 erf polynomial error.
    assert jnp.allclose(z, z_ref, rtol=5e-3, atol=5e-3), float(jnp.max(jnp.abs(z - z_ref)))

    print("KERNEL_OK")
</pallas_src>

<mosaic_0001>
module attributes {stable_mosaic.version = 11 : i64} {
  func.func @_skip_encoder_kernel(%arg0: i32, %arg1: memref<8x16xf32, #tpu.memory_space<vmem>>, %arg2: memref<400x128xf32, #tpu.memory_space<vmem>>, %arg3: memref<2x8xf32, #tpu.memory_space<vmem>>, %arg4: memref<16x128xf32, #tpu.memory_space<vmem>>) attributes {dimension_semantics = [#tpu.dimension_semantics<parallel>], iteration_bounds = array<i64: 1>, scalar_prefetch = 0 : i64, scratch_operands = 1 : i64, tpu.core_type = #tpu.core_type<tc>, window_params = [{transform_indices = @transform_0, window_bounds = array<i64: 8, 16>}, {pipeline_mode = #tpu.pipeline_mode<synchronous>, transform_indices = @transform_1, window_bounds = array<i64: 400, 128>}, {transform_indices = @transform_2, window_bounds = array<i64: 2, 8>}]} {
    %c0 = arith.constant 0 : index
    %c0_0 = arith.constant 0 : index
    %0 = vector.load %arg1[%c0, %c0_0] : memref<8x16xf32, #tpu.memory_space<vmem>>, vector<8x16xf32>
    %cst = arith.constant 0.000000e+00 : f32
    %1 = vector.broadcast %cst : f32 to vector<8x1xf32>
    %c0_1 = arith.constant 0 : index
    %c0_2 = arith.constant 0 : index
    %2 = vector.load %arg4[%c0_1, %c0_2] : memref<16x128xf32, #tpu.memory_space<vmem>>, vector<8x1xf32>
    tpu.vector_store %arg4[%c0_1, %c0_2], %1 {strides = array<i32>} : memref<16x128xf32, #tpu.memory_space<vmem>>, vector<8x1xf32>,
    %c0_3 = arith.constant 0 : index
    %c1 = arith.constant 1 : index
    %3 = vector.load %arg4[%c0_3, %c1] : memref<16x128xf32, #tpu.memory_space<vmem>>, vector<8x16xf32>
    tpu.vector_store %arg4[%c0_3, %c1], %0 {strides = array<i32>} : memref<16x128xf32, #tpu.memory_space<vmem>>, vector<8x16xf32>,
    %cst_4 = arith.constant 0.000000e+00 : f32
    %4 = vector.broadcast %cst_4 : f32 to vector<8x1xf32>
    %c0_5 = arith.constant 0 : index
    %c17 = arith.constant 17 : index
    %5 = vector.load %arg4[%c0_5, %c17] : memref<16x128xf32, #tpu.memory_space<vmem>>, vector<8x1xf32>
    tpu.vector_store %arg4[%c0_5, %c17], %4 {strides = array<i32>} : memref<16x128xf32, #tpu.memory_space<vmem>>, vector<8x1xf32>,
    %c0_6 = arith.constant 0 : index
    %c0_7 = arith.constant 0 : index
    %6 = vector.load %arg2[%c0_6, %c0_7] : memref<400x128xf32, #tpu.memory_space<vmem>>, vector<16x8xf32>
    %c0_8 = arith.constant 0 : index
    %c0_9 = arith.constant 0 : index
    %7 = vector.load %arg4[%c0_8, %c0_9] : memref<16x128xf32, #tpu.memory_space<vmem>>, vector<8x16xf32>
    %cst_10 = arith.constant dense<0.000000e+00> : vector<16x16xf32>
    %8 = tpu.matmul %6, %7, %cst_10 {dimension_numbers = #tpu.dot_dimension_numbers<[1], [0], [0], [1], [0, 0, 1, 1], [], []>, precision = #tpu.contract_precision<fp32>} : vector<16x8xf32>, vector<8x16xf32>, vector<16x16xf32> -> vector<16x16xf32>
    %c16 = arith.constant 16 : index
    %c0_11 = arith.constant 0 : index
    %9 = vector.load %arg2[%c16, %c0_11] : memref<400x128xf32, #tpu.memory_space<vmem>>, vector<16x8xf32>
    %c0_12 = arith.constant 0 : index
    %c1_13 = arith.constant 1 : index
    %10 = vector.load %arg4[%c0_12, %c1_13] : memref<16x128xf32, #tpu.memory_space<vmem>>, vector<8x16xf32>
    %cst_14 = arith.constant dense<0.000000e+00> : vector<16x16xf32>
    %11 = tpu.matmul %9, %10, %cst_14 {dimension_numbers = #tpu.dot_dimension_numbers<[1], [0], [0], [1], [0, 0, 1, 1], [], []>, precision = #tpu.contract_precision<fp32>} : vector<16x8xf32>, vector<8x16xf32>, vector<16x16xf32> -> vector<16x16xf32>
    %12 = arith.addf %8, %11 : vector<16x16xf32>
    %c32 = arith.constant 32 : index
    %c0_15 = arith.constant 0 : index
    %13 = vector.load %arg2[%c32, %c0_15] : memref<400x128xf32, #tpu.memory_space<vmem>>, vector<16x8xf32>
    %c0_16 = arith.constant 0 : index
    %c2 = arith.constant 2 : index
    %14 = vector.load %arg4[%c0_16, %c2] : memref<16x128xf32, #tpu.memory_space<vmem>>, vector<8x16xf32>
    %cst_17 = arith.constant dense<0.000000e+00> : vector<16x16xf32>
    %15 = tpu.matmul %13, %14, %cst_17 {dimension_numbers = #tpu.dot_dimension_numbers<[1], [0], [0], [1], [0, 0, 1, 1], [], []>, precision = #tpu.contract_precision<fp32>} : vector<16x8xf32>, vector<8x16xf32>, vector<16x16xf32> -> vector<16x16xf32>
    %16 = arith.addf %12, %15 : vector<16x16xf32>
    %c48 = arith.constant 48 : index
    %c0_18 = arith.constant 0 : index
    %17 = vector.load %arg2[%c48, %c0_18] : memref<400x128xf32, #tpu.memory_space<vmem>>, vector<16x1xf32>
    %18 = vector.broadcast %17 : vector<16x1xf32> to vector<16x16xf32>
    %19 = arith.addf %16, %18 : vector<16x16xf32>
    %cst_19 = arith.constant dense<0.000000e+00> : vector<16xf32>
    %20 = vector.multi_reduction <add>, %19, %cst_19 [1] : vector<16x16xf32> to vector<16xf32>
    %21 = vector.shape_cast %20 : vector<16xf32> to vector<16x1xf32>
    %cst_20 = arith.constant 1.600000e+01 : f32
    %22 = vector.broadcast %cst_20 : f32 to vector<16x1xf32>
    %23 = arith.divf %21, %22 : vector<16x1xf32>
    %24 = vector.broadcast %23 : vector<16x1xf32> to vector<16x16xf32>
    %25 = arith.subf %19, %24 : vector<16x16xf32>
    %26 = arith.mulf %25, %25 : vector<16x16xf32>
    %cst_21 = arith.constant dense<0.000000e+00> : vector<16xf32>
    %27 = vector.multi_reduction <add>, %26, %cst_21 [1] : vector<16x16xf32> to vector<16xf32>
    %28 = vector.shape_cast %27 : vector<16xf32> to vector<16x1xf32>
    %cst_22 = arith.constant 1.600000e+01 : f32
    %29 = vector.broadcast %cst_22 : f32 to vector<16x1xf32>
    %30 = arith.divf %28, %29 : vector<16x1xf32>
    %31 = vector.broadcast %23 : vector<16x1xf32> to vector<16x16xf32>
    %32 = arith.subf %19, %31 : vector<16x16xf32>
    %cst_23 = arith.constant 9.99999974E-6 : f32
    %33 = vector.broadcast %cst_23 : f32 to vector<16x1xf32>
    %34 = arith.addf %30, %33 : vector<16x1xf32>
    %35 = math.rsqrt %34 : vector<16x1xf32>
    %36 = vector.broadcast %35 : vector<16x1xf32> to vector<16x16xf32>
    %37 = arith.mulf %32, %36 : vector<16x16xf32>
    %c64 = arith.constant 64 : index
    %c0_24 = arith.constant 0 : index
    %38 = vector.load %arg2[%c64, %c0_24] : memref<400x128xf32, #tpu.memory_space<vmem>>, vector<1x16xf32>
    %39 = vector.broadcast %38 : vector<1x16xf32> to vector<16x16xf32>
    %40 = arith.mulf %37, %39 : vector<16x16xf32>
    %c72 = arith.constant 72 : index
    %c0_25 = arith.constant 0 : index
    %41 = vector.load %arg2[%c72, %c0_25] : memref<400x128xf32, #tpu.memory_space<vmem>>, vector<1x16xf32>
    %42 = vector.broadcast %41 : vector<1x16xf32> to vector<16x16xf32>
    %43 = arith.addf %40, %42 : vector<16x16xf32>
    %cst_26 = arith.constant 5.000000e-01 : f32
    %44 = vector.broadcast %cst_26 : f32 to vector<16x16xf32>
    %45 = arith.mulf %44, %43 : vector<16x16xf32>
    %cst_27 = arith.constant 0.707106769 : f32
    %46 = vector.broadcast %cst_27 : f32 to vector<16x16xf32>
    %47 = arith.mulf %43, %46 : vector<16x16xf32>
    %cst_28 = arith.constant 0.000000e+00 : f32
    %48 = vector.broadcast %cst_28 : f32 to vector<16x16xf32>
    %49 = arith.cmpf olt, %47, %48 : vector<16x16xf32>
    %cst_29 = arith.constant -1.000000e+00 : f32
    %cst_30 = arith.constant 1.000000e+00 : f32
    %50 = vector.broadcast %cst_29 : f32 to vector<16x16xf32>
    %51 = vector.broadcast %cst_30 : f32 to vector<16x16xf32>
    %52 = arith.select %49, %50, %51 : vector<16x16xi1>, vector<16x16xf32>
    %53 = math.absf %47 : vector<16x16xf32>
    %cst_31 = arith.constant 0.327591091 : f32
    %54 = vector.broadcast %cst_31 : f32 to vector<16x16xf32>
    %55 = arith.mulf %54, %53 : vector<16x16xf32>
    %cst_32 = arith.constant 1.000000e+00 : f32
    %56 = vector.broadcast %cst_32 : f32 to vector<16x16xf32>
    %57 = arith.addf %56, %55 : vector<16x16xf32>
    %cst_33 = arith.constant 1.000000e+00 : f32
    %58 = vector.broadcast %cst_33 : f32 to vector<16x16xf32>
    %59 = arith.divf %58, %57 : vector<16x16xf32>
    %cst_34 = arith.constant 1.06140542 : f32
    %60 = vector.broadcast %cst_34 : f32 to vector<16x16xf32>
    %61 = arith.mulf %59, %60 : vector<16x16xf32>
    %cst_35 = arith.constant -1.45315206 : f32
    %62 = vector.broadcast %cst_35 : f32 to vector<16x16xf32>
    %63 = arith.addf %62, %61 : vector<16x16xf32>
    %64 = arith.mulf %59, %63 : vector<16x16xf32>
    %cst_36 = arith.constant 1.42141378 : f32
    %65 = vector.broadcast %cst_36 : f32 to vector<16x16xf32>
    %66 = arith.addf %65, %64 : vector<16x16xf32>
    %67 = arith.mulf %59, %66 : vector<16x16xf32>
    %cst_37 = arith.constant -0.284496725 : f32
    %68 = vector.broadcast %cst_37 : f32 to vector<16x16xf32>
    %69 = arith.addf %68, %67 : vector<16x16xf32>
    %70 = arith.mulf %59, %69 : vector<16x16xf32>
    %cst_38 = arith.constant 0.254829586 : f32
    %71 = vector.broadcast %cst_38 : f32 to vector<16x16xf32>
    %72 = arith.addf %71, %70 : vector<16x16xf32>
    %73 = arith.mulf %59, %72 : vector<16x16xf32>
    %cst_39 = arith.constant 0.000000e+00 : f32
    %74 = vector.broadcast %cst_39 : f32 to vector<16x16xf32>
    %75 = arith.subf %74, %53 : vector<16x16xf32>
    %76 = arith.mulf %75, %53 : vector<16x16xf32>
    %77 = math.exp %76 : vector<16x16xf32>
    %78 = arith.mulf %73, %77 : vector<16x16xf32>
    %cst_40 = arith.constant 1.000000e+00 : f32
    %79 = vector.broadcast %cst_40 : f32 to vector<16x16xf32>
    %80 = arith.subf %79, %78 : vector<16x16xf32>
    %81 = arith.mulf %52, %80 : vector<16x16xf32>
    %cst_41 = arith.constant 1.000000e+00 : f32
    %82 = vector.broadcast %cst_41 : f32 to vector<16x16xf32>
    %83 = arith.addf %82, %81 : vector<16x16xf32>
    %84 = arith.mulf %45, %83 : vector<16x16xf32>
    %c80 = arith.constant 80 : index
    %c0_42 = arith.constant 0 : index
    %85 = vector.load %arg2[%c80, %c0_42] : memref<400x128xf32, #tpu.memory_space<vmem>>, vector<16x8xf32>
    %cst_43 = arith.constant dense<0.000000e+00> : vector<16x16xf32>
    %86 = tpu.matmul %85, %0, %cst_43 {dimension_numbers = #tpu.dot_dimension_numbers<[1], [0], [0], [1], [0, 0, 1, 1], [], []>, precision = #tpu.contract_precision<fp32>} : vector<16x8xf32>, vector<8x16xf32>, vector<16x16xf32> -> vector<16x16xf32>
    %87 = arith.addf %84, %86 : vector<16x16xf32>
    %c96 = arith.constant 96 : index
    %c0_44 = arith.constant 0 : index
    %88 = vector.load %arg2[%c96, %c0_44] : memref<400x128xf32, #tpu.memory_space<vmem>>, vector<16x1xf32>
    %89 = vector.broadcast %88 : vector<16x1xf32> to vector<16x16xf32>
    %90 = arith.addf %87, %89 : vector<16x16xf32>
    %c112 = arith.constant 112 : index
    %c0_45 = arith.constant 0 : index
    %91 = vector.load %arg2[%c112, %c0_45] : memref<400x128xf32, #tpu.memory_space<vmem>>, vector<16x8xf32>
    %cst_46 = arith.constant dense<0.000000e+00> : vector<16x8xf32>
    %92 = tpu.matmul %90, %91, %cst_46 {dimension_numbers = #tpu.dot_dimension_numbers<[1], [0], [0], [1], [0, 0, 1, 1], [], []>, precision = #tpu.contract_precision<fp32>} : vector<16x16xf32>, vector<16x8xf32>, vector<16x8xf32> -> vector<16x8xf32>
    %c128 = arith.constant 128 : index
    %c0_47 = arith.constant 0 : index
    %93 = vector.load %arg2[%c128, %c0_47] : memref<400x128xf32, #tpu.memory_space<vmem>>, vector<16x8xf32>
    %cst_48 = arith.constant dense<0.000000e+00> : vector<16x8xf32>
    %94 = tpu.matmul %90, %93, %cst_48 {dimension_numbers = #tpu.dot_dimension_numbers<[1], [0], [0], [1], [0, 0, 1, 1], [], []>, precision = #tpu.contract_precision<fp32>} : vector<16x16xf32>, vector<16x8xf32>, vector<16x8xf32> -> vector<16x8xf32>
    %95 = arith.maximumf %92, %94 : vector<16x8xf32>
    %cst_49 = arith.constant 0.000000e+00 : f32
    %96 = vector.broadcast %cst_49 : f32 to vector<16x2xf32>
    %c0_50 = arith.constant 0 : index
    %c0_51 = arith.constant 0 : index
    %97 = vector.load %arg4[%c0_50, %c0_51] : memref<16x128xf32, #tpu.memory_space<vmem>>, vector<16x2xf32>
    tpu.vector_store %arg4[%c0_50, %c0_51], %96 {strides = array<i32>} : memref<16x128xf32, #tpu.memory_space<vmem>>, vector<16x2xf32>,
    %c0_52 = arith.constant 0 : index
    %c2_53 = arith.constant 2 : index
    %98 = vector.load %arg4[%c0_52, %c2_53] : memref<16x128xf32, #tpu.memory_space<vmem>>, vector<16x8xf32>
    tpu.vector_store %arg4[%c0_52, %c2_53], %95 {strides = array<i32>} : memref<16x128xf32, #tpu.memory_space<vmem>>, vector<16x8xf32>,
    %cst_54 = arith.constant 0.000000e+00 : f32
    %99 = vector.broadcast %cst_54 : f32 to vector<16x2xf32>
    %c0_55 = arith.constant 0 : index
    %c10 = arith.constant 10 : index
    %100 = vector.load %arg4[%c0_55, %c10] : memref<16x128xf32, #tpu.memory_space<vmem>>, vector<16x2xf32>
    tpu.vector_store %arg4[%c0_55, %c10], %99 {strides = array<i32>} : memref<16x128xf32, #tpu.memory_space<vmem>>, vector<16x2xf32>,
    %c144 = arith.constant 144 : index
    %c0_56 = arith.constant 0 : index
    %101 = vector.load %arg2[%c144, %c0_56] : memref<400x128xf32, #tpu.memory_space<vmem>>, vector<32x16xf32>
    %c0_57 = arith.constant 0 : index
    %c0_58 = arith.constant 0 : index
    %102 = vector.load %arg4[%c0_57, %c0_58] : memref<16x128xf32, #tpu.memory_space<vmem>>, vector<16x8xf32>
    %cst_59 = arith.constant dense<0.000000e+00> : vector<32x8xf32>
    %103 = tpu.matmul %101, %102, %cst_59 {dimension_numbers = #tpu.dot_dimension_numbers<[1], [0], [0], [1], [0, 0, 1, 1], [], []>, precision = #tpu.contract_precision<fp32>} : vector<32x16xf32>, vector<16x8xf32>, vector<32x8xf32> -> vector<32x8xf32>
    %c176 = arith.constant 176 : index
    %c0_60 = arith.constant 0 : index
    %104 = vector.load %arg2[%c176, %c0_60] : memref<400x128xf32, #tpu.memory_space<vmem>>, vector<32x16xf32>
    %c0_61 = arith.constant 0 : index
    %c2_62 = arith.constant 2 : index
    %105 = vector.load %arg4[%c0_61, %c2_62] : memref<16x128xf32, #tpu.memory_space<vmem>>, vector<16x8xf32>
    %cst_63 = arith.constant dense<0.000000e+00> : vector<32x8xf32>
    %106 = tpu.matmul %104, %105, %cst_63 {dimension_numbers = #tpu.dot_dimension_numbers<[1], [0], [0], [1], [0, 0, 1, 1], [], []>, precision = #tpu.contract_precision<fp32>} : vector<32x16xf32>, vector<16x8xf32>, vector<32x8xf32> -> vector<32x8xf32>
    %107 = arith.addf %103, %106 : vector<32x8xf32>
    %c208 = arith.constant 208 : index
    %c0_64 = arith.constant 0 : index
    %108 = vector.load %arg2[%c208, %c0_64] : memref<400x128xf32, #tpu.memory_space<vmem>>, vector<32x16xf32>
    %c0_65 = arith.constant 0 : index
    %c4 = arith.constant 4 : index
    %109 = vector.load %arg4[%c0_65, %c4] : memref<16x128xf32, #tpu.memory_space<vmem>>, vector<16x8xf32>
    %cst_66 = arith.constant dense<0.000000e+00> : vector<32x8xf32>
    %110 = tpu.matmul %108, %109, %cst_66 {dimension_numbers = #tpu.dot_dimension_numbers<[1], [0], [0], [1], [0, 0, 1, 1], [], []>, precision = #tpu.contract_precision<fp32>} : vector<32x16xf32>, vector<16x8xf32>, vector<32x8xf32> -> vector<32x8xf32>
    %111 = arith.addf %107, %110 : vector<32x8xf32>
    %c240 = arith.constant 240 : index
    %c0_67 = arith.constant 0 : index
    %112 = vector.load %arg2[%c240, %c0_67] : memref<400x128xf32, #tpu.memory_space<vmem>>, vector<32x1xf32>
    %113 = vector.broadcast %112 : vector<32x1xf32> to vector<32x8xf32>
    %114 = arith.addf %111, %113 : vector<32x8xf32>
    %cst_68 = arith.constant dense<0.000000e+00> : vector<32xf32>
    %115 = vector.multi_reduction <add>, %114, %cst_68 [1] : vector<32x8xf32> to vector<32xf32>
    %116 = vector.shape_cast %115 : vector<32xf32> to vector<32x1xf32>
    %cst_69 = arith.constant 8.000000e+00 : f32
    %117 = vector.broadcast %cst_69 : f32 to vector<32x1xf32>
    %118 = arith.divf %116, %117 : vector<32x1xf32>
    %119 = vector.broadcast %118 : vector<32x1xf32> to vector<32x8xf32>
    %120 = arith.subf %114, %119 : vector<32x8xf32>
    %121 = arith.mulf %120, %120 : vector<32x8xf32>
    %cst_70 = arith.constant dense<0.000000e+00> : vector<32xf32>
    %122 = vector.multi_reduction <add>, %121, %cst_70 [1] : vector<32x8xf32> to vector<32xf32>
    %123 = vector.shape_cast %122 : vector<32xf32> to vector<32x1xf32>
    %cst_71 = arith.constant 8.000000e+00 : f32
    %124 = vector.broadcast %cst_71 : f32 to vector<32x1xf32>
    %125 = arith.divf %123, %124 : vector<32x1xf32>
    %126 = vector.broadcast %118 : vector<32x1xf32> to vector<32x8xf32>
    %127 = arith.subf %114, %126 : vector<32x8xf32>
    %cst_72 = arith.constant 9.99999974E-6 : f32
    %128 = vector.broadcast %cst_72 : f32 to vector<32x1xf32>
    %129 = arith.addf %125, %128 : vector<32x1xf32>
    %130 = math.rsqrt %129 : vector<32x1xf32>
    %131 = vector.broadcast %130 : vector<32x1xf32> to vector<32x8xf32>
    %132 = arith.mulf %127, %131 : vector<32x8xf32>
    %c272 = arith.constant 272 : index
    %c0_73 = arith.constant 0 : index
    %133 = vector.load %arg2[%c272, %c0_73] : memref<400x128xf32, #tpu.memory_space<vmem>>, vector<1x8xf32>
    %134 = vector.broadcast %133 : vector<1x8xf32> to vector<32x8xf32>
    %135 = arith.mulf %132, %134 : vector<32x8xf32>
    %c280 = arith.constant 280 : index
    %c0_74 = arith.constant 0 : index
    %136 = vector.load %arg2[%c280, %c0_74] : memref<400x128xf32, #tpu.memory_space<vmem>>, vector<1x8xf32>
    %137 = vector.broadcast %136 : vector<1x8xf32> to vector<32x8xf32>
    %138 = arith.addf %135, %137 : vector<32x8xf32>
    %cst_75 = arith.constant 5.000000e-01 : f32
    %139 = vector.broadcast %cst_75 : f32 to vector<32x8xf32>
    %140 = arith.mulf %139, %138 : vector<32x8xf32>
    %cst_76 = arith.constant 0.707106769 : f32
    %141 = vector.broadcast %cst_76 : f32 to vector<32x8xf32>
    %142 = arith.mulf %138, %141 : vector<32x8xf32>
    %cst_77 = arith.constant 0.000000e+00 : f32
    %143 = vector.broadcast %cst_77 : f32 to vector<32x8xf32>
    %144 = arith.cmpf olt, %142, %143 : vector<32x8xf32>
    %cst_78 = arith.constant -1.000000e+00 : f32
    %cst_79 = arith.constant 1.000000e+00 : f32
    %145 = vector.broadcast %cst_78 : f32 to vector<32x8xf32>
    %146 = vector.broadcast %cst_79 : f32 to vector<32x8xf32>
    %147 = arith.select %144, %145, %146 : vector<32x8xi1>, vector<32x8xf32>
    %148 = math.absf %142 : vector<32x8xf32>
    %cst_80 = arith.constant 0.327591091 : f32
    %149 = vector.broadcast %cst_80 : f32 to vector<32x8xf32>
    %150 = arith.mulf %149, %148 : vector<32x8xf32>
    %cst_81 = arith.constant 1.000000e+00 : f32
    %151 = vector.broadcast %cst_81 : f32 to vector<32x8xf32>
    %152 = arith.addf %151, %150 : vector<32x8xf32>
    %cst_82 = arith.constant 1.000000e+00 : f32
    %153 = vector.broadcast %cst_82 : f32 to vector<32x8xf32>
    %154 = arith.divf %153, %152 : vector<32x8xf32>
    %cst_83 = arith.constant 1.06140542 : f32
    %155 = vector.broadcast %cst_83 : f32 to vector<32x8xf32>
    %156 = arith.mulf %154, %155 : vector<32x8xf32>
    %cst_84 = arith.constant -1.45315206 : f32
    %157 = vector.broadcast %cst_84 : f32 to vector<32x8xf32>
    %158 = arith.addf %157, %156 : vector<32x8xf32>
    %159 = arith.mulf %154, %158 : vector<32x8xf32>
    %cst_85 = arith.constant 1.42141378 : f32
    %160 = vector.broadcast %cst_85 : f32 to vector<32x8xf32>
    %161 = arith.addf %160, %159 : vector<32x8xf32>
    %162 = arith.mulf %154, %161 : vector<32x8xf32>
    %cst_86 = arith.constant -0.284496725 : f32
    %163 = vector.broadcast %cst_86 : f32 to vector<32x8xf32>
    %164 = arith.addf %163, %162 : vector<32x8xf32>
    %165 = arith.mulf %154, %164 : vector<32x8xf32>
    %cst_87 = arith.constant 0.254829586 : f32
    %166 = vector.broadcast %cst_87 : f32 to vector<32x8xf32>
    %167 = arith.addf %166, %165 : vector<32x8xf32>
    %168 = arith.mulf %154, %167 : vector<32x8xf32>
    %cst_88 = arith.constant 0.000000e+00 : f32
    %169 = vector.broadcast %cst_88 : f32 to vector<32x8xf32>
    %170 = arith.subf %169, %148 : vector<32x8xf32>
    %171 = arith.mulf %170, %148 : vector<32x8xf32>
    %172 = math.exp %171 : vector<32x8xf32>
    %173 = arith.mulf %168, %172 : vector<32x8xf32>
    %cst_89 = arith.constant 1.000000e+00 : f32
    %174 = vector.broadcast %cst_89 : f32 to vector<32x8xf32>
    %175 = arith.subf %174, %173 : vector<32x8xf32>
    %176 = arith.mulf %147, %175 : vector<32x8xf32>
    %cst_90 = arith.constant 1.000000e+00 : f32
    %177 = vector.broadcast %cst_90 : f32 to vector<32x8xf32>
    %178 = arith.addf %177, %176 : vector<32x8xf32>
    %179 = arith.mulf %140, %178 : vector<32x8xf32>
    %c288 = arith.constant 288 : index
    %c0_91 = arith.constant 0 : index
    %180 = vector.load %arg2[%c288, %c0_91] : memref<400x128xf32, #tpu.memory_space<vmem>>, vector<32x16xf32>
    %cst_92 = arith.constant dense<0.000000e+00> : vector<32x8xf32>
    %181 = tpu.matmul %180, %95, %cst_92 {dimension_numbers = #tpu.dot_dimension_numbers<[1], [0], [0], [1], [0, 0, 1, 1], [], []>, precision = #tpu.contract_precision<fp32>} : vector<32x16xf32>, vector<16x8xf32>, vector<32x8xf32> -> vector<32x8xf32>
    %182 = arith.addf %179, %181 : vector<32x8xf32>
    %c320 = arith.constant 320 : index
    %c0_93 = arith.constant 0 : index
    %183 = vector.load %arg2[%c320, %c0_93] : memref<400x128xf32, #tpu.memory_space<vmem>>, vector<32x1xf32>
    %184 = vector.broadcast %183 : vector<32x1xf32> to vector<32x8xf32>
    %185 = arith.addf %182, %184 : vector<32x8xf32>
    %cst_94 = arith.constant dense<0xFF800000> : vector<32xf32>
    %186 = vector.multi_reduction <maximumf>, %185, %cst_94 [1] : vector<32x8xf32> to vector<32xf32>
    %187 = vector.shape_cast %186 : vector<32xf32> to vector<32x1xf32>
    %c360 = arith.constant 360 : index
    %c0_95 = arith.constant 0 : index
    %188 = vector.load %arg2[%c360, %c0_95] : memref<400x128xf32, #tpu.memory_space<vmem>>, vector<32x8xf32>
    %189 = vector.broadcast %187 : vector<32x1xf32> to vector<32x8xf32>
    %190 = arith.mulf %189, %188 : vector<32x8xf32>
    %c352 = arith.constant 352 : index
    %c0_96 = arith.constant 0 : index
    %191 = vector.load %arg2[%c352, %c0_96] : memref<400x128xf32, #tpu.memory_space<vmem>>, vector<2x32xf32>
    %cst_97 = arith.constant dense<0.000000e+00> : vector<2x8xf32>
    %192 = tpu.matmul %191, %190, %cst_97 {dimension_numbers = #tpu.dot_dimension_numbers<[1], [0], [0], [1], [0, 0, 1, 1], [], []>, precision = #tpu.contract_precision<fp32>} : vector<2x32xf32>, vector<32x8xf32>, vector<2x8xf32> -> vector<2x8xf32>
    %c392 = arith.constant 392 : index
    %c0_98 = arith.constant 0 : index
    %193 = vector.load %arg2[%c392, %c0_98] : memref<400x128xf32, #tpu.memory_space<vmem>>, vector<1x8xf32>
    %194 = vector.broadcast %193 : vector<1x8xf32> to vector<2x8xf32>
    %195 = arith.addf %192, %194 : vector<2x8xf32>
    %c0_99 = arith.constant 0 : index
    %c0_100 = arith.constant 0 : index
    %196 = vector.load %arg3[%c0_99, %c0_100] : memref<2x8xf32, #tpu.memory_space<vmem>>, vector<2x8xf32>
    tpu.vector_store %arg3[%c0_99, %c0_100], %195 {strides = array<i32>} : memref<2x8xf32, #tpu.memory_space<vmem>>, vector<2x8xf32>,
    return
  }
  func.func @transform_0(%arg0: i32) -> (i32, i32) {
    %c0_i32 = arith.constant 0 : i32
    %c0_i32_0 = arith.constant 0 : i32
    return %arg0, %c0_i32 : i32, i32
  }
  func.func @transform_1(%arg0: i32) -> (i32, i32) {
    %c0_i32 = arith.constant 0 : i32
    %c0_i32_0 = arith.constant 0 : i32
    %c0_i32_1 = arith.constant 0 : i32
    return %c0_i32, %c0_i32_0 : i32, i32
  }
  func.func @transform_2(%arg0: i32) -> (i32, i32) {
    %c0_i32 = arith.constant 0 : i32
    %c0_i32_0 = arith.constant 0 : i32
    return %arg0, %c0_i32 : i32, i32
  }
}

</mosaic_0001>

<llo_original>
// kernel: skip_encoder_forward.1
$region0: #{skip_encoder_forward.1}
  #allocation0 [shape = 'u32[]', space=smem, size = 0x4, offset = 0x4, fixed_abs, tag = 'smem constant byte address 0x4 - core index']
  #allocation1 [shape = 'u32[72,128]{1,0:T(1,128)}', space=vmem, size = 0x9000, scoped, tag = 'internal scratch']
  #allocation2 [shape = 'f32[16,128]{1,0:T(8,128)}', space=vmem, size = 0x2000, scoped, tag = 'scratch operand']
  %s0 = inlined_call_operand.hbm [shape: f32[8,16], index: 0, kind: input, shape index: {}]
  %s1 = inlined_call_operand.hbm [shape: f32[400,128], index: 1, kind: input, shape index: {}]
  %s2 = inlined_call_operand.hbm [shape: f32[2,8], index: 2, kind: output, shape index: {}]
  %s3 = sld [smem:[#allocation0]]
  $region26: #{skip_encoder_forward.1} parent=0
    _
  %s5 = ssub.s32 1, %s3
  %s6 = scalar_select 0, %s5, %s3
  $region1: #{skip_encoder_forward.1} parent=0
    #allocation3 [shape = 'u8[4096]{0}', space=vmem, size = 0x1000, scoped, tag = 'input window, operand 0, single buffered']
    #allocation4 [shape = 's32[1]{0}', space=sflag, size = 0x4, scoped, tag = 'scoped memory for skip_encoder_forward.1']
    #allocation5 [shape = 's32[1]{0}', space=sflag, size = 0x4, scoped, tag = 'scoped memory for skip_encoder_forward.1']
    #allocation6 [shape = 'u8[204800]{0}', space=vmem, size = 0x32000, scoped, tag = 'input window, operand 1, single buffered']
    #allocation7 [shape = 's32[1]{0}', space=sflag, size = 0x4, scoped, tag = 'scoped memory for skip_encoder_forward.1']
    #allocation8 [shape = 'u8[1024]{0}', space=vmem, size = 0x400, scoped, tag = 'output window, operand 0, single buffered']
    %7 = vsyncpa [#allocation4], 0
    %8 = vsyncpa [#allocation7], 0
    %9 = vsyncpa [#allocation5], 0
    // Predicated region
    $region2: #{skip_encoder_forward.1} parent=1 // pred_check
      _
    $region3: #{skip_encoder_forward.1} parent=1 // pred_check_branch
      %11 = sbr.rel (0) target = $region5
    $region4: #{skip_encoder_forward.1} parent=1 // pred_region
      %13 = vsyncadd [#allocation4], 0
      %s15 = sshll.u32 %s0, 4
      %s16 = int_to_ptr.hbm [resolvable:$true] %s15
      %s17 = sshll.u32 [#allocation3], 4
      %s18 = int_to_ptr.vmem [resolvable:$true] %s17
      %20 = dma.hbm_to_vmem [thread:$0]  %s16, 128, %s18, [#allocation4]
    $region5: #{skip_encoder_forward.1} parent=1 // pred_fallthru
      _
    // Predicated region
    $region6: #{skip_encoder_forward.1} parent=1 // pred_check
      _
    $region7: #{skip_encoder_forward.1} parent=1 // pred_check_branch
      %22 = sbr.rel (0) target = $region9
    $region8: #{skip_encoder_forward.1} parent=1 // pred_region
      %24 = vsyncadd [#allocation7], 0
      %s25 = sshll.u32 %s1, 4
      %s26 = int_to_ptr.hbm [resolvable:$true] %s25
      %s27 = sshll.u32 [#allocation6], 4
      %s28 = int_to_ptr.vmem [resolvable:$true] %s27
      %33 = dma.hbm_to_vmem [thread:$0]  %s26, 6400, %s28, [#allocation7], 128, 128, 8
    $region9: #{skip_encoder_forward.1} parent=1 // pred_fallthru
      _
    // Predicated region
    $region10: #{skip_encoder_forward.1} parent=1 // pred_check
      _
    $region11: #{skip_encoder_forward.1} parent=1 // pred_check_branch
      %35 = sbr.rel (0) target = $region13
    $region12: #{skip_encoder_forward.1} parent=1 // pred_region
      %37 = dma.done [#allocation4], 128
    $region13: #{skip_encoder_forward.1} parent=1 // pred_fallthru
      _
    // Predicated region
    $region14: #{skip_encoder_forward.1} parent=1 // pred_check
      _
    $region15: #{skip_encoder_forward.1} parent=1 // pred_check_branch
      %39 = sbr.rel (0) target = $region17
    $region16: #{skip_encoder_forward.1} parent=1 // pred_region
      %41 = dma.done [#allocation7], 6400
    $region17: #{skip_encoder_forward.1} parent=1 // pred_fallthru
      _
    %v42 = vld [vmem:[#allocation3] sm:$0xff]
    %vm43 = vcmask 7168
    %44 = vst.msk [vmem:[#allocation2] sm:$0xff] %vm43, 0.0
    %46 = vrot.lane.b32.xlu0 %v42, 1
    %v47 = vpop.permute.xlu0 %46
    %vm49 = vcmask 138248
    %50 = vst.msk [vmem:[#allocation2] sm:$0xff] %vm49, %v47
    %vm51 = vcmask 146568
    %52 = vst.msk [vmem:[#allocation2] sm:$0xff] %vm51, 0.0
    %v53 = vld [vmem:[#allocation6] sm:$0xff]
    %v54 = vld [vmem:[#allocation6 + $0x8] sm:$0xff]
    %v55 = vld [vmem:[#allocation2] sm:$0xff]
    %v56 = vld [vmem:[#allocation6 + $0x10] sm:$0xff]
    %v57 = vld [vmem:[#allocation6 + $0x18] sm:$0xff]
    %59 = vrot.lane.b32.xlu0 %v55, 127
    %v60 = vpop.permute.xlu0 %59
    %vm62 = vcmask 64512
    %v64 = vsel %vm62, %v56, 0
    %v67 = vsel %vm62, %v57, 0
    %69 = vmatpush.msra.mxu0 0.0
    %70 = vmatpush.msra.mxu0 0.0
    %71 = vmatpush.msra.mxu0 0.0
    %72 = vmatpush.msra.mxu0 0.0
    %73 = vmatpush.msra.mxu0 0.0
    %74 = vmatpush.msra.mxu0 0.0
    %75 = vmatpush.msra.mxu0 0.0
    %76 = vmatpush.msra.mxu0 0.0
    %77 = vmatpush.msra.mxu0 0.0
    %78 = vmatpush.msra.mxu0 0.0
    %79 = vmatpush.msra.mxu0 0.0
    %80 = vmatpush.msra.mxu0 0.0
    %81 = vmatpush.msra.mxu0 0.0
    %82 = vmatpush.msra.mxu0 0.0
    %83 = vmatpush.msra.mxu0 0.0
    %v84 = vand.u32 %v60, 4294901760
    %85 = vmatpush.msra.mxu0 %v84
    %v86 = vand.u32 %v64, 4294901760
    %v87 = vsub.f32 %v64, %v86
    %v88 = vand.u32 %v87, 4294901760
    %v89 = vsub.f32 %v87, %v88
    %v90 = vand.u32 %v89, 4294901760
    %91 = vmatmul.f32.gmra.mxu0 %v90
    %v92 = vpop.f32.mrf.mxu0
    %v93 = vadd.f32 0.0, %v92
    %v94 = vand.u32 %v67, 4294901760
    %v95 = vsub.f32 %v67, %v94
    %v96 = vand.u32 %v95, 4294901760
    %v97 = vsub.f32 %v95, %v96
    %v98 = vand.u32 %v97, 4294901760
    %99 = vmatmul.f32.gmra.mxu0 %v98
    %v100 = vpop.f32.mrf.mxu0
    %v101 = vadd.f32 0.0, %v100
    %102 = vdwg.mxu0
    %103 = vmatpush.msra.mxu0 0.0
    %104 = vmatpush.msra.mxu0 0.0
    %105 = vmatpush.msra.mxu0 0.0
    %106 = vmatpush.msra.mxu0 0.0
    %107 = vmatpush.msra.mxu0 0.0
    %108 = vmatpush.msra.mxu0 0.0
    %109 = vmatpush.msra.mxu0 0.0
    %110 = vmatpush.msra.mxu0 0.0
    %111 = vmatpush.msra.mxu0 0.0
    %112 = vmatpush.msra.mxu0 0.0
    %113 = vmatpush.msra.mxu0 0.0
    %114 = vmatpush.msra.mxu0 0.0
    %115 = vmatpush.msra.mxu0 0.0
    %116 = vmatpush.msra.mxu0 0.0
    %117 = vmatpush.msra.mxu0 0.0
    %v118 = vand.u32 %v60, 4294901760
    %v119 = vsub.f32 %v60, %v118
    %v120 = vand.u32 %v119, 4294901760
    %v121 = vsub.f32 %v119, %v120
    %v122 = vand.u32 %v121, 4294901760
    %123 = vmatpush.msra.mxu0 %v122
    %v124 = vand.u32 %v64, 4294901760
    %125 = vmatmul.f32.gmra.mxu0 %v124
    %v126 = vpop.f32.mrf.mxu0
    %v127 = vadd.f32 %v93, %v126
    %v128 = vand.u32 %v67, 4294901760
    %129 = vmatmul.f32.gmra.mxu0 %v128
    %v130 = vpop.f32.mrf.mxu0
    %v131 = vadd.f32 %v101, %v130
    %132 = vdwg.mxu0
    %133 = vmatpush.msra.mxu0 0.0
    %134 = vmatpush.msra.mxu0 0.0
    %135 = vmatpush.msra.mxu0 0.0
    %136 = vmatpush.msra.mxu0 0.0
    %137 = vmatpush.msra.mxu0 0.0
    %138 = vmatpush.msra.mxu0 0.0
    %139 = vmatpush.msra.mxu0 0.0
    %140 = vmatpush.msra.mxu0 0.0
    %141 = vmatpush.msra.mxu0 0.0
    %142 = vmatpush.msra.mxu0 0.0
    %143 = vmatpush.msra.mxu0 0.0
    %144 = vmatpush.msra.mxu0 0.0
    %145 = vmatpush.msra.mxu0 0.0
    %146 = vmatpush.msra.mxu0 0.0
    %147 = vmatpush.msra.mxu0 0.0
    %v148 = vand.u32 %v60, 4294901760
    %v149 = vsub.f32 %v60, %v148
    %150 = vmatpush.msra.mxu0 %v149
    %v151 = vand.u32 %v64, 4294901760
    %v152 = vsub.f32 %v64, %v151
    %153 = vmatmul.f32.gmra.mxu0 %v152
    %v154 = vpop.f32.mrf.mxu0
    %v155 = vadd.f32 %v127, %v154
    %v156 = vand.u32 %v67, 4294901760
    %v157 = vsub.f32 %v67, %v156
    %158 = vmatmul.f32.gmra.mxu0 %v157
    %v159 = vpop.f32.mrf.mxu0
    %v160 = vadd.f32 %v131, %v159
    %161 = vdwg.mxu0
    %162 = vmatpush.msra.mxu0 0.0
    %163 = vmatpush.msra.mxu0 0.0
    %164 = vmatpush.msra.mxu0 0.0
    %165 = vmatpush.msra.mxu0 0.0
    %166 = vmatpush.msra.mxu0 0.0
    %167 = vmatpush.msra.mxu0 0.0
    %168 = vmatpush.msra.mxu0 0.0
    %169 = vmatpush.msra.mxu0 0.0
    %170 = vmatpush.msra.mxu0 0.0
    %171 = vmatpush.msra.mxu0 0.0
    %172 = vmatpush.msra.mxu0 0.0
    %173 = vmatpush.msra.mxu0 0.0
    %174 = vmatpush.msra.mxu0 0.0
    %175 = vmatpush.msra.mxu0 0.0
    %176 = vmatpush.msra.mxu0 0.0
    %v177 = vand.u32 %v60, 4294901760
    %178 = vmatpush.msra.mxu0 %v177
    %v179 = vand.u32 %v64, 4294901760
    %v180 = vsub.f32 %v64, %v179
    %v181 = vand.u32 %v180, 4294901760
    %182 = vmatmul.f32.gmra.mxu0 %v181
    %v183 = vpop.f32.mrf.mxu0
    %v184 = vadd.f32 %v155, %v183
    %v185 = vand.u32 %v67, 4294901760
    %v186 = vsub.f32 %v67, %v185
    %v187 = vand.u32 %v186, 4294901760
    %188 = vmatmul.f32.gmra.mxu0 %v187
    %v189 = vpop.f32.mrf.mxu0
    %v190 = vadd.f32 %v160, %v189
    %191 = vdwg.mxu0
    %192 = vmatpush.msra.mxu0 0.0
    %193 = vmatpush.msra.mxu0 0.0
    %194 = vmatpush.msra.mxu0 0.0
    %195 = vmatpush.msra.mxu0 0.0
    %196 = vmatpush.msra.mxu0 0.0
    %197 = vmatpush.msra.mxu0 0.0
    %198 = vmatpush.msra.mxu0 0.0
    %199 = vmatpush.msra.mxu0 0.0
    %200 = vmatpush.msra.mxu0 0.0
    %201 = vmatpush.msra.mxu0 0.0
    %202 = vmatpush.msra.mxu0 0.0
    %203 = vmatpush.msra.mxu0 0.0
    %204 = vmatpush.msra.mxu0 0.0
    %205 = vmatpush.msra.mxu0 0.0
    %206 = vmatpush.msra.mxu0 0.0
    %v207 = vand.u32 %v60, 4294901760
    %v208 = vsub.f32 %v60, %v207
    %v209 = vand.u32 %v208, 4294901760
    %210 = vmatpush.msra.mxu0 %v209
    %v211 = vand.u32 %v64, 4294901760
    %212 = vmatmul.f32.gmra.mxu0 %v211
    %v213 = vpop.f32.mrf.mxu0
    %v214 = vadd.f32 %v184, %v213
    %v215 = vand.u32 %v67, 4294901760
    %216 = vmatmul.f32.gmra.mxu0 %v215
    %v217 = vpop.f32.mrf.mxu0
    %v218 = vadd.f32 %v190, %v217
    %219 = vdwg.mxu0
    %220 = vmatpush.msra.mxu0 0.0
    %221 = vmatpush.msra.mxu0 0.0
    %222 = vmatpush.msra.mxu0 0.0
    %223 = vmatpush.msra.mxu0 0.0
    %224 = vmatpush.msra.mxu0 0.0
    %225 = vmatpush.msra.mxu0 0.0
    %226 = vmatpush.msra.mxu0 0.0
    %227 = vmatpush.msra.mxu0 0.0
    %228 = vmatpush.msra.mxu0 0.0
    %229 = vmatpush.msra.mxu0 0.0
    %230 = vmatpush.msra.mxu0 0.0
    %231 = vmatpush.msra.mxu0 0.0
    %232 = vmatpush.msra.mxu0 0.0
    %233 = vmatpush.msra.mxu0 0.0
    %234 = vmatpush.msra.mxu0 0.0
    %v235 = vand.u32 %v60, 4294901760
    %236 = vmatpush.msra.mxu0 %v235
    %v237 = vand.u32 %v64, 4294901760
    %238 = vmatmul.f32.gmra.mxu0 %v237
    %v239 = vpop.f32.mrf.mxu0
    %v240 = vadd.f32 %v214, %v239
    %v241 = vand.u32 %v67, 4294901760
    %242 = vmatmul.f32.gmra.mxu0 %v241
    %v243 = vpop.f32.mrf.mxu0
    %v244 = vadd.f32 %v218, %v243
    %245 = vdwg.mxu0
    %v247 = vsel %vm62, %v53, 0
    %v250 = vsel %vm62, %v54, 0
    %252 = vmatpush.msra.mxu0 0.0
    %253 = vmatpush.msra.mxu0 0.0
    %254 = vmatpush.msra.mxu0 0.0
    %255 = vmatpush.msra.mxu0 0.0
    %256 = vmatpush.msra.mxu0 0.0
    %257 = vmatpush.msra.mxu0 0.0
    %258 = vmatpush.msra.mxu0 0.0
    %259 = vmatpush.msra.mxu0 0.0
    %260 = vmatpush.msra.mxu0 0.0
    %261 = vmatpush.msra.mxu0 0.0
    %262 = vmatpush.msra.mxu0 0.0
    %263 = vmatpush.msra.mxu0 0.0
    %264 = vmatpush.msra.mxu0 0.0
    %265 = vmatpush.msra.mxu0 0.0
    %266 = vmatpush.msra.mxu0 0.0
    %v267 = vand.u32 %v55, 4294901760
    %268 = vmatpush.msra.mxu0 %v267
    %v269 = vand.u32 %v247, 4294901760
    %v270 = vsub.f32 %v247, %v269
    %v271 = vand.u32 %v270, 4294901760
    %v272 = vsub.f32 %v270, %v271
    %v273 = vand.u32 %v272, 4294901760
    %274 = vmatmul.f32.gmra.mxu0 %v273
    %v275 = vpop.f32.mrf.mxu0
    %v276 = vadd.f32 %v240, %v275
    %v277 = vand.u32 %v250, 4294901760
    %v278 = vsub.f32 %v250, %v277
    %v279 = vand.u32 %v278, 4294901760
    %v280 = vsub.f32 %v278, %v279
    %v281 = vand.u32 %v280, 4294901760
    %282 = vmatmul.f32.gmra.mxu0 %v281
    %v283 = vpop.f32.mrf.mxu0
    %v284 = vadd.f32 %v244, %v283
    %285 = vdwg.mxu0
    %286 = vmatpush.msra.mxu0 0.0
    %287 = vmatpush.msra.mxu0 0.0
    %288 = vmatpush.msra.mxu0 0.0
    %289 = vmatpush.msra.mxu0 0.0
    %290 = vmatpush.msra.mxu0 0.0
    %291 = vmatpush.msra.mxu0 0.0
    %292 = vmatpush.msra.mxu0 0.0
    %293 = vmatpush.msra.mxu0 0.0
    %294 = vmatpush.msra.mxu0 0.0
    %295 = vmatpush.msra.mxu0 0.0
    %296 = vmatpush.msra.mxu0 0.0
    %297 = vmatpush.msra.mxu0 0.0
    %298 = vmatpush.msra.mxu0 0.0
    %299 = vmatpush.msra.mxu0 0.0
    %300 = vmatpush.msra.mxu0 0.0
    %v301 = vand.u32 %v55, 4294901760
    %v302 = vsub.f32 %v55, %v301
    %v303 = vand.u32 %v302, 4294901760
    %v304 = vsub.f32 %v302, %v303
    %v305 = vand.u32 %v304, 4294901760
    %306 = vmatpush.msra.mxu0 %v305
    %v307 = vand.u32 %v247, 4294901760
    %308 = vmatmul.f32.gmra.mxu0 %v307
    %v309 = vpop.f32.mrf.mxu0
    %v310 = vadd.f32 %v276, %v309
    %v311 = vand.u32 %v250, 4294901760
    %312 = vmatmul.f32.gmra.mxu0 %v311
    %v313 = vpop.f32.mrf.mxu0
    %v314 = vadd.f32 %v284, %v313
    %315 = vdwg.mxu0
    %316 = vmatpush.msra.mxu0 0.0
    %317 = vmatpush.msra.mxu0 0.0
    %318 = vmatpush.msra.mxu0 0.0
    %319 = vmatpush.msra.mxu0 0.0
    %320 = vmatpush.msra.mxu0 0.0
    %321 = vmatpush.msra.mxu0 0.0
    %322 = vmatpush.msra.mxu0 0.0
    %323 = vmatpush.msra.mxu0 0.0
    %324 = vmatpush.msra.mxu0 0.0
    %325 = vmatpush.msra.mxu0 0.0
    %326 = vmatpush.msra.mxu0 0.0
    %327 = vmatpush.msra.mxu0 0.0
    %328 = vmatpush.msra.mxu0 0.0
    %329 = vmatpush.msra.mxu0 0.0
    %330 = vmatpush.msra.mxu0 0.0
    %v331 = vand.u32 %v55, 4294901760
    %v332 = vsub.f32 %v55, %v331
    %333 = vmatpush.msra.mxu0 %v332
    %v334 = vand.u32 %v247, 4294901760
    %v335 = vsub.f32 %v247, %v334
    %336 = vmatmul.f32.gmra.mxu0 %v335
    %v337 = vpop.f32.mrf.mxu0
    %v338 = vadd.f32 %v310, %v337
    %v339 = vand.u32 %v250, 4294901760
    %v340 = vsub.f32 %v250, %v339
    %341 = vmatmul.f32.gmra.mxu0 %v340
    %v342 = vpop.f32.mrf.mxu0
    %v343 = vadd.f32 %v314, %v342
    %344 = vdwg.mxu0
    %345 = vmatpush.msra.mxu0 0.0
    %346 = vmatpush.msra.mxu0 0.0
    %347 = vmatpush.msra.mxu0 0.0
    %348 = vmatpush.msra.mxu0 0.0
    %349 = vmatpush.msra.mxu0 0.0
    %350 = vmatpush.msra.mxu0 0.0
    %351 = vmatpush.msra.mxu0 0.0
    %352 = vmatpush.msra.mxu0 0.0
    %353 = vmatpush.msra.mxu0 0.0
    %354 = vmatpush.msra.mxu0 0.0
    %355 = vmatpush.msra.mxu0 0.0
    %356 = vmatpush.msra.mxu0 0.0
    %357 = vmatpush.msra.mxu0 0.0
    %358 = vmatpush.msra.mxu0 0.0
    %359 = vmatpush.msra.mxu0 0.0
    %v360 = vand.u32 %v55, 4294901760
    %361 = vmatpush.msra.mxu0 %v360
    %v362 = vand.u32 %v247, 4294901760
    %v363 = vsub.f32 %v247, %v362
    %v364 = vand.u32 %v363, 4294901760
    %365 = vmatmul.f32.gmra.mxu0 %v364
    %v366 = vpop.f32.mrf.mxu0
    %v367 = vadd.f32 %v338, %v366
    %v368 = vand.u32 %v250, 4294901760
    %v369 = vsub.f32 %v250, %v368
    %v370 = vand.u32 %v369, 4294901760
    %371 = vmatmul.f32.gmra.mxu0 %v370
    %v372 = vpop.f32.mrf.mxu0
    %v373 = vadd.f32 %v343, %v372
    %374 = vdwg.mxu0
    %375 = vmatpush.msra.mxu0 0.0
    %376 = vmatpush.msra.mxu0 0.0
    %377 = vmatpush.msra.mxu0 0.0
    %378 = vmatpush.msra.mxu0 0.0
    %379 = vmatpush.msra.mxu0 0.0
    %380 = vmatpush.msra.mxu0 0.0
    %381 = vmatpush.msra.mxu0 0.0
    %382 = vmatpush.msra.mxu0 0.0
    %383 = vmatpush.msra.mxu0 0.0
    %384 = vmatpush.msra.mxu0 0.0
    %385 = vmatpush.msra.mxu0 0.0
    %386 = vmatpush.msra.mxu0 0.0
    %387 = vmatpush.msra.mxu0 0.0
    %388 = vmatpush.msra.mxu0 0.0
    %389 = vmatpush.msra.mxu0 0.0
    %v390 = vand.u32 %v55, 4294901760
    %v391 = vsub.f32 %v55, %v390
    %v392 = vand.u32 %v391, 4294901760
    %393 = vmatpush.msra.mxu0 %v392
    %v394 = vand.u32 %v247, 4294901760
    %395 = vmatmul.f32.gmra.mxu0 %v394
    %v396 = vpop.f32.mrf.mxu0
    %v397 = vadd.f32 %v367, %v396
    %v398 = vand.u32 %v250, 4294901760
    %399 = vmatmul.f32.gmra.mxu0 %v398
    %v400 = vpop.f32.mrf.mxu0
    %v401 = vadd.f32 %v373, %v400
    %402 = vdwg.mxu0
    %403 = vmatpush.msra.mxu0 0.0
    %404 = vmatpush.msra.mxu0 0.0
    %405 = vmatpush.msra.mxu0 0.0
    %406 = vmatpush.msra.mxu0 0.0
    %407 = vmatpush.msra.mxu0 0.0
    %408 = vmatpush.msra.mxu0 0.0
    %409 = vmatpush.msra.mxu0 0.0
    %410 = vmatpush.msra.mxu0 0.0
    %411 = vmatpush.msra.mxu0 0.0
    %412 = vmatpush.msra.mxu0 0.0
    %413 = vmatpush.msra.mxu0 0.0
    %414 = vmatpush.msra.mxu0 0.0
    %415 = vmatpush.msra.mxu0 0.0
    %416 = vmatpush.msra.mxu0 0.0
    %417 = vmatpush.msra.mxu0 0.0
    %v418 = vand.u32 %v55, 4294901760
    %419 = vmatpush.msra.mxu0 %v418
    %v420 = vand.u32 %v247, 4294901760
    %421 = vmatmul.f32.gmra.mxu0 %v420
    %v422 = vpop.f32.mrf.mxu0
    %v423 = vadd.f32 %v397, %v422
    %v424 = vand.u32 %v250, 4294901760
    %425 = vmatmul.f32.gmra.mxu0 %v424
    %v426 = vpop.f32.mrf.mxu0
    %v427 = vadd.f32 %v401, %v426
    %428 = vdwg.mxu0
    %v429 = vld [vmem:[#allocation6 + $0x20] sm:$0xff]
    %v430 = vld [vmem:[#allocation6 + $0x28] sm:$0xff]
    %431 = vrot.lane.b32.xlu0 %v55, 126
    %v432 = vpop.permute.xlu0 %431
    %v435 = vsel %vm62, %v429, 0
    %v438 = vsel %vm62, %v430, 0
    %440 = vmatpush.msra.mxu0 0.0
    %441 = vmatpush.msra.mxu0 0.0
    %442 = vmatpush.msra.mxu0 0.0
    %443 = vmatpush.msra.mxu0 0.0
    %444 = vmatpush.msra.mxu0 0.0
    %445 = vmatpush.msra.mxu0 0.0
    %446 = vmatpush.msra.mxu0 0.0
    %447 = vmatpush.msra.mxu0 0.0
    %448 = vmatpush.msra.mxu0 0.0
    %449 = vmatpush.msra.mxu0 0.0
    %450 = vmatpush.msra.mxu0 0.0
    %451 = vmatpush.msra.mxu0 0.0
    %452 = vmatpush.msra.mxu0 0.0
    %453 = vmatpush.msra.mxu0 0.0
    %454 = vmatpush.msra.mxu0 0.0
    %v455 = vand.u32 %v432, 4294901760
    %456 = vmatpush.msra.mxu0 %v455
    %v457 = vand.u32 %v435, 4294901760
    %v458 = vsub.f32 %v435, %v457
    %v459 = vand.u32 %v458, 4294901760
    %v460 = vsub.f32 %v458, %v459
    %v461 = vand.u32 %v460, 4294901760
    %462 = vmatmul.f32.gmra.mxu0 %v461
    %v463 = vpop.f32.mrf.mxu0
    %v464 = vadd.f32 0.0, %v463
    %v465 = vand.u32 %v438, 4294901760
    %v466 = vsub.f32 %v438, %v465
    %v467 = vand.u32 %v466, 4294901760
    %v468 = vsub.f32 %v466, %v467
    %v469 = vand.u32 %v468, 4294901760
    %470 = vmatmul.f32.gmra.mxu0 %v469
    %v471 = vpop.f32.mrf.mxu0
    %v472 = vadd.f32 0.0, %v471
    %473 = vdwg.mxu0
    %474 = vmatpush.msra.mxu0 0.0
    %475 = vmatpush.msra.mxu0 0.0
    %476 = vmatpush.msra.mxu0 0.0
    %477 = vmatpush.msra.mxu0 0.0
    %478 = vmatpush.msra.mxu0 0.0
    %479 = vmatpush.msra.mxu0 0.0
    %480 = vmatpush.msra.mxu0 0.0
    %481 = vmatpush.msra.mxu0 0.0
    %482 = vmatpush.msra.mxu0 0.0
    %483 = vmatpush.msra.mxu0 0.0
    %484 = vmatpush.msra.mxu0 0.0
    %485 = vmatpush.msra.mxu0 0.0
    %486 = vmatpush.msra.mxu0 0.0
    %487 = vmatpush.msra.mxu0 0.0
    %488 = vmatpush.msra.mxu0 0.0
    %v489 = vand.u32 %v432, 4294901760
    %v490 = vsub.f32 %v432, %v489
    %v491 = vand.u32 %v490, 4294901760
    %v492 = vsub.f32 %v490, %v491
    %v493 = vand.u32 %v492, 4294901760
    %494 = vmatpush.msra.mxu0 %v493
    %v495 = vand.u32 %v435, 4294901760
    %496 = vmatmul.f32.gmra.mxu0 %v495
    %v497 = vpop.f32.mrf.mxu0
    %v498 = vadd.f32 %v464, %v497
    %v499 = vand.u32 %v438, 4294901760
    %500 = vmatmul.f32.gmra.mxu0 %v499
    %v501 = vpop.f32.mrf.mxu0
    %v502 = vadd.f32 %v472, %v501
    %503 = vdwg.mxu0
    %504 = vmatpush.msra.mxu0 0.0
    %505 = vmatpush.msra.mxu0 0.0
    %506 = vmatpush.msra.mxu0 0.0
    %507 = vmatpush.msra.mxu0 0.0
    %508 = vmatpush.msra.mxu0 0.0
    %509 = vmatpush.msra.mxu0 0.0
    %510 = vmatpush.msra.mxu0 0.0
    %511 = vmatpush.msra.mxu0 0.0
    %512 = vmatpush.msra.mxu0 0.0
    %513 = vmatpush.msra.mxu0 0.0
    %514 = vmatpush.msra.mxu0 0.0
    %515 = vmatpush.msra.mxu0 0.0
    %516 = vmatpush.msra.mxu0 0.0
    %517 = vmatpush.msra.mxu0 0.0
    %518 = vmatpush.msra.mxu0 0.0
    %v519 = vand.u32 %v432, 4294901760
    %v520 = vsub.f32 %v432, %v519
    %521 = vmatpush.msra.mxu0 %v520
    %v522 = vand.u32 %v435, 4294901760
    %v523 = vsub.f32 %v435, %v522
    %524 = vmatmul.f32.gmra.mxu0 %v523
    %v525 = vpop.f32.mrf.mxu0
    %v526 = vadd.f32 %v498, %v525
    %v527 = vand.u32 %v438, 4294901760
    %v528 = vsub.f32 %v438, %v527
    %529 = vmatmul.f32.gmra.mxu0 %v528
    %v530 = vpop.f32.mrf.mxu0
    %v531 = vadd.f32 %v502, %v530
    %532 = vdwg.mxu0
    %533 = vmatpush.msra.mxu0 0.0
    %534 = vmatpush.msra.mxu0 0.0
    %535 = vmatpush.msra.mxu0 0.0
    %536 = vmatpush.msra.mxu0 0.0
    %537 = vmatpush.msra.mxu0 0.0
    %538 = vmatpush.msra.mxu0 0.0
    %539 = vmatpush.msra.mxu0 0.0
    %540 = vmatpush.msra.mxu0 0.0
    %541 = vmatpush.msra.mxu0 0.0
    %542 = vmatpush.msra.mxu0 0.0
    %543 = vmatpush.msra.mxu0 0.0
    %544 = vmatpush.msra.mxu0 0.0
    %545 = vmatpush.msra.mxu0 0.0
    %546 = vmatpush.msra.mxu0 0.0
    %547 = vmatpush.msra.mxu0 0.0
    %v548 = vand.u32 %v432, 4294901760
    %549 = vmatpush.msra.mxu0 %v548
    %v550 = vand.u32 %v435, 4294901760
    %v551 = vsub.f32 %v435, %v550
    %v552 = vand.u32 %v551, 4294901760
    %553 = vmatmul.f32.gmra.mxu0 %v552
    %v554 = vpop.f32.mrf.mxu0
    %v555 = vadd.f32 %v526, %v554
    %v556 = vand.u32 %v438, 4294901760
    %v557 = vsub.f32 %v438, %v556
    %v558 = vand.u32 %v557, 4294901760
    %559 = vmatmul.f32.gmra.mxu0 %v558
    %v560 = vpop.f32.mrf.mxu0
    %v561 = vadd.f32 %v531, %v560
    %562 = vdwg.mxu0
    %563 = vmatpush.msra.mxu0 0.0
    %564 = vmatpush.msra.mxu0 0.0
    %565 = vmatpush.msra.mxu0 0.0
    %566 = vmatpush.msra.mxu0 0.0
    %567 = vmatpush.msra.mxu0 0.0
    %568 = vmatpush.msra.mxu0 0.0
    %569 = vmatpush.msra.mxu0 0.0
    %570 = vmatpush.msra.mxu0 0.0
    %571 = vmatpush.msra.mxu0 0.0
    %572 = vmatpush.msra.mxu0 0.0
    %573 = vmatpush.msra.mxu0 0.0
    %574 = vmatpush.msra.mxu0 0.0
    %575 = vmatpush.msra.mxu0 0.0
    %576 = vmatpush.msra.mxu0 0.0
    %577 = vmatpush.msra.mxu0 0.0
    %v578 = vand.u32 %v432, 4294901760
    %v579 = vsub.f32 %v432, %v578
    %v580 = vand.u32 %v579, 4294901760
    %581 = vmatpush.msra.mxu0 %v580
    %v582 = vand.u32 %v435, 4294901760
    %583 = vmatmul.f32.gmra.mxu0 %v582
    %v584 = vpop.f32.mrf.mxu0
    %v585 = vadd.f32 %v555, %v584
    %v586 = vand.u32 %v438, 4294901760
    %587 = vmatmul.f32.gmra.mxu0 %v586
    %v588 = vpop.f32.mrf.mxu0
    %v589 = vadd.f32 %v561, %v588
    %590 = vdwg.mxu0
    %591 = vmatpush.msra.mxu0 0.0
    %592 = vmatpush.msra.mxu0 0.0
    %593 = vmatpush.msra.mxu0 0.0
    %594 = vmatpush.msra.mxu0 0.0
    %595 = vmatpush.msra.mxu0 0.0
    %596 = vmatpush.msra.mxu0 0.0
    %597 = vmatpush.msra.mxu0 0.0
    %598 = vmatpush.msra.mxu0 0.0
    %599 = vmatpush.msra.mxu0 0.0
    %600 = vmatpush.msra.mxu0 0.0
    %601 = vmatpush.msra.mxu0 0.0
    %602 = vmatpush.msra.mxu0 0.0
    %603 = vmatpush.msra.mxu0 0.0
    %604 = vmatpush.msra.mxu0 0.0
    %605 = vmatpush.msra.mxu0 0.0
    %v606 = vand.u32 %v432, 4294901760
    %607 = vmatpush.msra.mxu0 %v606
    %v608 = vand.u32 %v435, 4294901760
    %609 = vmatmul.f32.gmra.mxu0 %v608
    %v610 = vpop.f32.mrf.mxu0
    %v611 = vadd.f32 %v585, %v610
    %v612 = vand.u32 %v438, 4294901760
    %613 = vmatmul.f32.gmra.mxu0 %v612
    %v614 = vpop.f32.mrf.mxu0
    %v615 = vadd.f32 %v589, %v614
    %616 = vdwg.mxu0
    %v617 = vadd.f32 %v423, %v611
    %v618 = vadd.f32 %v427, %v615
    %v619 = vld [vmem:[#allocation6 + $0x30] sm:$0xff]
    %v620 = vld [vmem:[#allocation6 + $0x38] sm:$0xff]
    %622 = vset.pattern.permute.xlu0 0
    %623 = vperm.xlu0 %622, %v619
    %v624 = vpop.permute.xlu0 %623
    %627 = vset.pattern.permute.xlu0 0
    %628 = vperm.xlu0 %627, %v620
    %v629 = vpop.permute.xlu0 %628
    %v631 = vadd.f32 %v617, %v624
    %v632 = vadd.f32 %v618, %v629
    %vm633 = vcmask 130048
    %v634 = vsel %vm633, %v631, 0.0
    %635 = vadd.xlane.f32.xlu0 %v634
    %v636 = vpop.xlane.xlu0 %635
    %v637 = vsel %vm633, %v632, 0.0
    %638 = vadd.xlane.f32.xlu0 %v637
    %v639 = vpop.xlane.xlu0 %638
    %v640 = vrcp.pop 16.0
    %v641 = vmul.f32 16.0, %v640
    %v642 = vsub.f32 1.0, %v641
    %v643 = vmul.f32 %v640, %v642
    %v644 = vadd.f32 %v640, %v643
    %vm645 = vweird.f32 %v640
    %v646 = vsel %vm645, %v640, %v644
    %v647 = vmul.f32 %v636, %v646
    %v648 = vmul.f32 %v639, %v646
    %v649 = vsub.f32 %v631, %v647
    %v650 = vsub.f32 %v632, %v648
    %v651 = vmul.f32 %v649, %v649
    %v652 = vmul.f32 %v650, %v650
    %v653 = vsel %vm633, %v651, 0.0
    %654 = vadd.xlane.f32.xlu0 %v653
    %v655 = vpop.xlane.xlu0 %654
    %v656 = vsel %vm633, %v652, 0.0
    %657 = vadd.xlane.f32.xlu0 %v656
    %v658 = vpop.xlane.xlu0 %657
    %v659 = vmul.f32 %v655, %v646
    %v660 = vmul.f32 %v658, %v646
    %v661 = vadd.f32 %v659, 1e-05
    %v662 = vadd.f32 %v660, 1e-05
    %v663 = vrsqrt.pop %v661
    %v664 = vmul.f32 %v663, %v661
    %v665 = vmul.f32 %v664, %v663
    %v666 = vmul.f32 0.5, %v665
    %v667 = vsub.f32 1.5, %v666
    %v668 = vmul.f32 %v663, %v667
    %vm669 = vweird.f32 %v661
    %vm670 = vweird.f32 %v663
    %vm671 = vmor %vm669, %vm670
    %v672 = vsel %vm671, %v663, %v668
    %v673 = vrsqrt.pop %v662
    %v674 = vmul.f32 %v673, %v662
    %v675 = vmul.f32 %v674, %v673
    %v676 = vmul.f32 0.5, %v675
    %v677 = vsub.f32 1.5, %v676
    %v678 = vmul.f32 %v673, %v677
    %vm679 = vweird.f32 %v662
    %vm680 = vweird.f32 %v673
    %vm681 = vmor %vm679, %vm680
    %v682 = vsel %vm681, %v673, %v678
    %v683 = vmul.f32 %v649, %v672
    %v684 = vmul.f32 %v650, %v682
    %v685 = vld [vmem:[#allocation6 + $0x40] sm:$0x1]
    %v686 = vperm.slane %v685, 0
    %v687 = vmul.f32 %v683, %v686
    %v688 = vmul.f32 %v684, %v686
    %v689 = vld [vmem:[#allocation6 + $0x48] sm:$0x1]
    %v690 = vperm.slane %v689, 0
    %v691 = vadd.f32 %v687, %v690
    %v692 = vadd.f32 %v688, %v690
    %v693 = vmul.f32 %v691, 0.5
    %v694 = vmul.f32 %v692, 0.5
    %v695 = vmul.f32 %v691, 0.70710677
    %v696 = vmul.f32 %v692, 0.70710677
    %vm697 = vcmp.lt.f32.partialorder %v695, 0.0
    %vm698 = vcmp.lt.f32.partialorder %v696, 0.0
    %v699 = vsel %vm697, -1.0, 1.0
    %v700 = vsel %vm698, -1.0, 1.0
    %v701 = vand.u32 2147483647, %v695
    %v702 = vand.u32 2147483647, %v696
    %v703 = vmul.f32 %v701, 0.3275911
    %v704 = vmul.f32 %v702, 0.3275911
    %v705 = vadd.f32 %v703, 1.0
    %v706 = vadd.f32 %v704, 1.0
    %v707 = vrcp.pop %v705
    %v708 = vmul.f32 %v705, %v707
    %v709 = vsub.f32 1.0, %v708
    %v710 = vmul.f32 %v707, %v709
    %v711 = vadd.f32 %v707, %v710
    %vm712 = vweird.f32 %v705
    %vm713 = vweird.f32 %v707
    %vm714 = vmor %vm712, %vm713
    %v715 = vsel %vm714, %v707, %v711
    %v716 = vand.u32 2147483647, %v705
    %vm717 = vcmp.eq.f32.partialorder %v716, 8.507059e+37
    %v718 = vand.u32 %v705, 2147483648
    %v719 = vor.u32 1.1754944e-38, %v718
    %v720 = vsel %vm717, %v719, %v715
    %v721 = vmul.f32 1.0, %v720
    %v722 = vrcp.pop %v706
    %v723 = vmul.f32 %v706, %v722
    %v724 = vsub.f32 1.0, %v723
    %v725 = vmul.f32 %v722, %v724
    %v726 = vadd.f32 %v722, %v725
    %vm727 = vweird.f32 %v706
    %vm728 = vweird.f32 %v722
    %vm729 = vmor %vm727, %vm728
    %v730 = vsel %vm729, %v722, %v726
    %v731 = vand.u32 2147483647, %v706
    %vm732 = vcmp.eq.f32.partialorder %v731, 8.507059e+37
    %v733 = vand.u32 %v706, 2147483648
    %v734 = vor.u32 1.1754944e-38, %v733
    %v735 = vsel %vm732, %v734, %v730
    %v736 = vmul.f32 1.0, %v735
    %v737 = vmul.f32 %v721, 1.0614054
    %v738 = vmul.f32 %v736, 1.0614054
    %v739 = vadd.f32 %v737, -1.4531521
    %v740 = vadd.f32 %v738, -1.4531521
    %v741 = vmul.f32 %v721, %v739
    %v742 = vmul.f32 %v736, %v740
    %v743 = vadd.f32 %v741, 1.4214138
    %v744 = vadd.f32 %v742, 1.4214138
    %v745 = vmul.f32 %v721, %v743
    %v746 = vmul.f32 %v736, %v744
    %v747 = vadd.f32 %v745, -0.28449672
    %v748 = vadd.f32 %v746, -0.28449672
    %v749 = vmul.f32 %v721, %v747
    %v750 = vmul.f32 %v736, %v748
    %v751 = vadd.f32 %v749, 0.2548296
    %v752 = vadd.f32 %v750, 0.2548296
    %v753 = vmul.f32 %v721, %v751
    %v754 = vmul.f32 %v736, %v752
    %v755 = vsub.f32 0.0, %v701
    %v756 = vsub.f32 0.0, %v702
    %v757 = vmul.f32 %v755, %v701
    %v758 = vmul.f32 %v756, %v702
    %v759 = vmul.f32 %v757, 1.442695
    %v760 = vpow.pop %v759
    %v761 = vmul.f32 %v758, 1.442695
    %v762 = vpow.pop %v761
    %v763 = vmul.f32 %v753, %v760
    %v764 = vmul.f32 %v754, %v762
    %v765 = vsub.f32 1.0, %v763
    %v766 = vsub.f32 1.0, %v764
    %v767 = vmul.f32 %v699, %v765
    %v768 = vmul.f32 %v700, %v766
    %v769 = vadd.f32 %v767, 1.0
    %v770 = vadd.f32 %v768, 1.0
    %v771 = vmul.f32 %v693, %v769
    %v772 = vmul.f32 %v694, %v770
    %v773 = vld [vmem:[#allocation6 + $0x50] sm:$0xff]
    %v774 = vld [vmem:[#allocation6 + $0x58] sm:$0xff]
    %v776 = vsel %vm62, %v773, 0
    %v779 = vsel %vm62, %v774, 0
    %781 = vmatpush.msra.mxu0 0.0
    %782 = vmatpush.msra.mxu0 0.0
    %783 = vmatpush.msra.mxu0 0.0
    %784 = vmatpush.msra.mxu0 0.0
    %785 = vmatpush.msra.mxu0 0.0
    %786 = vmatpush.msra.mxu0 0.0
    %787 = vmatpush.msra.mxu0 0.0
    %788 = vmatpush.msra.mxu0 0.0
    %789 = vmatpush.msra.mxu0 0.0
    %790 = vmatpush.msra.mxu0 0.0
    %791 = vmatpush.msra.mxu0 0.0
    %792 = vmatpush.msra.mxu0 0.0
    %793 = vmatpush.msra.mxu0 0.0
    %794 = vmatpush.msra.mxu0 0.0
    %795 = vmatpush.msra.mxu0 0.0
    %v796 = vand.u32 %v42, 4294901760
    %797 = vmatpush.msra.mxu0 %v796
    %v798 = vand.u32 %v776, 4294901760
    %v799 = vsub.f32 %v776, %v798
    %v800 = vand.u32 %v799, 4294901760
    %v801 = vsub.f32 %v799, %v800
    %v802 = vand.u32 %v801, 4294901760
    %803 = vmatmul.f32.gmra.mxu0 %v802
    %v804 = vpop.f32.mrf.mxu0
    %v805 = vadd.f32 0.0, %v804
    %v806 = vand.u32 %v779, 4294901760
    %v807 = vsub.f32 %v779, %v806
    %v808 = vand.u32 %v807, 4294901760
    %v809 = vsub.f32 %v807, %v808
    %v810 = vand.u32 %v809, 4294901760
    %811 = vmatmul.f32.gmra.mxu0 %v810
    %v812 = vpop.f32.mrf.mxu0
    %v813 = vadd.f32 0.0, %v812
    %814 = vdwg.mxu0
    %815 = vmatpush.msra.mxu0 0.0
    %816 = vmatpush.msra.mxu0 0.0
    %817 = vmatpush.msra.mxu0 0.0
    %818 = vmatpush.msra.mxu0 0.0
    %819 = vmatpush.msra.mxu0 0.0
    %820 = vmatpush.msra.mxu0 0.0
    %821 = vmatpush.msra.mxu0 0.0
    %822 = vmatpush.msra.mxu0 0.0
    %823 = vmatpush.msra.mxu0 0.0
    %824 = vmatpush.msra.mxu0 0.0
    %825 = vmatpush.msra.mxu0 0.0
    %826 = vmatpush.msra.mxu0 0.0
    %827 = vmatpush.msra.mxu0 0.0
    %828 = vmatpush.msra.mxu0 0.0
    %829 = vmatpush.msra.mxu0 0.0
    %v830 = vand.u32 %v42, 4294901760
    %v831 = vsub.f32 %v42, %v830
    %v832 = vand.u32 %v831, 4294901760
    %v833 = vsub.f32 %v831, %v832
    %v834 = vand.u32 %v833, 4294901760
    %835 = vmatpush.msra.mxu0 %v834
    %v836 = vand.u32 %v776, 4294901760
    %837 = vmatmul.f32.gmra.mxu0 %v836
    %v838 = vpop.f32.mrf.mxu0
    %v839 = vadd.f32 %v805, %v838
    %v840 = vand.u32 %v779, 4294901760
    %841 = vmatmul.f32.gmra.mxu0 %v840
    %v842 = vpop.f32.mrf.mxu0
    %v843 = vadd.f32 %v813, %v842
    %844 = vdwg.mxu0
    %845 = vmatpush.msra.mxu0 0.0
    %846 = vmatpush.msra.mxu0 0.0
    %847 = vmatpush.msra.mxu0 0.0
    %848 = vmatpush.msra.mxu0 0.0
    %849 = vmatpush.msra.mxu0 0.0
    %850 = vmatpush.msra.mxu0 0.0
    %851 = vmatpush.msra.mxu0 0.0
    %852 = vmatpush.msra.mxu0 0.0
    %853 = vmatpush.msra.mxu0 0.0
    %854 = vmatpush.msra.mxu0 0.0
    %855 = vmatpush.msra.mxu0 0.0
    %856 = vmatpush.msra.mxu0 0.0
    %857 = vmatpush.msra.mxu0 0.0
    %858 = vmatpush.msra.mxu0 0.0
    %859 = vmatpush.msra.mxu0 0.0
    %v860 = vand.u32 %v42, 4294901760
    %v861 = vsub.f32 %v42, %v860
    %862 = vmatpush.msra.mxu0 %v861
    %v863 = vand.u32 %v776, 4294901760
    %v864 = vsub.f32 %v776, %v863
    %865 = vmatmul.f32.gmra.mxu0 %v864
    %v866 = vpop.f32.mrf.mxu0
    %v867 = vadd.f32 %v839, %v866
    %v868 = vand.u32 %v779, 4294901760
    %v869 = vsub.f32 %v779, %v868
    %870 = vmatmul.f32.gmra.mxu0 %v869
    %v871 = vpop.f32.mrf.mxu0
    %v872 = vadd.f32 %v843, %v871
    %873 = vdwg.mxu0
    %874 = vmatpush.msra.mxu0 0.0
    %875 = vmatpush.msra.mxu0 0.0
    %876 = vmatpush.msra.mxu0 0.0
    %877 = vmatpush.msra.mxu0 0.0
    %878 = vmatpush.msra.mxu0 0.0
    %879 = vmatpush.msra.mxu0 0.0
    %880 = vmatpush.msra.mxu0 0.0
    %881 = vmatpush.msra.mxu0 0.0
    %882 = vmatpush.msra.mxu0 0.0
    %883 = vmatpush.msra.mxu0 0.0
    %884 = vmatpush.msra.mxu0 0.0
    %885 = vmatpush.msra.mxu0 0.0
    %886 = vmatpush.msra.mxu0 0.0
    %887 = vmatpush.msra.mxu0 0.0
    %888 = vmatpush.msra.mxu0 0.0
    %v889 = vand.u32 %v42, 4294901760
    %890 = vmatpush.msra.mxu0 %v889
    %v891 = vand.u32 %v776, 4294901760
    %v892 = vsub.f32 %v776, %v891
    %v893 = vand.u32 %v892, 4294901760
    %894 = vmatmul.f32.gmra.mxu0 %v893
    %v895 = vpop.f32.mrf.mxu0
    %v896 = vadd.f32 %v867, %v895
    %v897 = vand.u32 %v779, 4294901760
    %v898 = vsub.f32 %v779, %v897
    %v899 = vand.u32 %v898, 4294901760
    %900 = vmatmul.f32.gmra.mxu0 %v899
    %v901 = vpop.f32.mrf.mxu0
    %v902 = vadd.f32 %v872, %v901
    %903 = vdwg.mxu0
    %904 = vmatpush.msra.mxu0 0.0
    %905 = vmatpush.msra.mxu0 0.0
    %906 = vmatpush.msra.mxu0 0.0
    %907 = vmatpush.msra.mxu0 0.0
    %908 = vmatpush.msra.mxu0 0.0
    %909 = vmatpush.msra.mxu0 0.0
    %910 = vmatpush.msra.mxu0 0.0
    %911 = vmatpush.msra.mxu0 0.0
    %912 = vmatpush.msra.mxu0 0.0
    %913 = vmatpush.msra.mxu0 0.0
    %914 = vmatpush.msra.mxu0 0.0
    %915 = vmatpush.msra.mxu0 0.0
    %916 = vmatpush.msra.mxu0 0.0
    %917 = vmatpush.msra.mxu0 0.0
    %918 = vmatpush.msra.mxu0 0.0
    %v919 = vand.u32 %v42, 4294901760
    %v920 = vsub.f32 %v42, %v919
    %v921 = vand.u32 %v920, 4294901760
    %922 = vmatpush.msra.mxu0 %v921
    %v923 = vand.u32 %v776, 4294901760
    %924 = vmatmul.f32.gmra.mxu0 %v923
    %v925 = vpop.f32.mrf.mxu0
    %v926 = vadd.f32 %v896, %v925
    %v927 = vand.u32 %v779, 4294901760
    %928 = vmatmul.f32.gmra.mxu0 %v927
    %v929 = vpop.f32.mrf.mxu0
    %v930 = vadd.f32 %v902, %v929
    %931 = vdwg.mxu0
    %932 = vmatpush.msra.mxu0 0.0
    %933 = vmatpush.msra.mxu0 0.0
    %934 = vmatpush.msra.mxu0 0.0
    %935 = vmatpush.msra.mxu0 0.0
    %936 = vmatpush.msra.mxu0 0.0
    %937 = vmatpush.msra.mxu0 0.0
    %938 = vmatpush.msra.mxu0 0.0
    %939 = vmatpush.msra.mxu0 0.0
    %940 = vmatpush.msra.mxu0 0.0
    %941 = vmatpush.msra.mxu0 0.0
    %942 = vmatpush.msra.mxu0 0.0
    %943 = vmatpush.msra.mxu0 0.0
    %944 = vmatpush.msra.mxu0 0.0
    %945 = vmatpush.msra.mxu0 0.0
    %946 = vmatpush.msra.mxu0 0.0
    %v947 = vand.u32 %v42, 4294901760
    %948 = vmatpush.msra.mxu0 %v947
    %v949 = vand.u32 %v776, 4294901760
    %950 = vmatmul.f32.gmra.mxu0 %v949
    %v951 = vpop.f32.mrf.mxu0
    %v952 = vadd.f32 %v926, %v951
    %v953 = vand.u32 %v779, 4294901760
    %954 = vmatmul.f32.gmra.mxu0 %v953
    %v955 = vpop.f32.mrf.mxu0
    %v956 = vadd.f32 %v930, %v955
    %957 = vdwg.mxu0
    %v958 = vadd.f32 %v771, %v952
    %v959 = vadd.f32 %v772, %v956
    %v960 = vld [vmem:[#allocation6 + $0x60] sm:$0xff]
    %v961 = vld [vmem:[#allocation6 + $0x68] sm:$0xff]
    %963 = vset.pattern.permute.xlu0 0
    %964 = vperm.xlu0 %963, %v960
    %v965 = vpop.permute.xlu0 %964
    %968 = vset.pattern.permute.xlu0 0
    %969 = vperm.xlu0 %968, %v961
    %v970 = vpop.permute.xlu0 %969
    %v972 = vadd.f32 %v958, %v965
    %v973 = vadd.f32 %v959, %v970
    %v974 = vld [vmem:[#allocation6 + $0x70] sm:$0xff]
    %v975 = vld [vmem:[#allocation6 + $0x78] sm:$0xff]
    %v977 = vsel %vm633, %v972, 0
    %v980 = vsel %vm633, %v973, 0
    %982 = vmatpush.msra.mxu0 0.0
    %983 = vmatpush.msra.mxu0 0.0
    %984 = vmatpush.msra.mxu0 0.0
    %985 = vmatpush.msra.mxu0 0.0
    %986 = vmatpush.msra.mxu0 0.0
    %987 = vmatpush.msra.mxu0 0.0
    %988 = vmatpush.msra.mxu0 0.0
    %989 = vmatpush.msra.mxu0 0.0
    %990 = vmatpush.msra.mxu0 0.0
    %991 = vmatpush.msra.mxu0 0.0
    %992 = vmatpush.msra.mxu0 0.0
    %993 = vmatpush.msra.mxu0 0.0
    %994 = vmatpush.msra.mxu0 0.0
    %995 = vmatpush.msra.mxu0 0.0
    %v996 = vand.u32 %v975, 4294901760
    %997 = vmatpush.msra.mxu0 %v996
    %v998 = vand.u32 %v974, 4294901760
    %999 = vmatpush.msra.mxu0 %v998
    %v1000 = vand.u32 %v977, 4294901760
    %v1001 = vsub.f32 %v977, %v1000
    %v1002 = vand.u32 %v1001, 4294901760
    %v1003 = vsub.f32 %v1001, %v1002
    %v1004 = vand.u32 %v1003, 4294901760
    %1005 = vmatmul.f32.gmra.mxu0 %v1004
    %v1006 = vpop.f32.mrf.mxu0
    %v1007 = vadd.f32 0.0, %v1006
    %v1008 = vand.u32 %v980, 4294901760
    %v1009 = vsub.f32 %v980, %v1008
    %v1010 = vand.u32 %v1009, 4294901760
    %v1011 = vsub.f32 %v1009, %v1010
    %v1012 = vand.u32 %v1011, 4294901760
    %1013 = vmatmul.f32.gmra.mxu0 %v1012
    %v1014 = vpop.f32.mrf.mxu0
    %v1015 = vadd.f32 0.0, %v1014
    %1016 = vdwg.mxu0
    %1017 = vmatpush.msra.mxu0 0.0
    %1018 = vmatpush.msra.mxu0 0.0
    %1019 = vmatpush.msra.mxu0 0.0
    %1020 = vmatpush.msra.mxu0 0.0
    %1021 = vmatpush.msra.mxu0 0.0
    %1022 = vmatpush.msra.mxu0 0.0
    %1023 = vmatpush.msra.mxu0 0.0
    %1024 = vmatpush.msra.mxu0 0.0
    %1025 = vmatpush.msra.mxu0 0.0
    %1026 = vmatpush.msra.mxu0 0.0
    %1027 = vmatpush.msra.mxu0 0.0
    %1028 = vmatpush.msra.mxu0 0.0
    %1029 = vmatpush.msra.mxu0 0.0
    %1030 = vmatpush.msra.mxu0 0.0
    %v1031 = vand.u32 %v975, 4294901760
    %v1032 = vsub.f32 %v975, %v1031
    %v1033 = vand.u32 %v1032, 4294901760
    %v1034 = vsub.f32 %v1032, %v1033
    %v1035 = vand.u32 %v1034, 4294901760
    %1036 = vmatpush.msra.mxu0 %v1035
    %v1037 = vand.u32 %v974, 4294901760
    %v1038 = vsub.f32 %v974, %v1037
    %v1039 = vand.u32 %v1038, 4294901760
    %v1040 = vsub.f32 %v1038, %v1039
    %v1041 = vand.u32 %v1040, 4294901760
    %1042 = vmatpush.msra.mxu0 %v1041
    %v1043 = vand.u32 %v977, 4294901760
    %1044 = vmatmul.f32.gmra.mxu0 %v1043
    %v1045 = vpop.f32.mrf.mxu0
    %v1046 = vadd.f32 %v1007, %v1045
    %v1047 = vand.u32 %v980, 4294901760
    %1048 = vmatmul.f32.gmra.mxu0 %v1047
    %v1049 = vpop.f32.mrf.mxu0
    %v1050 = vadd.f32 %v1015, %v1049
    %1051 = vdwg.mxu0
    %1052 = vmatpush.msra.mxu0 0.0
    %1053 = vmatpush.msra.mxu0 0.0
    %1054 = vmatpush.msra.mxu0 0.0
    %1055 = vmatpush.msra.mxu0 0.0
    %1056 = vmatpush.msra.mxu0 0.0
    %1057 = vmatpush.msra.mxu0 0.0
    %1058 = vmatpush.msra.mxu0 0.0
    %1059 = vmatpush.msra.mxu0 0.0
    %1060 = vmatpush.msra.mxu0 0.0
    %1061 = vmatpush.msra.mxu0 0.0
    %1062 = vmatpush.msra.mxu0 0.0
    %1063 = vmatpush.msra.mxu0 0.0
    %1064 = vmatpush.msra.mxu0 0.0
    %1065 = vmatpush.msra.mxu0 0.0
    %v1066 = vand.u32 %v975, 4294901760
    %v1067 = vsub.f32 %v975, %v1066
    %1068 = vmatpush.msra.mxu0 %v1067
    %v1069 = vand.u32 %v974, 4294901760
    %v1070 = vsub.f32 %v974, %v1069
    %1071 = vmatpush.msra.mxu0 %v1070
    %v1072 = vand.u32 %v977, 4294901760
    %v1073 = vsub.f32 %v977, %v1072
    %1074 = vmatmul.f32.gmra.mxu0 %v1073
    %v1075 = vpop.f32.mrf.mxu0
    %v1076 = vadd.f32 %v1046, %v1075
    %v1077 = vand.u32 %v980, 4294901760
    %v1078 = vsub.f32 %v980, %v1077
    %1079 = vmatmul.f32.gmra.mxu0 %v1078
    %v1080 = vpop.f32.mrf.mxu0
    %v1081 = vadd.f32 %v1050, %v1080
    %1082 = vdwg.mxu0
    %1083 = vmatpush.msra.mxu0 0.0
    %1084 = vmatpush.msra.mxu0 0.0
    %1085 = vmatpush.msra.mxu0 0.0
    %1086 = vmatpush.msra.mxu0 0.0
    %1087 = vmatpush.msra.mxu0 0.0
    %1088 = vmatpush.msra.mxu0 0.0
    %1089 = vmatpush.msra.mxu0 0.0
    %1090 = vmatpush.msra.mxu0 0.0
    %1091 = vmatpush.msra.mxu0 0.0
    %1092 = vmatpush.msra.mxu0 0.0
    %1093 = vmatpush.msra.mxu0 0.0
    %1094 = vmatpush.msra.mxu0 0.0
    %1095 = vmatpush.msra.mxu0 0.0
    %1096 = vmatpush.msra.mxu0 0.0
    %v1097 = vand.u32 %v975, 4294901760
    %1098 = vmatpush.msra.mxu0 %v1097
    %v1099 = vand.u32 %v974, 4294901760
    %1100 = vmatpush.msra.mxu0 %v1099
    %v1101 = vand.u32 %v977, 4294901760
    %v1102 = vsub.f32 %v977, %v1101
    %v1103 = vand.u32 %v1102, 4294901760
    %1104 = vmatmul.f32.gmra.mxu0 %v1103
    %v1105 = vpop.f32.mrf.mxu0
    %v1106 = vadd.f32 %v1076, %v1105
    %v1107 = vand.u32 %v980, 4294901760
    %v1108 = vsub.f32 %v980, %v1107
    %v1109 = vand.u32 %v1108, 4294901760
    %1110 = vmatmul.f32.gmra.mxu0 %v1109
    %v1111 = vpop.f32.mrf.mxu0
    %v1112 = vadd.f32 %v1081, %v1111
    %1113 = vdwg.mxu0
    %1114 = vmatpush.msra.mxu0 0.0
    %1115 = vmatpush.msra.mxu0 0.0
    %1116 = vmatpush.msra.mxu0 0.0
    %1117 = vmatpush.msra.mxu0 0.0
    %1118 = vmatpush.msra.mxu0 0.0
    %1119 = vmatpush.msra.mxu0 0.0
    %1120 = vmatpush.msra.mxu0 0.0
    %1121 = vmatpush.msra.mxu0 0.0
    %1122 = vmatpush.msra.mxu0 0.0
    %1123 = vmatpush.msra.mxu0 0.0
    %1124 = vmatpush.msra.mxu0 0.0
    %1125 = vmatpush.msra.mxu0 0.0
    %1126 = vmatpush.msra.mxu0 0.0
    %1127 = vmatpush.msra.mxu0 0.0
    %v1128 = vand.u32 %v975, 4294901760
    %v1129 = vsub.f32 %v975, %v1128
    %v1130 = vand.u32 %v1129, 4294901760
    %1131 = vmatpush.msra.mxu0 %v1130
    %v1132 = vand.u32 %v974, 4294901760
    %v1133 = vsub.f32 %v974, %v1132
    %v1134 = vand.u32 %v1133, 4294901760
    %1135 = vmatpush.msra.mxu0 %v1134
    %v1136 = vand.u32 %v977, 4294901760
    %1137 = vmatmul.f32.gmra.mxu0 %v1136
    %v1138 = vpop.f32.mrf.mxu0
    %v1139 = vadd.f32 %v1106, %v1138
    %v1140 = vand.u32 %v980, 4294901760
    %1141 = vmatmul.f32.gmra.mxu0 %v1140
    %v1142 = vpop.f32.mrf.mxu0
    %v1143 = vadd.f32 %v1112, %v1142
    %1144 = vdwg.mxu0
    %1145 = vmatpush.msra.mxu0 0.0
    %1146 = vmatpush.msra.mxu0 0.0
    %1147 = vmatpush.msra.mxu0 0.0
    %1148 = vmatpush.msra.mxu0 0.0
    %1149 = vmatpush.msra.mxu0 0.0
    %1150 = vmatpush.msra.mxu0 0.0
    %1151 = vmatpush.msra.mxu0 0.0
    %1152 = vmatpush.msra.mxu0 0.0
    %1153 = vmatpush.msra.mxu0 0.0
    %1154 = vmatpush.msra.mxu0 0.0
    %1155 = vmatpush.msra.mxu0 0.0
    %1156 = vmatpush.msra.mxu0 0.0
    %1157 = vmatpush.msra.mxu0 0.0
    %1158 = vmatpush.msra.mxu0 0.0
    %v1159 = vand.u32 %v975, 4294901760
    %1160 = vmatpush.msra.mxu0 %v1159
    %v1161 = vand.u32 %v974, 4294901760
    %1162 = vmatpush.msra.mxu0 %v1161
    %v1163 = vand.u32 %v977, 4294901760
    %1164 = vmatmul.f32.gmra.mxu0 %v1163
    %v1165 = vpop.f32.mrf.mxu0
    %v1166 = vadd.f32 %v1139, %v1165
    %v1167 = vand.u32 %v980, 4294901760
    %1168 = vmatmul.f32.gmra.mxu0 %v1167
    %v1169 = vpop.f32.mrf.mxu0
    %v1170 = vadd.f32 %v1143, %v1169
    %1171 = vdwg.mxu0
    %v1172 = vld [vmem:[#allocation6 + $0x80] sm:$0xff]
    %v1173 = vld [vmem:[#allocation6 + $0x88] sm:$0xff]
    %1174 = vmatpush.msra.mxu0 0.0
    %1175 = vmatpush.msra.mxu0 0.0
    %1176 = vmatpush.msra.mxu0 0.0
    %1177 = vmatpush.msra.mxu0 0.0
    %1178 = vmatpush.msra.mxu0 0.0
    %1179 = vmatpush.msra.mxu0 0.0
    %1180 = vmatpush.msra.mxu0 0.0
    %1181 = vmatpush.msra.mxu0 0.0
    %1182 = vmatpush.msra.mxu0 0.0
    %1183 = vmatpush.msra.mxu0 0.0
    %1184 = vmatpush.msra.mxu0 0.0
    %1185 = vmatpush.msra.mxu0 0.0
    %1186 = vmatpush.msra.mxu0 0.0
    %1187 = vmatpush.msra.mxu0 0.0
    %v1188 = vand.u32 %v1173, 4294901760
    %1189 = vmatpush.msra.mxu0 %v1188
    %v1190 = vand.u32 %v1172, 4294901760
    %1191 = vmatpush.msra.mxu0 %v1190
    %v1192 = vand.u32 %v977, 4294901760
    %v1193 = vsub.f32 %v977, %v1192
    %v1194 = vand.u32 %v1193, 4294901760
    %v1195 = vsub.f32 %v1193, %v1194
    %v1196 = vand.u32 %v1195, 4294901760
    %1197 = vmatmul.f32.gmra.mxu0 %v1196
    %v1198 = vpop.f32.mrf.mxu0
    %v1199 = vadd.f32 0.0, %v1198
    %v1200 = vand.u32 %v980, 4294901760
    %v1201 = vsub.f32 %v980, %v1200
    %v1202 = vand.u32 %v1201, 4294901760
    %v1203 = vsub.f32 %v1201, %v1202
    %v1204 = vand.u32 %v1203, 4294901760
    %1205 = vmatmul.f32.gmra.mxu0 %v1204
    %v1206 = vpop.f32.mrf.mxu0
    %v1207 = vadd.f32 0.0, %v1206
    %1208 = vdwg.mxu0
    %1209 = vmatpush.msra.mxu0 0.0
    %1210 = vmatpush.msra.mxu0 0.0
    %1211 = vmatpush.msra.mxu0 0.0
    %1212 = vmatpush.msra.mxu0 0.0
    %1213 = vmatpush.msra.mxu0 0.0
    %1214 = vmatpush.msra.mxu0 0.0
    %1215 = vmatpush.msra.mxu0 0.0
    %1216 = vmatpush.msra.mxu0 0.0
    %1217 = vmatpush.msra.mxu0 0.0
    %1218 = vmatpush.msra.mxu0 0.0
    %1219 = vmatpush.msra.mxu0 0.0
    %1220 = vmatpush.msra.mxu0 0.0
    %1221 = vmatpush.msra.mxu0 0.0
    %1222 = vmatpush.msra.mxu0 0.0
    %v1223 = vand.u32 %v1173, 4294901760
    %v1224 = vsub.f32 %v1173, %v1223
    %v1225 = vand.u32 %v1224, 4294901760
    %v1226 = vsub.f32 %v1224, %v1225
    %v1227 = vand.u32 %v1226, 4294901760
    %1228 = vmatpush.msra.mxu0 %v1227
    %v1229 = vand.u32 %v1172, 4294901760
    %v1230 = vsub.f32 %v1172, %v1229
    %v1231 = vand.u32 %v1230, 4294901760
    %v1232 = vsub.f32 %v1230, %v1231
    %v1233 = vand.u32 %v1232, 4294901760
    %1234 = vmatpush.msra.mxu0 %v1233
    %v1235 = vand.u32 %v977, 4294901760
    %1236 = vmatmul.f32.gmra.mxu0 %v1235
    %v1237 = vpop.f32.mrf.mxu0
    %v1238 = vadd.f32 %v1199, %v1237
    %v1239 = vand.u32 %v980, 4294901760
    %1240 = vmatmul.f32.gmra.mxu0 %v1239
    %v1241 = vpop.f32.mrf.mxu0
    %v1242 = vadd.f32 %v1207, %v1241
    %1243 = vdwg.mxu0
    %1244 = vmatpush.msra.mxu0 0.0
    %1245 = vmatpush.msra.mxu0 0.0
    %1246 = vmatpush.msra.mxu0 0.0
    %1247 = vmatpush.msra.mxu0 0.0
    %1248 = vmatpush.msra.mxu0 0.0
    %1249 = vmatpush.msra.mxu0 0.0
    %1250 = vmatpush.msra.mxu0 0.0
    %1251 = vmatpush.msra.mxu0 0.0
    %1252 = vmatpush.msra.mxu0 0.0
    %1253 = vmatpush.msra.mxu0 0.0
    %1254 = vmatpush.msra.mxu0 0.0
    %1255 = vmatpush.msra.mxu0 0.0
    %1256 = vmatpush.msra.mxu0 0.0
    %1257 = vmatpush.msra.mxu0 0.0
    %v1258 = vand.u32 %v1173, 4294901760
    %v1259 = vsub.f32 %v1173, %v1258
    %1260 = vmatpush.msra.mxu0 %v1259
    %v1261 = vand.u32 %v1172, 4294901760
    %v1262 = vsub.f32 %v1172, %v1261
    %1263 = vmatpush.msra.mxu0 %v1262
    %v1264 = vand.u32 %v977, 4294901760
    %v1265 = vsub.f32 %v977, %v1264
    %1266 = vmatmul.f32.gmra.mxu0 %v1265
    %v1267 = vpop.f32.mrf.mxu0
    %v1268 = vadd.f32 %v1238, %v1267
    %v1269 = vand.u32 %v980, 4294901760
    %v1270 = vsub.f32 %v980, %v1269
    %1271 = vmatmul.f32.gmra.mxu0 %v1270
    %v1272 = vpop.f32.mrf.mxu0
    %v1273 = vadd.f32 %v1242, %v1272
    %1274 = vdwg.mxu0
    %1275 = vmatpush.msra.mxu0 0.0
    %1276 = vmatpush.msra.mxu0 0.0
    %1277 = vmatpush.msra.mxu0 0.0
    %1278 = vmatpush.msra.mxu0 0.0
    %1279 = vmatpush.msra.mxu0 0.0
    %1280 = vmatpush.msra.mxu0 0.0
    %1281 = vmatpush.msra.mxu0 0.0
    %1282 = vmatpush.msra.mxu0 0.0
    %1283 = vmatpush.msra.mxu0 0.0
    %1284 = vmatpush.msra.mxu0 0.0
    %1285 = vmatpush.msra.mxu0 0.0
    %1286 = vmatpush.msra.mxu0 0.0
    %1287 = vmatpush.msra.mxu0 0.0
    %1288 = vmatpush.msra.mxu0 0.0
    %v1289 = vand.u32 %v1173, 4294901760
    %1290 = vmatpush.msra.mxu0 %v1289
    %v1291 = vand.u32 %v1172, 4294901760
    %1292 = vmatpush.msra.mxu0 %v1291
    %v1293 = vand.u32 %v977, 4294901760
    %v1294 = vsub.f32 %v977, %v1293
    %v1295 = vand.u32 %v1294, 4294901760
    %1296 = vmatmul.f32.gmra.mxu0 %v1295
    %v1297 = vpop.f32.mrf.mxu0
    %v1298 = vadd.f32 %v1268, %v1297
    %v1299 = vand.u32 %v980, 4294901760
    %v1300 = vsub.f32 %v980, %v1299
    %v1301 = vand.u32 %v1300, 4294901760
    %1302 = vmatmul.f32.gmra.mxu0 %v1301
    %v1303 = vpop.f32.mrf.mxu0
    %v1304 = vadd.f32 %v1273, %v1303
    %1305 = vdwg.mxu0
    %1306 = vmatpush.msra.mxu0 0.0
    %1307 = vmatpush.msra.mxu0 0.0
    %1308 = vmatpush.msra.mxu0 0.0
    %1309 = vmatpush.msra.mxu0 0.0
    %1310 = vmatpush.msra.mxu0 0.0
    %1311 = vmatpush.msra.mxu0 0.0
    %1312 = vmatpush.msra.mxu0 0.0
    %1313 = vmatpush.msra.mxu0 0.0
    %1314 = vmatpush.msra.mxu0 0.0
    %1315 = vmatpush.msra.mxu0 0.0
    %1316 = vmatpush.msra.mxu0 0.0
    %1317 = vmatpush.msra.mxu0 0.0
    %1318 = vmatpush.msra.mxu0 0.0
    %1319 = vmatpush.msra.mxu0 0.0
    %v1320 = vand.u32 %v1173, 4294901760
    %v1321 = vsub.f32 %v1173, %v1320
    %v1322 = vand.u32 %v1321, 4294901760
    %1323 = vmatpush.msra.mxu0 %v1322
    %v1324 = vand.u32 %v1172, 4294901760
    %v1325 = vsub.f32 %v1172, %v1324
    %v1326 = vand.u32 %v1325, 4294901760
    %1327 = vmatpush.msra.mxu0 %v1326
    %v1328 = vand.u32 %v977, 4294901760
    %1329 = vmatmul.f32.gmra.mxu0 %v1328
    %v1330 = vpop.f32.mrf.mxu0
    %v1331 = vadd.f32 %v1298, %v1330
    %v1332 = vand.u32 %v980, 4294901760
    %1333 = vmatmul.f32.gmra.mxu0 %v1332
    %v1334 = vpop.f32.mrf.mxu0
    %v1335 = vadd.f32 %v1304, %v1334
    %1336 = vdwg.mxu0
    %1337 = vmatpush.msra.mxu0 0.0
    %1338 = vmatpush.msra.mxu0 0.0
    %1339 = vmatpush.msra.mxu0 0.0
    %1340 = vmatpush.msra.mxu0 0.0
    %1341 = vmatpush.msra.mxu0 0.0
    %1342 = vmatpush.msra.mxu0 0.0
    %1343 = vmatpush.msra.mxu0 0.0
    %1344 = vmatpush.msra.mxu0 0.0
    %1345 = vmatpush.msra.mxu0 0.0
    %1346 = vmatpush.msra.mxu0 0.0
    %1347 = vmatpush.msra.mxu0 0.0
    %1348 = vmatpush.msra.mxu0 0.0
    %1349 = vmatpush.msra.mxu0 0.0
    %1350 = vmatpush.msra.mxu0 0.0
    %v1351 = vand.u32 %v1173, 4294901760
    %1352 = vmatpush.msra.mxu0 %v1351
    %v1353 = vand.u32 %v1172, 4294901760
    %1354 = vmatpush.msra.mxu0 %v1353
    %v1355 = vand.u32 %v977, 4294901760
    %1356 = vmatmul.f32.gmra.mxu0 %v1355
    %v1357 = vpop.f32.mrf.mxu0
    %v1358 = vadd.f32 %v1331, %v1357
    %v1359 = vand.u32 %v980, 4294901760
    %1360 = vmatmul.f32.gmra.mxu0 %v1359
    %v1361 = vpop.f32.mrf.mxu0
    %v1362 = vadd.f32 %v1335, %v1361
    %1363 = vdwg.mxu0
    %v1364 = vmax.f32 %v1166, %v1358
    %v1365 = vmax.f32 %v1170, %v1362
    %vm1366 = vcmask 15360
    %1367 = vst.msk [vmem:[#allocation2] sm:$0xff] %vm1366, 0.0
    %1368 = vst.msk [vmem:[#allocation2 + $0x8] sm:$0xff] %vm1366, 0.0
    %1371 = vrot.lane.b32.xlu0 %v1364, 2
    %v1372 = vpop.permute.xlu0 %1371
    %1373 = vrot.lane.b32.xlu0 %v1365, 2
    %v1374 = vpop.permute.xlu0 %1373
    %vm1377 = vcmask 80912
    %1378 = vst.msk [vmem:[#allocation2] sm:$0xff] %vm1377, %v1372
    %1379 = vst.msk [vmem:[#allocation2 + $0x8] sm:$0xff] %vm1377, %v1374
    %vm1380 = vcmask 97360
    %1381 = vst.msk [vmem:[#allocation2] sm:$0xff] %vm1380, 0.0
    %1382 = vst.msk [vmem:[#allocation2 + $0x8] sm:$0xff] %vm1380, 0.0
    %v1383 = vld [vmem:[#allocation6 + $0x90] sm:$0xff]
    %v1384 = vld [vmem:[#allocation6 + $0x98] sm:$0xff]
    %v1385 = vld [vmem:[#allocation6 + $0xa0] sm:$0xff]
    %v1386 = vld [vmem:[#allocation6 + $0xa8] sm:$0xff]
    %v1387 = vld [vmem:[#allocation2] sm:$0xff]
    %v1388 = vld [vmem:[#allocation2 + $0x8] sm:$0xff]
    %v1389 = vld [vmem:[#allocation6 + $0xb0] sm:$0xff]
    %v1390 = vld [vmem:[#allocation6 + $0xb8] sm:$0xff]
    %v1391 = vld [vmem:[#allocation6 + $0xc0] sm:$0xff]
    %v1392 = vld [vmem:[#allocation6 + $0xc8] sm:$0xff]
    %1395 = vrot.lane.b32.xlu0 %v1387, 126
    %v1396 = vpop.permute.xlu0 %1395
    %1397 = vrot.lane.b32.xlu0 %v1388, 126
    %v1398 = vpop.permute.xlu0 %1397
    %v1402 = vsel %vm633, %v1389, 0
    %v1405 = vsel %vm633, %v1390, 0
    %v1408 = vsel %vm633, %v1391, 0
    %v1411 = vsel %vm633, %v1392, 0
    %1413 = vmatpush.msra.mxu0 0.0
    %1414 = vmatpush.msra.mxu0 0.0
    %1415 = vmatpush.msra.mxu0 0.0
    %1416 = vmatpush.msra.mxu0 0.0
    %1417 = vmatpush.msra.mxu0 0.0
    %1418 = vmatpush.msra.mxu0 0.0
    %1419 = vmatpush.msra.mxu0 0.0
    %1420 = vmatpush.msra.mxu0 0.0
    %1421 = vmatpush.msra.mxu0 0.0
    %1422 = vmatpush.msra.mxu0 0.0
    %1423 = vmatpush.msra.mxu0 0.0
    %1424 = vmatpush.msra.mxu0 0.0
    %1425 = vmatpush.msra.mxu0 0.0
    %1426 = vmatpush.msra.mxu0 0.0
    %v1427 = vand.u32 %v1398, 4294901760
    %1428 = vmatpush.msra.mxu0 %v1427
    %v1429 = vand.u32 %v1396, 4294901760
    %1430 = vmatpush.msra.mxu0 %v1429
    %v1431 = vand.u32 %v1402, 4294901760
    %v1432 = vsub.f32 %v1402, %v1431
    %v1433 = vand.u32 %v1432, 4294901760
    %v1434 = vsub.f32 %v1432, %v1433
    %v1435 = vand.u32 %v1434, 4294901760
    %1436 = vmatmul.f32.gmra.mxu0 %v1435
    %v1437 = vpop.f32.mrf.mxu0
    %v1438 = vadd.f32 0.0, %v1437
    %v1439 = vand.u32 %v1405, 4294901760
    %v1440 = vsub.f32 %v1405, %v1439
    %v1441 = vand.u32 %v1440, 4294901760
    %v1442 = vsub.f32 %v1440, %v1441
    %v1443 = vand.u32 %v1442, 4294901760
    %1444 = vmatmul.f32.gmra.mxu0 %v1443
    %v1445 = vpop.f32.mrf.mxu0
    %v1446 = vadd.f32 0.0, %v1445
    %v1447 = vand.u32 %v1408, 4294901760
    %v1448 = vsub.f32 %v1408, %v1447
    %v1449 = vand.u32 %v1448, 4294901760
    %v1450 = vsub.f32 %v1448, %v1449
    %v1451 = vand.u32 %v1450, 4294901760
    %1452 = vmatmul.f32.gmra.mxu0 %v1451
    %v1453 = vpop.f32.mrf.mxu0
    %v1454 = vadd.f32 0.0, %v1453
    %v1455 = vand.u32 %v1411, 4294901760
    %v1456 = vsub.f32 %v1411, %v1455
    %v1457 = vand.u32 %v1456, 4294901760
    %v1458 = vsub.f32 %v1456, %v1457
    %v1459 = vand.u32 %v1458, 4294901760
    %1460 = vmatmul.f32.gmra.mxu0 %v1459
    %v1461 = vpop.f32.mrf.mxu0
    %v1462 = vadd.f32 0.0, %v1461
    %1463 = vdwg.mxu0
    %1464 = vmatpush.msra.mxu0 0.0
    %1465 = vmatpush.msra.mxu0 0.0
    %1466 = vmatpush.msra.mxu0 0.0
    %1467 = vmatpush.msra.mxu0 0.0
    %1468 = vmatpush.msra.mxu0 0.0
    %1469 = vmatpush.msra.mxu0 0.0
    %1470 = vmatpush.msra.mxu0 0.0
    %1471 = vmatpush.msra.mxu0 0.0
    %1472 = vmatpush.msra.mxu0 0.0
    %1473 = vmatpush.msra.mxu0 0.0
    %1474 = vmatpush.msra.mxu0 0.0
    %1475 = vmatpush.msra.mxu0 0.0
    %1476 = vmatpush.msra.mxu0 0.0
    %1477 = vmatpush.msra.mxu0 0.0
    %v1478 = vand.u32 %v1398, 4294901760
    %v1479 = vsub.f32 %v1398, %v1478
    %v1480 = vand.u32 %v1479, 4294901760
    %v1481 = vsub.f32 %v1479, %v1480
    %v1482 = vand.u32 %v1481, 4294901760
    %1483 = vmatpush.msra.mxu0 %v1482
    %v1484 = vand.u32 %v1396, 4294901760
    %v1485 = vsub.f32 %v1396, %v1484
    %v1486 = vand.u32 %v1485, 4294901760
    %v1487 = vsub.f32 %v1485, %v1486
    %v1488 = vand.u32 %v1487, 4294901760
    %1489 = vmatpush.msra.mxu0 %v1488
    %v1490 = vand.u32 %v1402, 4294901760
    %1491 = vmatmul.f32.gmra.mxu0 %v1490
    %v1492 = vpop.f32.mrf.mxu0
    %v1493 = vadd.f32 %v1438, %v1492
    %v1494 = vand.u32 %v1405, 4294901760
    %1495 = vmatmul.f32.gmra.mxu0 %v1494
    %v1496 = vpop.f32.mrf.mxu0
    %v1497 = vadd.f32 %v1446, %v1496
    %v1498 = vand.u32 %v1408, 4294901760
    %1499 = vmatmul.f32.gmra.mxu0 %v1498
    %v1500 = vpop.f32.mrf.mxu0
    %v1501 = vadd.f32 %v1454, %v1500
    %v1502 = vand.u32 %v1411, 4294901760
    %1503 = vmatmul.f32.gmra.mxu0 %v1502
    %v1504 = vpop.f32.mrf.mxu0
    %v1505 = vadd.f32 %v1462, %v1504
    %1506 = vdwg.mxu0
    %1507 = vmatpush.msra.mxu0 0.0
    %1508 = vmatpush.msra.mxu0 0.0
    %1509 = vmatpush.msra.mxu0 0.0
    %1510 = vmatpush.msra.mxu0 0.0
    %1511 = vmatpush.msra.mxu0 0.0
    %1512 = vmatpush.msra.mxu0 0.0
    %1513 = vmatpush.msra.mxu0 0.0
    %1514 = vmatpush.msra.mxu0 0.0
    %1515 = vmatpush.msra.mxu0 0.0
    %1516 = vmatpush.msra.mxu0 0.0
    %1517 = vmatpush.msra.mxu0 0.0
    %1518 = vmatpush.msra.mxu0 0.0
    %1519 = vmatpush.msra.mxu0 0.0
    %1520 = vmatpush.msra.mxu0 0.0
    %v1521 = vand.u32 %v1398, 4294901760
    %v1522 = vsub.f32 %v1398, %v1521
    %1523 = vmatpush.msra.mxu0 %v1522
    %v1524 = vand.u32 %v1396, 4294901760
    %v1525 = vsub.f32 %v1396, %v1524
    %1526 = vmatpush.msra.mxu0 %v1525
    %v1527 = vand.u32 %v1402, 4294901760
    %v1528 = vsub.f32 %v1402, %v1527
    %1529 = vmatmul.f32.gmra.mxu0 %v1528
    %v1530 = vpop.f32.mrf.mxu0
    %v1531 = vadd.f32 %v1493, %v1530
    %v1532 = vand.u32 %v1405, 4294901760
    %v1533 = vsub.f32 %v1405, %v1532
    %1534 = vmatmul.f32.gmra.mxu0 %v1533
    %v1535 = vpop.f32.mrf.mxu0
    %v1536 = vadd.f32 %v1497, %v1535
    %v1537 = vand.u32 %v1408, 4294901760
    %v1538 = vsub.f32 %v1408, %v1537
    %1539 = vmatmul.f32.gmra.mxu0 %v1538
    %v1540 = vpop.f32.mrf.mxu0
    %v1541 = vadd.f32 %v1501, %v1540
    %v1542 = vand.u32 %v1411, 4294901760
    %v1543 = vsub.f32 %v1411, %v1542
    %1544 = vmatmul.f32.gmra.mxu0 %v1543
    %v1545 = vpop.f32.mrf.mxu0
    %v1546 = vadd.f32 %v1505, %v1545
    %1547 = vdwg.mxu0
    %1548 = vmatpush.msra.mxu0 0.0
    %1549 = vmatpush.msra.mxu0 0.0
    %1550 = vmatpush.msra.mxu0 0.0
    %1551 = vmatpush.msra.mxu0 0.0
    %1552 = vmatpush.msra.mxu0 0.0
    %1553 = vmatpush.msra.mxu0 0.0
    %1554 = vmatpush.msra.mxu0 0.0
    %1555 = vmatpush.msra.mxu0 0.0
    %1556 = vmatpush.msra.mxu0 0.0
    %1557 = vmatpush.msra.mxu0 0.0
    %1558 = vmatpush.msra.mxu0 0.0
    %1559 = vmatpush.msra.mxu0 0.0
    %1560 = vmatpush.msra.mxu0 0.0
    %1561 = vmatpush.msra.mxu0 0.0
    %v1562 = vand.u32 %v1398, 4294901760
    %1563 = vmatpush.msra.mxu0 %v1562
    %v1564 = vand.u32 %v1396, 4294901760
    %1565 = vmatpush.msra.mxu0 %v1564
    %v1566 = vand.u32 %v1402, 4294901760
    %v1567 = vsub.f32 %v1402, %v1566
    %v1568 = vand.u32 %v1567, 4294901760
    %1569 = vmatmul.f32.gmra.mxu0 %v1568
    %v1570 = vpop.f32.mrf.mxu0
    %v1571 = vadd.f32 %v1531, %v1570
    %v1572 = vand.u32 %v1405, 4294901760
    %v1573 = vsub.f32 %v1405, %v1572
    %v1574 = vand.u32 %v1573, 4294901760
    %1575 = vmatmul.f32.gmra.mxu0 %v1574
    %v1576 = vpop.f32.mrf.mxu0
    %v1577 = vadd.f32 %v1536, %v1576
    %v1578 = vand.u32 %v1408, 4294901760
    %v1579 = vsub.f32 %v1408, %v1578
    %v1580 = vand.u32 %v1579, 4294901760
    %1581 = vmatmul.f32.gmra.mxu0 %v1580
    %v1582 = vpop.f32.mrf.mxu0
    %v1583 = vadd.f32 %v1541, %v1582
    %v1584 = vand.u32 %v1411, 4294901760
    %v1585 = vsub.f32 %v1411, %v1584
    %v1586 = vand.u32 %v1585, 4294901760
    %1587 = vmatmul.f32.gmra.mxu0 %v1586
    %v1588 = vpop.f32.mrf.mxu0
    %v1589 = vadd.f32 %v1546, %v1588
    %1590 = vdwg.mxu0
    %1591 = vmatpush.msra.mxu0 0.0
    %1592 = vmatpush.msra.mxu0 0.0
    %1593 = vmatpush.msra.mxu0 0.0
    %1594 = vmatpush.msra.mxu0 0.0
    %1595 = vmatpush.msra.mxu0 0.0
    %1596 = vmatpush.msra.mxu0 0.0
    %1597 = vmatpush.msra.mxu0 0.0
    %1598 = vmatpush.msra.mxu0 0.0
    %1599 = vmatpush.msra.mxu0 0.0
    %1600 = vmatpush.msra.mxu0 0.0
    %1601 = vmatpush.msra.mxu0 0.0
    %1602 = vmatpush.msra.mxu0 0.0
    %1603 = vmatpush.msra.mxu0 0.0
    %1604 = vmatpush.msra.mxu0 0.0
    %v1605 = vand.u32 %v1398, 4294901760
    %v1606 = vsub.f32 %v1398, %v1605
    %v1607 = vand.u32 %v1606, 4294901760
    %1608 = vmatpush.msra.mxu0 %v1607
    %v1609 = vand.u32 %v1396, 4294901760
    %v1610 = vsub.f32 %v1396, %v1609
    %v1611 = vand.u32 %v1610, 4294901760
    %1612 = vmatpush.msra.mxu0 %v1611
    %v1613 = vand.u32 %v1402, 4294901760
    %1614 = vmatmul.f32.gmra.mxu0 %v1613
    %v1615 = vpop.f32.mrf.mxu0
    %v1616 = vadd.f32 %v1571, %v1615
    %v1617 = vand.u32 %v1405, 4294901760
    %1618 = vmatmul.f32.gmra.mxu0 %v1617
    %v1619 = vpop.f32.mrf.mxu0
    %v1620 = vadd.f32 %v1577, %v1619
    %v1621 = vand.u32 %v1408, 4294901760
    %1622 = vmatmul.f32.gmra.mxu0 %v1621
    %v1623 = vpop.f32.mrf.mxu0
    %v1624 = vadd.f32 %v1583, %v1623
    %v1625 = vand.u32 %v1411, 4294901760
    %1626 = vmatmul.f32.gmra.mxu0 %v1625
    %v1627 = vpop.f32.mrf.mxu0
    %v1628 = vadd.f32 %v1589, %v1627
    %1629 = vdwg.mxu0
    %1630 = vmatpush.msra.mxu0 0.0
    %1631 = vmatpush.msra.mxu0 0.0
    %1632 = vmatpush.msra.mxu0 0.0
    %1633 = vmatpush.msra.mxu0 0.0
    %1634 = vmatpush.msra.mxu0 0.0
    %1635 = vmatpush.msra.mxu0 0.0
    %1636 = vmatpush.msra.mxu0 0.0
    %1637 = vmatpush.msra.mxu0 0.0
    %1638 = vmatpush.msra.mxu0 0.0
    %1639 = vmatpush.msra.mxu0 0.0
    %1640 = vmatpush.msra.mxu0 0.0
    %1641 = vmatpush.msra.mxu0 0.0
    %1642 = vmatpush.msra.mxu0 0.0
    %1643 = vmatpush.msra.mxu0 0.0
    %v1644 = vand.u32 %v1398, 4294901760
    %1645 = vmatpush.msra.mxu0 %v1644
    %v1646 = vand.u32 %v1396, 4294901760
    %1647 = vmatpush.msra.mxu0 %v1646
    %v1648 = vand.u32 %v1402, 4294901760
    %1649 = vmatmul.f32.gmra.mxu0 %v1648
    %v1650 = vpop.f32.mrf.mxu0
    %v1651 = vadd.f32 %v1616, %v1650
    %v1652 = vand.u32 %v1405, 4294901760
    %1653 = vmatmul.f32.gmra.mxu0 %v1652
    %v1654 = vpop.f32.mrf.mxu0
    %v1655 = vadd.f32 %v1620, %v1654
    %v1656 = vand.u32 %v1408, 4294901760
    %1657 = vmatmul.f32.gmra.mxu0 %v1656
    %v1658 = vpop.f32.mrf.mxu0
    %v1659 = vadd.f32 %v1624, %v1658
    %v1660 = vand.u32 %v1411, 4294901760
    %1661 = vmatmul.f32.gmra.mxu0 %v1660
    %v1662 = vpop.f32.mrf.mxu0
    %v1663 = vadd.f32 %v1628, %v1662
    %1664 = vdwg.mxu0
    %v1666 = vsel %vm633, %v1383, 0
    %v1669 = vsel %vm633, %v1384, 0
    %v1672 = vsel %vm633, %v1385, 0
    %v1675 = vsel %vm633, %v1386, 0
    %1677 = vmatpush.msra.mxu0 0.0
    %1678 = vmatpush.msra.mxu0 0.0
    %1679 = vmatpush.msra.mxu0 0.0
    %1680 = vmatpush.msra.mxu0 0.0
    %1681 = vmatpush.msra.mxu0 0.0
    %1682 = vmatpush.msra.mxu0 0.0
    %1683 = vmatpush.msra.mxu0 0.0
    %1684 = vmatpush.msra.mxu0 0.0
    %1685 = vmatpush.msra.mxu0 0.0
    %1686 = vmatpush.msra.mxu0 0.0
    %1687 = vmatpush.msra.mxu0 0.0
    %1688 = vmatpush.msra.mxu0 0.0
    %1689 = vmatpush.msra.mxu0 0.0
    %1690 = vmatpush.msra.mxu0 0.0
    %v1691 = vand.u32 %v1388, 4294901760
    %1692 = vmatpush.msra.mxu0 %v1691
    %v1693 = vand.u32 %v1387, 4294901760
    %1694 = vmatpush.msra.mxu0 %v1693
    %v1695 = vand.u32 %v1666, 4294901760
    %v1696 = vsub.f32 %v1666, %v1695
    %v1697 = vand.u32 %v1696, 4294901760
    %v1698 = vsub.f32 %v1696, %v1697
    %v1699 = vand.u32 %v1698, 4294901760
    %1700 = vmatmul.f32.gmra.mxu0 %v1699
    %v1701 = vpop.f32.mrf.mxu0
    %v1702 = vadd.f32 %v1651, %v1701
    %v1703 = vand.u32 %v1669, 4294901760
    %v1704 = vsub.f32 %v1669, %v1703
    %v1705 = vand.u32 %v1704, 4294901760
    %v1706 = vsub.f32 %v1704, %v1705
    %v1707 = vand.u32 %v1706, 4294901760
    %1708 = vmatmul.f32.gmra.mxu0 %v1707
    %v1709 = vpop.f32.mrf.mxu0
    %v1710 = vadd.f32 %v1655, %v1709
    %v1711 = vand.u32 %v1672, 4294901760
    %v1712 = vsub.f32 %v1672, %v1711
    %v1713 = vand.u32 %v1712, 4294901760
    %v1714 = vsub.f32 %v1712, %v1713
    %v1715 = vand.u32 %v1714, 4294901760
    %1716 = vmatmul.f32.gmra.mxu0 %v1715
    %v1717 = vpop.f32.mrf.mxu0
    %v1718 = vadd.f32 %v1659, %v1717
    %v1719 = vand.u32 %v1675, 4294901760
    %v1720 = vsub.f32 %v1675, %v1719
    %v1721 = vand.u32 %v1720, 4294901760
    %v1722 = vsub.f32 %v1720, %v1721
    %v1723 = vand.u32 %v1722, 4294901760
    %1724 = vmatmul.f32.gmra.mxu0 %v1723
    %v1725 = vpop.f32.mrf.mxu0
    %v1726 = vadd.f32 %v1663, %v1725
    %1727 = vdwg.mxu0
    %1728 = vmatpush.msra.mxu0 0.0
    %1729 = vmatpush.msra.mxu0 0.0
    %1730 = vmatpush.msra.mxu0 0.0
    %1731 = vmatpush.msra.mxu0 0.0
    %1732 = vmatpush.msra.mxu0 0.0
    %1733 = vmatpush.msra.mxu0 0.0
    %1734 = vmatpush.msra.mxu0 0.0
    %1735 = vmatpush.msra.mxu0 0.0
    %1736 = vmatpush.msra.mxu0 0.0
    %1737 = vmatpush.msra.mxu0 0.0
    %1738 = vmatpush.msra.mxu0 0.0
    %1739 = vmatpush.msra.mxu0 0.0
    %1740 = vmatpush.msra.mxu0 0.0
    %1741 = vmatpush.msra.mxu0 0.0
    %v1742 = vand.u32 %v1388, 4294901760
    %v1743 = vsub.f32 %v1388, %v1742
    %v1744 = vand.u32 %v1743, 4294901760
    %v1745 = vsub.f32 %v1743, %v1744
    %v1746 = vand.u32 %v1745, 4294901760
    %1747 = vmatpush.msra.mxu0 %v1746
    %v1748 = vand.u32 %v1387, 4294901760
    %v1749 = vsub.f32 %v1387, %v1748
    %v1750 = vand.u32 %v1749, 4294901760
    %v1751 = vsub.f32 %v1749, %v1750
    %v1752 = vand.u32 %v1751, 4294901760
    %1753 = vmatpush.msra.mxu0 %v1752
    %v1754 = vand.u32 %v1666, 4294901760
    %1755 = vmatmul.f32.gmra.mxu0 %v1754
    %v1756 = vpop.f32.mrf.mxu0
    %v1757 = vadd.f32 %v1702, %v1756
    %v1758 = vand.u32 %v1669, 4294901760
    %1759 = vmatmul.f32.gmra.mxu0 %v1758
    %v1760 = vpop.f32.mrf.mxu0
    %v1761 = vadd.f32 %v1710, %v1760
    %v1762 = vand.u32 %v1672, 4294901760
    %1763 = vmatmul.f32.gmra.mxu0 %v1762
    %v1764 = vpop.f32.mrf.mxu0
    %v1765 = vadd.f32 %v1718, %v1764
    %v1766 = vand.u32 %v1675, 4294901760
    %1767 = vmatmul.f32.gmra.mxu0 %v1766
    %v1768 = vpop.f32.mrf.mxu0
    %v1769 = vadd.f32 %v1726, %v1768
    %1770 = vdwg.mxu0
    %1771 = vmatpush.msra.mxu0 0.0
    %1772 = vmatpush.msra.mxu0 0.0
    %1773 = vmatpush.msra.mxu0 0.0
    %1774 = vmatpush.msra.mxu0 0.0
    %1775 = vmatpush.msra.mxu0 0.0
    %1776 = vmatpush.msra.mxu0 0.0
    %1777 = vmatpush.msra.mxu0 0.0
    %1778 = vmatpush.msra.mxu0 0.0
    %1779 = vmatpush.msra.mxu0 0.0
    %1780 = vmatpush.msra.mxu0 0.0
    %1781 = vmatpush.msra.mxu0 0.0
    %1782 = vmatpush.msra.mxu0 0.0
    %1783 = vmatpush.msra.mxu0 0.0
    %1784 = vmatpush.msra.mxu0 0.0
    %v1785 = vand.u32 %v1388, 4294901760
    %v1786 = vsub.f32 %v1388, %v1785
    %1787 = vmatpush.msra.mxu0 %v1786
    %v1788 = vand.u32 %v1387, 4294901760
    %v1789 = vsub.f32 %v1387, %v1788
    %1790 = vmatpush.msra.mxu0 %v1789
    %v1791 = vand.u32 %v1666, 4294901760
    %v1792 = vsub.f32 %v1666, %v1791
    %1793 = vmatmul.f32.gmra.mxu0 %v1792
    %v1794 = vpop.f32.mrf.mxu0
    %v1795 = vadd.f32 %v1757, %v1794
    %v1796 = vand.u32 %v1669, 4294901760
    %v1797 = vsub.f32 %v1669, %v1796
    %1798 = vmatmul.f32.gmra.mxu0 %v1797
    %v1799 = vpop.f32.mrf.mxu0
    %v1800 = vadd.f32 %v1761, %v1799
    %v1801 = vand.u32 %v1672, 4294901760
    %v1802 = vsub.f32 %v1672, %v1801
    %1803 = vmatmul.f32.gmra.mxu0 %v1802
    %v1804 = vpop.f32.mrf.mxu0
    %v1805 = vadd.f32 %v1765, %v1804
    %v1806 = vand.u32 %v1675, 4294901760
    %v1807 = vsub.f32 %v1675, %v1806
    %1808 = vmatmul.f32.gmra.mxu0 %v1807
    %v1809 = vpop.f32.mrf.mxu0
    %v1810 = vadd.f32 %v1769, %v1809
    %1811 = vdwg.mxu0
    %1812 = vmatpush.msra.mxu0 0.0
    %1813 = vmatpush.msra.mxu0 0.0
    %1814 = vmatpush.msra.mxu0 0.0
    %1815 = vmatpush.msra.mxu0 0.0
    %1816 = vmatpush.msra.mxu0 0.0
    %1817 = vmatpush.msra.mxu0 0.0
    %1818 = vmatpush.msra.mxu0 0.0
    %1819 = vmatpush.msra.mxu0 0.0
    %1820 = vmatpush.msra.mxu0 0.0
    %1821 = vmatpush.msra.mxu0 0.0
    %1822 = vmatpush.msra.mxu0 0.0
    %1823 = vmatpush.msra.mxu0 0.0
    %1824 = vmatpush.msra.mxu0 0.0
    %1825 = vmatpush.msra.mxu0 0.0
    %v1826 = vand.u32 %v1388, 4294901760
    %1827 = vmatpush.msra.mxu0 %v1826
    %v1828 = vand.u32 %v1387, 4294901760
    %1829 = vmatpush.msra.mxu0 %v1828
    %v1830 = vand.u32 %v1666, 4294901760
    %v1831 = vsub.f32 %v1666, %v1830
    %v1832 = vand.u32 %v1831, 4294901760
    %1833 = vmatmul.f32.gmra.mxu0 %v1832
    %v1834 = vpop.f32.mrf.mxu0
    %v1835 = vadd.f32 %v1795, %v1834
    %v1836 = vand.u32 %v1669, 4294901760
    %v1837 = vsub.f32 %v1669, %v1836
    %v1838 = vand.u32 %v1837, 4294901760
    %1839 = vmatmul.f32.gmra.mxu0 %v1838
    %v1840 = vpop.f32.mrf.mxu0
    %v1841 = vadd.f32 %v1800, %v1840
    %v1842 = vand.u32 %v1672, 4294901760
    %v1843 = vsub.f32 %v1672, %v1842
    %v1844 = vand.u32 %v1843, 4294901760
    %1845 = vmatmul.f32.gmra.mxu0 %v1844
    %v1846 = vpop.f32.mrf.mxu0
    %v1847 = vadd.f32 %v1805, %v1846
    %v1848 = vand.u32 %v1675, 4294901760
    %v1849 = vsub.f32 %v1675, %v1848
    %v1850 = vand.u32 %v1849, 4294901760
    %1851 = vmatmul.f32.gmra.mxu0 %v1850
    %v1852 = vpop.f32.mrf.mxu0
    %v1853 = vadd.f32 %v1810, %v1852
    %1854 = vdwg.mxu0
    %1855 = vmatpush.msra.mxu0 0.0
    %1856 = vmatpush.msra.mxu0 0.0
    %1857 = vmatpush.msra.mxu0 0.0
    %1858 = vmatpush.msra.mxu0 0.0
    %1859 = vmatpush.msra.mxu0 0.0
    %1860 = vmatpush.msra.mxu0 0.0
    %1861 = vmatpush.msra.mxu0 0.0
    %1862 = vmatpush.msra.mxu0 0.0
    %1863 = vmatpush.msra.mxu0 0.0
    %1864 = vmatpush.msra.mxu0 0.0
    %1865 = vmatpush.msra.mxu0 0.0
    %1866 = vmatpush.msra.mxu0 0.0
    %1867 = vmatpush.msra.mxu0 0.0
    %1868 = vmatpush.msra.mxu0 0.0
    %v1869 = vand.u32 %v1388, 4294901760
    %v1870 = vsub.f32 %v1388, %v1869
    %v1871 = vand.u32 %v1870, 4294901760
    %1872 = vmatpush.msra.mxu0 %v1871
    %v1873 = vand.u32 %v1387, 4294901760
    %v1874 = vsub.f32 %v1387, %v1873
    %v1875 = vand.u32 %v1874, 4294901760
    %1876 = vmatpush.msra.mxu0 %v1875
    %v1877 = vand.u32 %v1666, 4294901760
    %1878 = vmatmul.f32.gmra.mxu0 %v1877
    %v1879 = vpop.f32.mrf.mxu0
    %v1880 = vadd.f32 %v1835, %v1879
    %v1881 = vand.u32 %v1669, 4294901760
    %1882 = vmatmul.f32.gmra.mxu0 %v1881
    %v1883 = vpop.f32.mrf.mxu0
    %v1884 = vadd.f32 %v1841, %v1883
    %v1885 = vand.u32 %v1672, 4294901760
    %1886 = vmatmul.f32.gmra.mxu0 %v1885
    %v1887 = vpop.f32.mrf.mxu0
    %v1888 = vadd.f32 %v1847, %v1887
    %v1889 = vand.u32 %v1675, 4294901760
    %1890 = vmatmul.f32.gmra.mxu0 %v1889
    %v1891 = vpop.f32.mrf.mxu0
    %v1892 = vadd.f32 %v1853, %v1891
    %1893 = vdwg.mxu0
    %1894 = vmatpush.msra.mxu0 0.0
    %1895 = vmatpush.msra.mxu0 0.0
    %1896 = vmatpush.msra.mxu0 0.0
    %1897 = vmatpush.msra.mxu0 0.0
    %1898 = vmatpush.msra.mxu0 0.0
    %1899 = vmatpush.msra.mxu0 0.0
    %1900 = vmatpush.msra.mxu0 0.0
    %1901 = vmatpush.msra.mxu0 0.0
    %1902 = vmatpush.msra.mxu0 0.0
    %1903 = vmatpush.msra.mxu0 0.0
    %1904 = vmatpush.msra.mxu0 0.0
    %1905 = vmatpush.msra.mxu0 0.0
    %1906 = vmatpush.msra.mxu0 0.0
    %1907 = vmatpush.msra.mxu0 0.0
    %v1908 = vand.u32 %v1388, 4294901760
    %1909 = vmatpush.msra.mxu0 %v1908
    %v1910 = vand.u32 %v1387, 4294901760
    %1911 = vmatpush.msra.mxu0 %v1910
    %v1912 = vand.u32 %v1666, 4294901760
    %1913 = vmatmul.f32.gmra.mxu0 %v1912
    %v1914 = vpop.f32.mrf.mxu0
    %v1915 = vadd.f32 %v1880, %v1914
    %v1916 = vand.u32 %v1669, 4294901760
    %1917 = vmatmul.f32.gmra.mxu0 %v1916
    %v1918 = vpop.f32.mrf.mxu0
    %v1919 = vadd.f32 %v1884, %v1918
    %v1920 = vand.u32 %v1672, 4294901760
    %1921 = vmatmul.f32.gmra.mxu0 %v1920
    %v1922 = vpop.f32.mrf.mxu0
    %v1923 = vadd.f32 %v1888, %v1922
    %v1924 = vand.u32 %v1675, 4294901760
    %1925 = vmatmul.f32.gmra.mxu0 %v1924
    %v1926 = vpop.f32.mrf.mxu0
    %v1927 = vadd.f32 %v1892, %v1926
    %1928 = vdwg.mxu0
    %v1929 = vld [vmem:[#allocation6 + $0xd0] sm:$0xff]
    %v1930 = vld [vmem:[#allocation6 + $0xd8] sm:$0xff]
    %v1931 = vld [vmem:[#allocation6 + $0xe0] sm:$0xff]
    %v1932 = vld [vmem:[#allocation6 + $0xe8] sm:$0xff]
    %1933 = vrot.lane.b32.xlu0 %v1387, 124
    %v1934 = vpop.permute.xlu0 %1933
    %1935 = vrot.lane.b32.xlu0 %v1388, 124
    %v1936 = vpop.permute.xlu0 %1935
    %v1940 = vsel %vm633, %v1929, 0
    %v1943 = vsel %vm633, %v1930, 0
    %v1946 = vsel %vm633, %v1931, 0
    %v1949 = vsel %vm633, %v1932, 0
    %1951 = vmatpush.msra.mxu0 0.0
    %1952 = vmatpush.msra.mxu0 0.0
    %1953 = vmatpush.msra.mxu0 0.0
    %1954 = vmatpush.msra.mxu0 0.0
    %1955 = vmatpush.msra.mxu0 0.0
    %1956 = vmatpush.msra.mxu0 0.0
    %1957 = vmatpush.msra.mxu0 0.0
    %1958 = vmatpush.msra.mxu0 0.0
    %1959 = vmatpush.msra.mxu0 0.0
    %1960 = vmatpush.msra.mxu0 0.0
    %1961 = vmatpush.msra.mxu0 0.0
    %1962 = vmatpush.msra.mxu0 0.0
    %1963 = vmatpush.msra.mxu0 0.0
    %1964 = vmatpush.msra.mxu0 0.0
    %v1965 = vand.u32 %v1936, 4294901760
    %1966 = vmatpush.msra.mxu0 %v1965
    %v1967 = vand.u32 %v1934, 4294901760
    %1968 = vmatpush.msra.mxu0 %v1967
    %v1969 = vand.u32 %v1940, 4294901760
    %v1970 = vsub.f32 %v1940, %v1969
    %v1971 = vand.u32 %v1970, 4294901760
    %v1972 = vsub.f32 %v1970, %v1971
    %v1973 = vand.u32 %v1972, 4294901760
    %1974 = vmatmul.f32.gmra.mxu0 %v1973
    %v1975 = vpop.f32.mrf.mxu0
    %v1976 = vadd.f32 0.0, %v1975
    %v1977 = vand.u32 %v1943, 4294901760
    %v1978 = vsub.f32 %v1943, %v1977
    %v1979 = vand.u32 %v1978, 4294901760
    %v1980 = vsub.f32 %v1978, %v1979
    %v1981 = vand.u32 %v1980, 4294901760
    %1982 = vmatmul.f32.gmra.mxu0 %v1981
    %v1983 = vpop.f32.mrf.mxu0
    %v1984 = vadd.f32 0.0, %v1983
    %v1985 = vand.u32 %v1946, 4294901760
    %v1986 = vsub.f32 %v1946, %v1985
    %v1987 = vand.u32 %v1986, 4294901760
    %v1988 = vsub.f32 %v1986, %v1987
    %v1989 = vand.u32 %v1988, 4294901760
    %1990 = vmatmul.f32.gmra.mxu0 %v1989
    %v1991 = vpop.f32.mrf.mxu0
    %v1992 = vadd.f32 0.0, %v1991
    %v1993 = vand.u32 %v1949, 4294901760
    %v1994 = vsub.f32 %v1949, %v1993
    %v1995 = vand.u32 %v1994, 4294901760
    %v1996 = vsub.f32 %v1994, %v1995
    %v1997 = vand.u32 %v1996, 4294901760
    %1998 = vmatmul.f32.gmra.mxu0 %v1997
    %v1999 = vpop.f32.mrf.mxu0
    %v2000 = vadd.f32 0.0, %v1999
    %2001 = vdwg.mxu0
    %2002 = vmatpush.msra.mxu0 0.0
    %2003 = vmatpush.msra.mxu0 0.0
    %2004 = vmatpush.msra.mxu0 0.0
    %2005 = vmatpush.msra.mxu0 0.0
    %2006 = vmatpush.msra.mxu0 0.0
    %2007 = vmatpush.msra.mxu0 0.0
    %2008 = vmatpush.msra.mxu0 0.0
    %2009 = vmatpush.msra.mxu0 0.0
    %2010 = vmatpush.msra.mxu0 0.0
    %2011 = vmatpush.msra.mxu0 0.0
    %2012 = vmatpush.msra.mxu0 0.0
    %2013 = vmatpush.msra.mxu0 0.0
    %2014 = vmatpush.msra.mxu0 0.0
    %2015 = vmatpush.msra.mxu0 0.0
    %v2016 = vand.u32 %v1936, 4294901760
    %v2017 = vsub.f32 %v1936, %v2016
    %v2018 = vand.u32 %v2017, 4294901760
    %v2019 = vsub.f32 %v2017, %v2018
    %v2020 = vand.u32 %v2019, 4294901760
    %2021 = vmatpush.msra.mxu0 %v2020
    %v2022 = vand.u32 %v1934, 4294901760
    %v2023 = vsub.f32 %v1934, %v2022
    %v2024 = vand.u32 %v2023, 4294901760
    %v2025 = vsub.f32 %v2023, %v2024
    %v2026 = vand.u32 %v2025, 4294901760
    %2027 = vmatpush.msra.mxu0 %v2026
    %v2028 = vand.u32 %v1940, 4294901760
    %2029 = vmatmul.f32.gmra.mxu0 %v2028
    %v2030 = vpop.f32.mrf.mxu0
    %v2031 = vadd.f32 %v1976, %v2030
    %v2032 = vand.u32 %v1943, 4294901760
    %2033 = vmatmul.f32.gmra.mxu0 %v2032
    %v2034 = vpop.f32.mrf.mxu0
    %v2035 = vadd.f32 %v1984, %v2034
    %v2036 = vand.u32 %v1946, 4294901760
    %2037 = vmatmul.f32.gmra.mxu0 %v2036
    %v2038 = vpop.f32.mrf.mxu0
    %v2039 = vadd.f32 %v1992, %v2038
    %v2040 = vand.u32 %v1949, 4294901760
    %2041 = vmatmul.f32.gmra.mxu0 %v2040
    %v2042 = vpop.f32.mrf.mxu0
    %v2043 = vadd.f32 %v2000, %v2042
    %2044 = vdwg.mxu0
    %2045 = vmatpush.msra.mxu0 0.0
    %2046 = vmatpush.msra.mxu0 0.0
    %2047 = vmatpush.msra.mxu0 0.0
    %2048 = vmatpush.msra.mxu0 0.0
    %2049 = vmatpush.msra.mxu0 0.0
    %2050 = vmatpush.msra.mxu0 0.0
    %2051 = vmatpush.msra.mxu0 0.0
    %2052 = vmatpush.msra.mxu0 0.0
    %2053 = vmatpush.msra.mxu0 0.0
    %2054 = vmatpush.msra.mxu0 0.0
    %2055 = vmatpush.msra.mxu0 0.0
    %2056 = vmatpush.msra.mxu0 0.0
    %2057 = vmatpush.msra.mxu0 0.0
    %2058 = vmatpush.msra.mxu0 0.0
    %v2059 = vand.u32 %v1936, 4294901760
    %v2060 = vsub.f32 %v1936, %v2059
    %2061 = vmatpush.msra.mxu0 %v2060
    %v2062 = vand.u32 %v1934, 4294901760
    %v2063 = vsub.f32 %v1934, %v2062
    %2064 = vmatpush.msra.mxu0 %v2063
    %v2065 = vand.u32 %v1940, 4294901760
    %v2066 = vsub.f32 %v1940, %v2065
    %2067 = vmatmul.f32.gmra.mxu0 %v2066
    %v2068 = vpop.f32.mrf.mxu0
    %v2069 = vadd.f32 %v2031, %v2068
    %v2070 = vand.u32 %v1943, 4294901760
    %v2071 = vsub.f32 %v1943, %v2070
    %2072 = vmatmul.f32.gmra.mxu0 %v2071
    %v2073 = vpop.f32.mrf.mxu0
    %v2074 = vadd.f32 %v2035, %v2073
    %v2075 = vand.u32 %v1946, 4294901760
    %v2076 = vsub.f32 %v1946, %v2075
    %2077 = vmatmul.f32.gmra.mxu0 %v2076
    %v2078 = vpop.f32.mrf.mxu0
    %v2079 = vadd.f32 %v2039, %v2078
    %v2080 = vand.u32 %v1949, 4294901760
    %v2081 = vsub.f32 %v1949, %v2080
    %2082 = vmatmul.f32.gmra.mxu0 %v2081
    %v2083 = vpop.f32.mrf.mxu0
    %v2084 = vadd.f32 %v2043, %v2083
    %2085 = vdwg.mxu0
    %2086 = vmatpush.msra.mxu0 0.0
    %2087 = vmatpush.msra.mxu0 0.0
    %2088 = vmatpush.msra.mxu0 0.0
    %2089 = vmatpush.msra.mxu0 0.0
    %2090 = vmatpush.msra.mxu0 0.0
    %2091 = vmatpush.msra.mxu0 0.0
    %2092 = vmatpush.msra.mxu0 0.0
    %2093 = vmatpush.msra.mxu0 0.0
    %2094 = vmatpush.msra.mxu0 0.0
    %2095 = vmatpush.msra.mxu0 0.0
    %2096 = vmatpush.msra.mxu0 0.0
    %2097 = vmatpush.msra.mxu0 0.0
    %2098 = vmatpush.msra.mxu0 0.0
    %2099 = vmatpush.msra.mxu0 0.0
    %v2100 = vand.u32 %v1936, 4294901760
    %2101 = vmatpush.msra.mxu0 %v2100
    %v2102 = vand.u32 %v1934, 4294901760
    %2103 = vmatpush.msra.mxu0 %v2102
    %v2104 = vand.u32 %v1940, 4294901760
    %v2105 = vsub.f32 %v1940, %v2104
    %v2106 = vand.u32 %v2105, 4294901760
    %2107 = vmatmul.f32.gmra.mxu0 %v2106
    %v2108 = vpop.f32.mrf.mxu0
    %v2109 = vadd.f32 %v2069, %v2108
    %v2110 = vand.u32 %v1943, 4294901760
    %v2111 = vsub.f32 %v1943, %v2110
    %v2112 = vand.u32 %v2111, 4294901760
    %2113 = vmatmul.f32.gmra.mxu0 %v2112
    %v2114 = vpop.f32.mrf.mxu0
    %v2115 = vadd.f32 %v2074, %v2114
    %v2116 = vand.u32 %v1946, 4294901760
    %v2117 = vsub.f32 %v1946, %v2116
    %v2118 = vand.u32 %v2117, 4294901760
    %2119 = vmatmul.f32.gmra.mxu0 %v2118
    %v2120 = vpop.f32.mrf.mxu0
    %v2121 = vadd.f32 %v2079, %v2120
    %v2122 = vand.u32 %v1949, 4294901760
    %v2123 = vsub.f32 %v1949, %v2122
    %v2124 = vand.u32 %v2123, 4294901760
    %2125 = vmatmul.f32.gmra.mxu0 %v2124
    %v2126 = vpop.f32.mrf.mxu0
    %v2127 = vadd.f32 %v2084, %v2126
    %2128 = vdwg.mxu0
    %2129 = vmatpush.msra.mxu0 0.0
    %2130 = vmatpush.msra.mxu0 0.0
    %2131 = vmatpush.msra.mxu0 0.0
    %2132 = vmatpush.msra.mxu0 0.0
    %2133 = vmatpush.msra.mxu0 0.0
    %2134 = vmatpush.msra.mxu0 0.0
    %2135 = vmatpush.msra.mxu0 0.0
    %2136 = vmatpush.msra.mxu0 0.0
    %2137 = vmatpush.msra.mxu0 0.0
    %2138 = vmatpush.msra.mxu0 0.0
    %2139 = vmatpush.msra.mxu0 0.0
    %2140 = vmatpush.msra.mxu0 0.0
    %2141 = vmatpush.msra.mxu0 0.0
    %2142 = vmatpush.msra.mxu0 0.0
    %v2143 = vand.u32 %v1936, 4294901760
    %v2144 = vsub.f32 %v1936, %v2143
    %v2145 = vand.u32 %v2144, 4294901760
    %2146 = vmatpush.msra.mxu0 %v2145
    %v2147 = vand.u32 %v1934, 4294901760
    %v2148 = vsub.f32 %v1934, %v2147
    %v2149 = vand.u32 %v2148, 4294901760
    %2150 = vmatpush.msra.mxu0 %v2149
    %v2151 = vand.u32 %v1940, 4294901760
    %2152 = vmatmul.f32.gmra.mxu0 %v2151
    %v2153 = vpop.f32.mrf.mxu0
    %v2154 = vadd.f32 %v2109, %v2153
    %v2155 = vand.u32 %v1943, 4294901760
    %2156 = vmatmul.f32.gmra.mxu0 %v2155
    %v2157 = vpop.f32.mrf.mxu0
    %v2158 = vadd.f32 %v2115, %v2157
    %v2159 = vand.u32 %v1946, 4294901760
    %2160 = vmatmul.f32.gmra.mxu0 %v2159
    %v2161 = vpop.f32.mrf.mxu0
    %v2162 = vadd.f32 %v2121, %v2161
    %v2163 = vand.u32 %v1949, 4294901760
    %2164 = vmatmul.f32.gmra.mxu0 %v2163
    %v2165 = vpop.f32.mrf.mxu0
    %v2166 = vadd.f32 %v2127, %v2165
    %2167 = vdwg.mxu0
    %2168 = vmatpush.msra.mxu0 0.0
    %2169 = vmatpush.msra.mxu0 0.0
    %2170 = vmatpush.msra.mxu0 0.0
    %2171 = vmatpush.msra.mxu0 0.0
    %2172 = vmatpush.msra.mxu0 0.0
    %2173 = vmatpush.msra.mxu0 0.0
    %2174 = vmatpush.msra.mxu0 0.0
    %2175 = vmatpush.msra.mxu0 0.0
    %2176 = vmatpush.msra.mxu0 0.0
    %2177 = vmatpush.msra.mxu0 0.0
    %2178 = vmatpush.msra.mxu0 0.0
    %2179 = vmatpush.msra.mxu0 0.0
    %2180 = vmatpush.msra.mxu0 0.0
    %2181 = vmatpush.msra.mxu0 0.0
    %v2182 = vand.u32 %v1936, 4294901760
    %2183 = vmatpush.msra.mxu0 %v2182
    %v2184 = vand.u32 %v1934, 4294901760
    %2185 = vmatpush.msra.mxu0 %v2184
    %v2186 = vand.u32 %v1940, 4294901760
    %2187 = vmatmul.f32.gmra.mxu0 %v2186
    %v2188 = vpop.f32.mrf.mxu0
    %v2189 = vadd.f32 %v2154, %v2188
    %v2190 = vand.u32 %v1943, 4294901760
    %2191 = vmatmul.f32.gmra.mxu0 %v2190
    %v2192 = vpop.f32.mrf.mxu0
    %v2193 = vadd.f32 %v2158, %v2192
    %v2194 = vand.u32 %v1946, 4294901760
    %2195 = vmatmul.f32.gmra.mxu0 %v2194
    %v2196 = vpop.f32.mrf.mxu0
    %v2197 = vadd.f32 %v2162, %v2196
    %v2198 = vand.u32 %v1949, 4294901760
    %2199 = vmatmul.f32.gmra.mxu0 %v2198
    %v2200 = vpop.f32.mrf.mxu0
    %v2201 = vadd.f32 %v2166, %v2200
    %2202 = vdwg.mxu0
    %v2203 = vadd.f32 %v1915, %v2189
    %v2204 = vadd.f32 %v1919, %v2193
    %v2205 = vadd.f32 %v1923, %v2197
    %v2206 = vadd.f32 %v1927, %v2201
    %v2207 = vld [vmem:[#allocation6 + $0xf0] sm:$0xff]
    %v2208 = vld [vmem:[#allocation6 + $0xf8] sm:$0xff]
    %v2209 = vld [vmem:[#allocation6 + $0x100] sm:$0xff]
    %v2210 = vld [vmem:[#allocation6 + $0x108] sm:$0xff]
    %2212 = vset.pattern.permute.xlu0 0
    %2213 = vperm.xlu0 %2212, %v2207
    %v2214 = vpop.permute.xlu0 %2213
    %2217 = vset.pattern.permute.xlu0 0
    %2218 = vperm.xlu0 %2217, %v2208
    %v2219 = vpop.permute.xlu0 %2218
    %2222 = vset.pattern.permute.xlu0 0
    %2223 = vperm.xlu0 %2222, %v2209
    %v2224 = vpop.permute.xlu0 %2223
    %2227 = vset.pattern.permute.xlu0 0
    %2228 = vperm.xlu0 %2227, %v2210
    %v2229 = vpop.permute.xlu0 %2228
    %v2231 = vadd.f32 %v2203, %v2214
    %v2232 = vadd.f32 %v2204, %v2219
    %v2233 = vadd.f32 %v2205, %v2224
    %v2234 = vadd.f32 %v2206, %v2229
    %v2235 = vsel %vm62, %v2231, 0.0
    %2236 = vadd.xlane.f32.xlu0 %v2235
    %v2237 = vpop.xlane.xlu0 %2236
    %v2238 = vsel %vm62, %v2232, 0.0
    %2239 = vadd.xlane.f32.xlu0 %v2238
    %v2240 = vpop.xlane.xlu0 %2239
    %v2241 = vsel %vm62, %v2233, 0.0
    %2242 = vadd.xlane.f32.xlu0 %v2241
    %v2243 = vpop.xlane.xlu0 %2242
    %v2244 = vsel %vm62, %v2234, 0.0
    %2245 = vadd.xlane.f32.xlu0 %v2244
    %v2246 = vpop.xlane.xlu0 %2245
    %v2247 = vrcp.pop 8.0
    %v2248 = vmul.f32 8.0, %v2247
    %v2249 = vsub.f32 1.0, %v2248
    %v2250 = vmul.f32 %v2247, %v2249
    %v2251 = vadd.f32 %v2247, %v2250
    %vm2252 = vweird.f32 %v2247
    %v2253 = vsel %vm2252, %v2247, %v2251
    %v2254 = vmul.f32 %v2237, %v2253
    %v2255 = vmul.f32 %v2240, %v2253
    %v2256 = vmul.f32 %v2243, %v2253
    %v2257 = vmul.f32 %v2246, %v2253
    %v2258 = vsub.f32 %v2231, %v2254
    %v2259 = vsub.f32 %v2232, %v2255
    %v2260 = vsub.f32 %v2233, %v2256
    %v2261 = vsub.f32 %v2234, %v2257
    %v2262 = vmul.f32 %v2258, %v2258
    %v2263 = vmul.f32 %v2259, %v2259
    %v2264 = vmul.f32 %v2260, %v2260
    %v2265 = vmul.f32 %v2261, %v2261
    %v2266 = vsel %vm62, %v2262, 0.0
    %2267 = vadd.xlane.f32.xlu0 %v2266
    %v2268 = vpop.xlane.xlu0 %2267
    %v2269 = vsel %vm62, %v2263, 0.0
    %2270 = vadd.xlane.f32.xlu0 %v2269
    %v2271 = vpop.xlane.xlu0 %2270
    %v2272 = vsel %vm62, %v2264, 0.0
    %2273 = vadd.xlane.f32.xlu0 %v2272
    %v2274 = vpop.xlane.xlu0 %2273
    %v2275 = vsel %vm62, %v2265, 0.0
    %2276 = vadd.xlane.f32.xlu0 %v2275
    %v2277 = vpop.xlane.xlu0 %2276
    %v2278 = vmul.f32 %v2268, %v2253
    %v2279 = vmul.f32 %v2271, %v2253
    %v2280 = vmul.f32 %v2274, %v2253
    %v2281 = vmul.f32 %v2277, %v2253
    %v2282 = vadd.f32 %v2278, 1e-05
    %v2283 = vadd.f32 %v2279, 1e-05
    %v2284 = vadd.f32 %v2280, 1e-05
    %v2285 = vadd.f32 %v2281, 1e-05
    %v2286 = vrsqrt.pop %v2282
    %v2287 = vmul.f32 %v2286, %v2282
    %v2288 = vmul.f32 %v2287, %v2286
    %v2289 = vmul.f32 0.5, %v2288
    %v2290 = vsub.f32 1.5, %v2289
    %v2291 = vmul.f32 %v2286, %v2290
    %vm2292 = vweird.f32 %v2282
    %vm2293 = vweird.f32 %v2286
    %vm2294 = vmor %vm2292, %vm2293
    %v2295 = vsel %vm2294, %v2286, %v2291
    %v2296 = vrsqrt.pop %v2283
    %v2297 = vmul.f32 %v2296, %v2283
    %v2298 = vmul.f32 %v2297, %v2296
    %v2299 = vmul.f32 0.5, %v2298
    %v2300 = vsub.f32 1.5, %v2299
    %v2301 = vmul.f32 %v2296, %v2300
    %vm2302 = vweird.f32 %v2283
    %vm2303 = vweird.f32 %v2296
    %vm2304 = vmor %vm2302, %vm2303
    %v2305 = vsel %vm2304, %v2296, %v2301
    %v2306 = vrsqrt.pop %v2284
    %v2307 = vmul.f32 %v2306, %v2284
    %v2308 = vmul.f32 %v2307, %v2306
    %v2309 = vmul.f32 0.5, %v2308
    %v2310 = vsub.f32 1.5, %v2309
    %v2311 = vmul.f32 %v2306, %v2310
    %vm2312 = vweird.f32 %v2284
    %vm2313 = vweird.f32 %v2306
    %vm2314 = vmor %vm2312, %vm2313
    %v2315 = vsel %vm2314, %v2306, %v2311
    %v2316 = vrsqrt.pop %v2285
    %v2317 = vmul.f32 %v2316, %v2285
    %v2318 = vmul.f32 %v2317, %v2316
    %v2319 = vmul.f32 0.5, %v2318
    %v2320 = vsub.f32 1.5, %v2319
    %v2321 = vmul.f32 %v2316, %v2320
    %vm2322 = vweird.f32 %v2285
    %vm2323 = vweird.f32 %v2316
    %vm2324 = vmor %vm2322, %vm2323
    %v2325 = vsel %vm2324, %v2316, %v2321
    %v2326 = vmul.f32 %v2258, %v2295
    %v2327 = vmul.f32 %v2259, %v2305
    %v2328 = vmul.f32 %v2260, %v2315
    %v2329 = vmul.f32 %v2261, %v2325
    %v2330 = vld [vmem:[#allocation6 + $0x110] sm:$0x1]
    %v2331 = vperm.slane %v2330, 0
    %v2332 = vmul.f32 %v2326, %v2331
    %v2333 = vmul.f32 %v2327, %v2331
    %v2334 = vmul.f32 %v2328, %v2331
    %v2335 = vmul.f32 %v2329, %v2331
    %v2336 = vld [vmem:[#allocation6 + $0x118] sm:$0x1]
    %v2337 = vperm.slane %v2336, 0
    %v2338 = vadd.f32 %v2332, %v2337
    %v2339 = vadd.f32 %v2333, %v2337
    %v2340 = vadd.f32 %v2334, %v2337
    %v2341 = vadd.f32 %v2335, %v2337
    %v2342 = vmul.f32 %v2338, 0.5
    %v2343 = vmul.f32 %v2339, 0.5
    %v2344 = vmul.f32 %v2340, 0.5
    %v2345 = vmul.f32 %v2341, 0.5
    %v2346 = vmul.f32 %v2338, 0.70710677
    %v2347 = vmul.f32 %v2339, 0.70710677
    %v2348 = vmul.f32 %v2340, 0.70710677
    %v2349 = vmul.f32 %v2341, 0.70710677
    %vm2350 = vcmp.lt.f32.partialorder %v2346, 0.0
    %vm2351 = vcmp.lt.f32.partialorder %v2347, 0.0
    %vm2352 = vcmp.lt.f32.partialorder %v2348, 0.0
    %vm2353 = vcmp.lt.f32.partialorder %v2349, 0.0
    %v2354 = vsel %vm2350, -1.0, 1.0
    %v2355 = vsel %vm2351, -1.0, 1.0
    %v2356 = vsel %vm2352, -1.0, 1.0
    %v2357 = vsel %vm2353, -1.0, 1.0
    %v2358 = vand.u32 2147483647, %v2346
    %v2359 = vand.u32 2147483647, %v2347
    %v2360 = vand.u32 2147483647, %v2348
    %v2361 = vand.u32 2147483647, %v2349
    %v2362 = vmul.f32 %v2358, 0.3275911
    %v2363 = vmul.f32 %v2359, 0.3275911
    %v2364 = vmul.f32 %v2360, 0.3275911
    %v2365 = vmul.f32 %v2361, 0.3275911
    %v2366 = vadd.f32 %v2362, 1.0
    %v2367 = vadd.f32 %v2363, 1.0
    %v2368 = vadd.f32 %v2364, 1.0
    %v2369 = vadd.f32 %v2365, 1.0
    %v2370 = vrcp.pop %v2366
    %v2371 = vmul.f32 %v2366, %v2370
    %v2372 = vsub.f32 1.0, %v2371
    %v2373 = vmul.f32 %v2370, %v2372
    %v2374 = vadd.f32 %v2370, %v2373
    %vm2375 = vweird.f32 %v2366
    %vm2376 = vweird.f32 %v2370
    %vm2377 = vmor %vm2375, %vm2376
    %v2378 = vsel %vm2377, %v2370, %v2374
    %v2379 = vand.u32 2147483647, %v2366
    %vm2380 = vcmp.eq.f32.partialorder %v2379, 8.507059e+37
    %v2381 = vand.u32 %v2366, 2147483648
    %v2382 = vor.u32 1.1754944e-38, %v2381
    %v2383 = vsel %vm2380, %v2382, %v2378
    %v2384 = vmul.f32 1.0, %v2383
    %v2385 = vrcp.pop %v2367
    %v2386 = vmul.f32 %v2367, %v2385
    %v2387 = vsub.f32 1.0, %v2386
    %v2388 = vmul.f32 %v2385, %v2387
    %v2389 = vadd.f32 %v2385, %v2388
    %vm2390 = vweird.f32 %v2367
    %vm2391 = vweird.f32 %v2385
    %vm2392 = vmor %vm2390, %vm2391
    %v2393 = vsel %vm2392, %v2385, %v2389
    %v2394 = vand.u32 2147483647, %v2367
    %vm2395 = vcmp.eq.f32.partialorder %v2394, 8.507059e+37
    %v2396 = vand.u32 %v2367, 2147483648
    %v2397 = vor.u32 1.1754944e-38, %v2396
    %v2398 = vsel %vm2395, %v2397, %v2393
    %v2399 = vmul.f32 1.0, %v2398
    %v2400 = vrcp.pop %v2368
    %v2401 = vmul.f32 %v2368, %v2400
    %v2402 = vsub.f32 1.0, %v2401
    %v2403 = vmul.f32 %v2400, %v2402
    %v2404 = vadd.f32 %v2400, %v2403
    %vm2405 = vweird.f32 %v2368
    %vm2406 = vweird.f32 %v2400
    %vm2407 = vmor %vm2405, %vm2406
    %v2408 = vsel %vm2407, %v2400, %v2404
    %v2409 = vand.u32 2147483647, %v2368
    %vm2410 = vcmp.eq.f32.partialorder %v2409, 8.507059e+37
    %v2411 = vand.u32 %v2368, 2147483648
    %v2412 = vor.u32 1.1754944e-38, %v2411
    %v2413 = vsel %vm2410, %v2412, %v2408
    %v2414 = vmul.f32 1.0, %v2413
    %v2415 = vrcp.pop %v2369
    %v2416 = vmul.f32 %v2369, %v2415
    %v2417 = vsub.f32 1.0, %v2416
    %v2418 = vmul.f32 %v2415, %v2417
    %v2419 = vadd.f32 %v2415, %v2418
    %vm2420 = vweird.f32 %v2369
    %vm2421 = vweird.f32 %v2415
    %vm2422 = vmor %vm2420, %vm2421
    %v2423 = vsel %vm2422, %v2415, %v2419
    %v2424 = vand.u32 2147483647, %v2369
    %vm2425 = vcmp.eq.f32.partialorder %v2424, 8.507059e+37
    %v2426 = vand.u32 %v2369, 2147483648
    %v2427 = vor.u32 1.1754944e-38, %v2426
    %v2428 = vsel %vm2425, %v2427, %v2423
    %v2429 = vmul.f32 1.0, %v2428
    %v2430 = vmul.f32 %v2384, 1.0614054
    %v2431 = vmul.f32 %v2399, 1.0614054
    %v2432 = vmul.f32 %v2414, 1.0614054
    %v2433 = vmul.f32 %v2429, 1.0614054
    %v2434 = vadd.f32 %v2430, -1.4531521
    %v2435 = vadd.f32 %v2431, -1.4531521
    %v2436 = vadd.f32 %v2432, -1.4531521
    %v2437 = vadd.f32 %v2433, -1.4531521
    %v2438 = vmul.f32 %v2384, %v2434
    %v2439 = vmul.f32 %v2399, %v2435
    %v2440 = vmul.f32 %v2414, %v2436
    %v2441 = vmul.f32 %v2429, %v2437
    %v2442 = vadd.f32 %v2438, 1.4214138
    %v2443 = vadd.f32 %v2439, 1.4214138
    %v2444 = vadd.f32 %v2440, 1.4214138
    %v2445 = vadd.f32 %v2441, 1.4214138
    %v2446 = vmul.f32 %v2384, %v2442
    %v2447 = vmul.f32 %v2399, %v2443
    %v2448 = vmul.f32 %v2414, %v2444
    %v2449 = vmul.f32 %v2429, %v2445
    %v2450 = vadd.f32 %v2446, -0.28449672
    %v2451 = vadd.f32 %v2447, -0.28449672
    %v2452 = vadd.f32 %v2448, -0.28449672
    %v2453 = vadd.f32 %v2449, -0.28449672
    %v2454 = vmul.f32 %v2384, %v2450
    %v2455 = vmul.f32 %v2399, %v2451
    %v2456 = vmul.f32 %v2414, %v2452
    %v2457 = vmul.f32 %v2429, %v2453
    %v2458 = vadd.f32 %v2454, 0.2548296
    %v2459 = vadd.f32 %v2455, 0.2548296
    %v2460 = vadd.f32 %v2456, 0.2548296
    %v2461 = vadd.f32 %v2457, 0.2548296
    %v2462 = vmul.f32 %v2384, %v2458
    %v2463 = vmul.f32 %v2399, %v2459
    %v2464 = vmul.f32 %v2414, %v2460
    %v2465 = vmul.f32 %v2429, %v2461
    %v2466 = vsub.f32 0.0, %v2358
    %v2467 = vsub.f32 0.0, %v2359
    %v2468 = vsub.f32 0.0, %v2360
    %v2469 = vsub.f32 0.0, %v2361
    %v2470 = vmul.f32 %v2466, %v2358
    %v2471 = vmul.f32 %v2467, %v2359
    %v2472 = vmul.f32 %v2468, %v2360
    %v2473 = vmul.f32 %v2469, %v2361
    %v2474 = vmul.f32 %v2470, 1.442695
    %v2475 = vpow.pop %v2474
    %v2476 = vmul.f32 %v2471, 1.442695
    %v2477 = vpow.pop %v2476
    %v2478 = vmul.f32 %v2472, 1.442695
    %v2479 = vpow.pop %v2478
    %v2480 = vmul.f32 %v2473, 1.442695
    %v2481 = vpow.pop %v2480
    %v2482 = vmul.f32 %v2462, %v2475
    %v2483 = vmul.f32 %v2463, %v2477
    %v2484 = vmul.f32 %v2464, %v2479
    %v2485 = vmul.f32 %v2465, %v2481
    %v2486 = vsub.f32 1.0, %v2482
    %v2487 = vsub.f32 1.0, %v2483
    %v2488 = vsub.f32 1.0, %v2484
    %v2489 = vsub.f32 1.0, %v2485
    %v2490 = vmul.f32 %v2354, %v2486
    %v2491 = vmul.f32 %v2355, %v2487
    %v2492 = vmul.f32 %v2356, %v2488
    %v2493 = vmul.f32 %v2357, %v2489
    %v2494 = vadd.f32 %v2490, 1.0
    %v2495 = vadd.f32 %v2491, 1.0
    %v2496 = vadd.f32 %v2492, 1.0
    %v2497 = vadd.f32 %v2493, 1.0
    %v2498 = vmul.f32 %v2342, %v2494
    %v2499 = vmul.f32 %v2343, %v2495
    %v2500 = vmul.f32 %v2344, %v2496
    %v2501 = vmul.f32 %v2345, %v2497
    %v2502 = vld [vmem:[#allocation6 + $0x120] sm:$0xff]
    %v2503 = vld [vmem:[#allocation6 + $0x128] sm:$0xff]
    %v2504 = vld [vmem:[#allocation6 + $0x130] sm:$0xff]
    %v2505 = vld [vmem:[#allocation6 + $0x138] sm:$0xff]
    %v2507 = vsel %vm633, %v2502, 0
    %v2510 = vsel %vm633, %v2503, 0
    %v2513 = vsel %vm633, %v2504, 0
    %v2516 = vsel %vm633, %v2505, 0
    %2518 = vmatpush.msra.mxu0 0.0
    %2519 = vmatpush.msra.mxu0 0.0
    %2520 = vmatpush.msra.mxu0 0.0
    %2521 = vmatpush.msra.mxu0 0.0
    %2522 = vmatpush.msra.mxu0 0.0
    %2523 = vmatpush.msra.mxu0 0.0
    %2524 = vmatpush.msra.mxu0 0.0
    %2525 = vmatpush.msra.mxu0 0.0
    %2526 = vmatpush.msra.mxu0 0.0
    %2527 = vmatpush.msra.mxu0 0.0
    %2528 = vmatpush.msra.mxu0 0.0
    %2529 = vmatpush.msra.mxu0 0.0
    %2530 = vmatpush.msra.mxu0 0.0
    %2531 = vmatpush.msra.mxu0 0.0
    %v2532 = vand.u32 %v1365, 4294901760
    %2533 = vmatpush.msra.mxu0 %v2532
    %v2534 = vand.u32 %v1364, 4294901760
    %2535 = vmatpush.msra.mxu0 %v2534
    %v2536 = vand.u32 %v2507, 4294901760
    %v2537 = vsub.f32 %v2507, %v2536
    %v2538 = vand.u32 %v2537, 4294901760
    %v2539 = vsub.f32 %v2537, %v2538
    %v2540 = vand.u32 %v2539, 4294901760
    %2541 = vmatmul.f32.gmra.mxu0 %v2540
    %v2542 = vpop.f32.mrf.mxu0
    %v2543 = vadd.f32 0.0, %v2542
    %v2544 = vand.u32 %v2510, 4294901760
    %v2545 = vsub.f32 %v2510, %v2544
    %v2546 = vand.u32 %v2545, 4294901760
    %v2547 = vsub.f32 %v2545, %v2546
    %v2548 = vand.u32 %v2547, 4294901760
    %2549 = vmatmul.f32.gmra.mxu0 %v2548
    %v2550 = vpop.f32.mrf.mxu0
    %v2551 = vadd.f32 0.0, %v2550
    %v2552 = vand.u32 %v2513, 4294901760
    %v2553 = vsub.f32 %v2513, %v2552
    %v2554 = vand.u32 %v2553, 4294901760
    %v2555 = vsub.f32 %v2553, %v2554
    %v2556 = vand.u32 %v2555, 4294901760
    %2557 = vmatmul.f32.gmra.mxu0 %v2556
    %v2558 = vpop.f32.mrf.mxu0
    %v2559 = vadd.f32 0.0, %v2558
    %v2560 = vand.u32 %v2516, 4294901760
    %v2561 = vsub.f32 %v2516, %v2560
    %v2562 = vand.u32 %v2561, 4294901760
    %v2563 = vsub.f32 %v2561, %v2562
    %v2564 = vand.u32 %v2563, 4294901760
    %2565 = vmatmul.f32.gmra.mxu0 %v2564
    %v2566 = vpop.f32.mrf.mxu0
    %v2567 = vadd.f32 0.0, %v2566
    %2568 = vdwg.mxu0
    %2569 = vmatpush.msra.mxu0 0.0
    %2570 = vmatpush.msra.mxu0 0.0
    %2571 = vmatpush.msra.mxu0 0.0
    %2572 = vmatpush.msra.mxu0 0.0
    %2573 = vmatpush.msra.mxu0 0.0
    %2574 = vmatpush.msra.mxu0 0.0
    %2575 = vmatpush.msra.mxu0 0.0
    %2576 = vmatpush.msra.mxu0 0.0
    %2577 = vmatpush.msra.mxu0 0.0
    %2578 = vmatpush.msra.mxu0 0.0
    %2579 = vmatpush.msra.mxu0 0.0
    %2580 = vmatpush.msra.mxu0 0.0
    %2581 = vmatpush.msra.mxu0 0.0
    %2582 = vmatpush.msra.mxu0 0.0
    %v2583 = vand.u32 %v1365, 4294901760
    %v2584 = vsub.f32 %v1365, %v2583
    %v2585 = vand.u32 %v2584, 4294901760
    %v2586 = vsub.f32 %v2584, %v2585
    %v2587 = vand.u32 %v2586, 4294901760
    %2588 = vmatpush.msra.mxu0 %v2587
    %v2589 = vand.u32 %v1364, 4294901760
    %v2590 = vsub.f32 %v1364, %v2589
    %v2591 = vand.u32 %v2590, 4294901760
    %v2592 = vsub.f32 %v2590, %v2591
    %v2593 = vand.u32 %v2592, 4294901760
    %2594 = vmatpush.msra.mxu0 %v2593
    %v2595 = vand.u32 %v2507, 4294901760
    %2596 = vmatmul.f32.gmra.mxu0 %v2595
    %v2597 = vpop.f32.mrf.mxu0
    %v2598 = vadd.f32 %v2543, %v2597
    %v2599 = vand.u32 %v2510, 4294901760
    %2600 = vmatmul.f32.gmra.mxu0 %v2599
    %v2601 = vpop.f32.mrf.mxu0
    %v2602 = vadd.f32 %v2551, %v2601
    %v2603 = vand.u32 %v2513, 4294901760
    %2604 = vmatmul.f32.gmra.mxu0 %v2603
    %v2605 = vpop.f32.mrf.mxu0
    %v2606 = vadd.f32 %v2559, %v2605
    %v2607 = vand.u32 %v2516, 4294901760
    %2608 = vmatmul.f32.gmra.mxu0 %v2607
    %v2609 = vpop.f32.mrf.mxu0
    %v2610 = vadd.f32 %v2567, %v2609
    %2611 = vdwg.mxu0
    %2612 = vmatpush.msra.mxu0 0.0
    %2613 = vmatpush.msra.mxu0 0.0
    %2614 = vmatpush.msra.mxu0 0.0
    %2615 = vmatpush.msra.mxu0 0.0
    %2616 = vmatpush.msra.mxu0 0.0
    %2617 = vmatpush.msra.mxu0 0.0
    %2618 = vmatpush.msra.mxu0 0.0
    %2619 = vmatpush.msra.mxu0 0.0
    %2620 = vmatpush.msra.mxu0 0.0
    %2621 = vmatpush.msra.mxu0 0.0
    %2622 = vmatpush.msra.mxu0 0.0
    %2623 = vmatpush.msra.mxu0 0.0
    %2624 = vmatpush.msra.mxu0 0.0
    %2625 = vmatpush.msra.mxu0 0.0
    %v2626 = vand.u32 %v1365, 4294901760
    %v2627 = vsub.f32 %v1365, %v2626
    %2628 = vmatpush.msra.mxu0 %v2627
    %v2629 = vand.u32 %v1364, 4294901760
    %v2630 = vsub.f32 %v1364, %v2629
    %2631 = vmatpush.msra.mxu0 %v2630
    %v2632 = vand.u32 %v2507, 4294901760
    %v2633 = vsub.f32 %v2507, %v2632
    %2634 = vmatmul.f32.gmra.mxu0 %v2633
    %v2635 = vpop.f32.mrf.mxu0
    %v2636 = vadd.f32 %v2598, %v2635
    %v2637 = vand.u32 %v2510, 4294901760
    %v2638 = vsub.f32 %v2510, %v2637
    %2639 = vmatmul.f32.gmra.mxu0 %v2638
    %v2640 = vpop.f32.mrf.mxu0
    %v2641 = vadd.f32 %v2602, %v2640
    %v2642 = vand.u32 %v2513, 4294901760
    %v2643 = vsub.f32 %v2513, %v2642
    %2644 = vmatmul.f32.gmra.mxu0 %v2643
    %v2645 = vpop.f32.mrf.mxu0
    %v2646 = vadd.f32 %v2606, %v2645
    %v2647 = vand.u32 %v2516, 4294901760
    %v2648 = vsub.f32 %v2516, %v2647
    %2649 = vmatmul.f32.gmra.mxu0 %v2648
    %v2650 = vpop.f32.mrf.mxu0
    %v2651 = vadd.f32 %v2610, %v2650
    %2652 = vdwg.mxu0
    %2653 = vmatpush.msra.mxu0 0.0
    %2654 = vmatpush.msra.mxu0 0.0
    %2655 = vmatpush.msra.mxu0 0.0
    %2656 = vmatpush.msra.mxu0 0.0
    %2657 = vmatpush.msra.mxu0 0.0
    %2658 = vmatpush.msra.mxu0 0.0
    %2659 = vmatpush.msra.mxu0 0.0
    %2660 = vmatpush.msra.mxu0 0.0
    %2661 = vmatpush.msra.mxu0 0.0
    %2662 = vmatpush.msra.mxu0 0.0
    %2663 = vmatpush.msra.mxu0 0.0
    %2664 = vmatpush.msra.mxu0 0.0
    %2665 = vmatpush.msra.mxu0 0.0
    %2666 = vmatpush.msra.mxu0 0.0
    %v2667 = vand.u32 %v1365, 4294901760
    %2668 = vmatpush.msra.mxu0 %v2667
    %v2669 = vand.u32 %v1364, 4294901760
    %2670 = vmatpush.msra.mxu0 %v2669
    %v2671 = vand.u32 %v2507, 4294901760
    %v2672 = vsub.f32 %v2507, %v2671
    %v2673 = vand.u32 %v2672, 4294901760
    %2674 = vmatmul.f32.gmra.mxu0 %v2673
    %v2675 = vpop.f32.mrf.mxu0
    %v2676 = vadd.f32 %v2636, %v2675
    %v2677 = vand.u32 %v2510, 4294901760
    %v2678 = vsub.f32 %v2510, %v2677
    %v2679 = vand.u32 %v2678, 4294901760
    %2680 = vmatmul.f32.gmra.mxu0 %v2679
    %v2681 = vpop.f32.mrf.mxu0
    %v2682 = vadd.f32 %v2641, %v2681
    %v2683 = vand.u32 %v2513, 4294901760
    %v2684 = vsub.f32 %v2513, %v2683
    %v2685 = vand.u32 %v2684, 4294901760
    %2686 = vmatmul.f32.gmra.mxu0 %v2685
    %v2687 = vpop.f32.mrf.mxu0
    %v2688 = vadd.f32 %v2646, %v2687
    %v2689 = vand.u32 %v2516, 4294901760
    %v2690 = vsub.f32 %v2516, %v2689
    %v2691 = vand.u32 %v2690, 4294901760
    %2692 = vmatmul.f32.gmra.mxu0 %v2691
    %v2693 = vpop.f32.mrf.mxu0
    %v2694 = vadd.f32 %v2651, %v2693
    %2695 = vdwg.mxu0
    %2696 = vmatpush.msra.mxu0 0.0
    %2697 = vmatpush.msra.mxu0 0.0
    %2698 = vmatpush.msra.mxu0 0.0
    %2699 = vmatpush.msra.mxu0 0.0
    %2700 = vmatpush.msra.mxu0 0.0
    %2701 = vmatpush.msra.mxu0 0.0
    %2702 = vmatpush.msra.mxu0 0.0
    %2703 = vmatpush.msra.mxu0 0.0
    %2704 = vmatpush.msra.mxu0 0.0
    %2705 = vmatpush.msra.mxu0 0.0
    %2706 = vmatpush.msra.mxu0 0.0
    %2707 = vmatpush.msra.mxu0 0.0
    %2708 = vmatpush.msra.mxu0 0.0
    %2709 = vmatpush.msra.mxu0 0.0
    %v2710 = vand.u32 %v1365, 4294901760
    %v2711 = vsub.f32 %v1365, %v2710
    %v2712 = vand.u32 %v2711, 4294901760
    %2713 = vmatpush.msra.mxu0 %v2712
    %v2714 = vand.u32 %v1364, 4294901760
    %v2715 = vsub.f32 %v1364, %v2714
    %v2716 = vand.u32 %v2715, 4294901760
    %2717 = vmatpush.msra.mxu0 %v2716
    %v2718 = vand.u32 %v2507, 4294901760
    %2719 = vmatmul.f32.gmra.mxu0 %v2718
    %v2720 = vpop.f32.mrf.mxu0
    %v2721 = vadd.f32 %v2676, %v2720
    %v2722 = vand.u32 %v2510, 4294901760
    %2723 = vmatmul.f32.gmra.mxu0 %v2722
    %v2724 = vpop.f32.mrf.mxu0
    %v2725 = vadd.f32 %v2682, %v2724
    %v2726 = vand.u32 %v2513, 4294901760
    %2727 = vmatmul.f32.gmra.mxu0 %v2726
    %v2728 = vpop.f32.mrf.mxu0
    %v2729 = vadd.f32 %v2688, %v2728
    %v2730 = vand.u32 %v2516, 4294901760
    %2731 = vmatmul.f32.gmra.mxu0 %v2730
    %v2732 = vpop.f32.mrf.mxu0
    %v2733 = vadd.f32 %v2694, %v2732
    %2734 = vdwg.mxu0
    %2735 = vmatpush.msra.mxu0 0.0
    %2736 = vmatpush.msra.mxu0 0.0
    %2737 = vmatpush.msra.mxu0 0.0
    %2738 = vmatpush.msra.mxu0 0.0
    %2739 = vmatpush.msra.mxu0 0.0
    %2740 = vmatpush.msra.mxu0 0.0
    %2741 = vmatpush.msra.mxu0 0.0
    %2742 = vmatpush.msra.mxu0 0.0
    %2743 = vmatpush.msra.mxu0 0.0
    %2744 = vmatpush.msra.mxu0 0.0
    %2745 = vmatpush.msra.mxu0 0.0
    %2746 = vmatpush.msra.mxu0 0.0
    %2747 = vmatpush.msra.mxu0 0.0
    %2748 = vmatpush.msra.mxu0 0.0
    %v2749 = vand.u32 %v1365, 4294901760
    %2750 = vmatpush.msra.mxu0 %v2749
    %v2751 = vand.u32 %v1364, 4294901760
    %2752 = vmatpush.msra.mxu0 %v2751
    %v2753 = vand.u32 %v2507, 4294901760
    %2754 = vmatmul.f32.gmra.mxu0 %v2753
    %v2755 = vpop.f32.mrf.mxu0
    %v2756 = vadd.f32 %v2721, %v2755
    %v2757 = vand.u32 %v2510, 4294901760
    %2758 = vmatmul.f32.gmra.mxu0 %v2757
    %v2759 = vpop.f32.mrf.mxu0
    %v2760 = vadd.f32 %v2725, %v2759
    %v2761 = vand.u32 %v2513, 4294901760
    %2762 = vmatmul.f32.gmra.mxu0 %v2761
    %v2763 = vpop.f32.mrf.mxu0
    %v2764 = vadd.f32 %v2729, %v2763
    %v2765 = vand.u32 %v2516, 4294901760
    %2766 = vmatmul.f32.gmra.mxu0 %v2765
    %v2767 = vpop.f32.mrf.mxu0
    %v2768 = vadd.f32 %v2733, %v2767
    %2769 = vdwg.mxu0
    %v2770 = vadd.f32 %v2498, %v2756
    %v2771 = vadd.f32 %v2499, %v2760
    %v2772 = vadd.f32 %v2500, %v2764
    %v2773 = vadd.f32 %v2501, %v2768
    %v2774 = vld [vmem:[#allocation6 + $0x140] sm:$0xff]
    %v2775 = vld [vmem:[#allocation6 + $0x148] sm:$0xff]
    %v2776 = vld [vmem:[#allocation6 + $0x150] sm:$0xff]
    %v2777 = vld [vmem:[#allocation6 + $0x158] sm:$0xff]
    %2779 = vset.pattern.permute.xlu0 0
    %2780 = vperm.xlu0 %2779, %v2774
    %v2781 = vpop.permute.xlu0 %2780
    %2784 = vset.pattern.permute.xlu0 0
    %2785 = vperm.xlu0 %2784, %v2775
    %v2786 = vpop.permute.xlu0 %2785
    %2789 = vset.pattern.permute.xlu0 0
    %2790 = vperm.xlu0 %2789, %v2776
    %v2791 = vpop.permute.xlu0 %2790
    %2794 = vset.pattern.permute.xlu0 0
    %2795 = vperm.xlu0 %2794, %v2777
    %v2796 = vpop.permute.xlu0 %2795
    %v2798 = vadd.f32 %v2770, %v2781
    %v2799 = vadd.f32 %v2771, %v2786
    %v2800 = vadd.f32 %v2772, %v2791
    %v2801 = vadd.f32 %v2773, %v2796
    %v2802 = vsel %vm62, %v2798, -inf
    %2803 = vmax.xlane.f32.xlu0 %v2802
    %v2804 = vpop.xlane.xlu0 %2803
    %v2805 = vsel %vm62, %v2799, -inf
    %2806 = vmax.xlane.f32.xlu0 %v2805
    %v2807 = vpop.xlane.xlu0 %2806
    %v2808 = vsel %vm62, %v2800, -inf
    %2809 = vmax.xlane.f32.xlu0 %v2808
    %v2810 = vpop.xlane.xlu0 %2809
    %v2811 = vsel %vm62, %v2801, -inf
    %2812 = vmax.xlane.f32.xlu0 %v2811
    %v2813 = vpop.xlane.xlu0 %2812
    %v2814 = vld [vmem:[#allocation6 + $0x168] sm:$0xff]
    %v2815 = vld [vmem:[#allocation6 + $0x170] sm:$0xff]
    %v2816 = vld [vmem:[#allocation6 + $0x178] sm:$0xff]
    %v2817 = vld [vmem:[#allocation6 + $0x180] sm:$0xff]
    %v2818 = vmul.f32 %v2804, %v2814
    %v2819 = vmul.f32 %v2807, %v2815
    %v2820 = vmul.f32 %v2810, %v2816
    %v2821 = vmul.f32 %v2813, %v2817
    %v2822 = vld [vmem:[#allocation6 + $0x160] sm:$0x3]
    %v2823 = vld [vmem:[#allocation6 + $0x188] sm:$0x1]
    %v2824 = vperm.slane %v2823, 0
    %vm2825 = vcmask 261120
    %v2827 = vsel %vm2825, %v2822, 0
    %2829 = vmatpush.msra.mxu0 0.0
    %2830 = vmatpush.msra.mxu0 0.0
    %2831 = vmatpush.msra.mxu0 0.0
    %2832 = vmatpush.msra.mxu0 0.0
    %2833 = vmatpush.msra.mxu0 0.0
    %2834 = vmatpush.msra.mxu0 0.0
    %2835 = vmatpush.msra.mxu0 0.0
    %2836 = vmatpush.msra.mxu0 0.0
    %2837 = vmatpush.msra.mxu0 0.0
    %2838 = vmatpush.msra.mxu0 0.0
    %2839 = vmatpush.msra.mxu0 0.0
    %2840 = vmatpush.msra.mxu0 0.0
    %v2841 = vand.u32 %v2821, 4294901760
    %2842 = vmatpush.msra.mxu0 %v2841
    %v2843 = vand.u32 %v2820, 4294901760
    %2844 = vmatpush.msra.mxu0 %v2843
    %v2845 = vand.u32 %v2819, 4294901760
    %2846 = vmatpush.msra.mxu0 %v2845
    %v2847 = vand.u32 %v2818, 4294901760
    %2848 = vmatpush.msra.mxu0 %v2847
    %v2849 = vand.u32 %v2827, 4294901760
    %v2850 = vsub.f32 %v2827, %v2849
    %v2851 = vand.u32 %v2850, 4294901760
    %v2852 = vsub.f32 %v2850, %v2851
    %v2853 = vand.u32 %v2852, 4294901760
    %2854 = vmatmul.f32.gmra.mxu0 %v2853
    %v2855 = vpop.f32.mrf.mxu0
    %v2856 = vadd.f32 %v2824, %v2855
    %2857 = vdwg.mxu0
    %2858 = vmatpush.msra.mxu0 0.0
    %2859 = vmatpush.msra.mxu0 0.0
    %2860 = vmatpush.msra.mxu0 0.0
    %2861 = vmatpush.msra.mxu0 0.0
    %2862 = vmatpush.msra.mxu0 0.0
    %2863 = vmatpush.msra.mxu0 0.0
    %2864 = vmatpush.msra.mxu0 0.0
    %2865 = vmatpush.msra.mxu0 0.0
    %2866 = vmatpush.msra.mxu0 0.0
    %2867 = vmatpush.msra.mxu0 0.0
    %2868 = vmatpush.msra.mxu0 0.0
    %2869 = vmatpush.msra.mxu0 0.0
    %v2870 = vand.u32 %v2821, 4294901760
    %v2871 = vsub.f32 %v2821, %v2870
    %v2872 = vand.u32 %v2871, 4294901760
    %v2873 = vsub.f32 %v2871, %v2872
    %v2874 = vand.u32 %v2873, 4294901760
    %2875 = vmatpush.msra.mxu0 %v2874
    %v2876 = vand.u32 %v2820, 4294901760
    %v2877 = vsub.f32 %v2820, %v2876
    %v2878 = vand.u32 %v2877, 4294901760
    %v2879 = vsub.f32 %v2877, %v2878
    %v2880 = vand.u32 %v2879, 4294901760
    %2881 = vmatpush.msra.mxu0 %v2880
    %v2882 = vand.u32 %v2819, 4294901760
    %v2883 = vsub.f32 %v2819, %v2882
    %v2884 = vand.u32 %v2883, 4294901760
    %v2885 = vsub.f32 %v2883, %v2884
    %v2886 = vand.u32 %v2885, 4294901760
    %2887 = vmatpush.msra.mxu0 %v2886
    %v2888 = vand.u32 %v2818, 4294901760
    %v2889 = vsub.f32 %v2818, %v2888
    %v2890 = vand.u32 %v2889, 4294901760
    %v2891 = vsub.f32 %v2889, %v2890
    %v2892 = vand.u32 %v2891, 4294901760
    %2893 = vmatpush.msra.mxu0 %v2892
    %v2894 = vand.u32 %v2827, 4294901760
    %2895 = vmatmul.f32.gmra.mxu0 %v2894
    %v2896 = vpop.f32.mrf.mxu0
    %v2897 = vadd.f32 %v2856, %v2896
    %2898 = vdwg.mxu0
    %2899 = vmatpush.msra.mxu0 0.0
    %2900 = vmatpush.msra.mxu0 0.0
    %2901 = vmatpush.msra.mxu0 0.0
    %2902 = vmatpush.msra.mxu0 0.0
    %2903 = vmatpush.msra.mxu0 0.0
    %2904 = vmatpush.msra.mxu0 0.0
    %2905 = vmatpush.msra.mxu0 0.0
    %2906 = vmatpush.msra.mxu0 0.0
    %2907 = vmatpush.msra.mxu0 0.0
    %2908 = vmatpush.msra.mxu0 0.0
    %2909 = vmatpush.msra.mxu0 0.0
    %2910 = vmatpush.msra.mxu0 0.0
    %v2911 = vand.u32 %v2821, 4294901760
    %v2912 = vsub.f32 %v2821, %v2911
    %2913 = vmatpush.msra.mxu0 %v2912
    %v2914 = vand.u32 %v2820, 4294901760
    %v2915 = vsub.f32 %v2820, %v2914
    %2916 = vmatpush.msra.mxu0 %v2915
    %v2917 = vand.u32 %v2819, 4294901760
    %v2918 = vsub.f32 %v2819, %v2917
    %2919 = vmatpush.msra.mxu0 %v2918
    %v2920 = vand.u32 %v2818, 4294901760
    %v2921 = vsub.f32 %v2818, %v2920
    %2922 = vmatpush.msra.mxu0 %v2921
    %v2923 = vand.u32 %v2827, 4294901760
    %v2924 = vsub.f32 %v2827, %v2923
    %2925 = vmatmul.f32.gmra.mxu0 %v2924
    %v2926 = vpop.f32.mrf.mxu0
    %v2927 = vadd.f32 %v2897, %v2926
    %2928 = vdwg.mxu0
    %2929 = vmatpush.msra.mxu0 0.0
    %2930 = vmatpush.msra.mxu0 0.0
    %2931 = vmatpush.msra.mxu0 0.0
    %2932 = vmatpush.msra.mxu0 0.0
    %2933 = vmatpush.msra.mxu0 0.0
    %2934 = vmatpush.msra.mxu0 0.0
    %2935 = vmatpush.msra.mxu0 0.0
    %2936 = vmatpush.msra.mxu0 0.0
    %2937 = vmatpush.msra.mxu0 0.0
    %2938 = vmatpush.msra.mxu0 0.0
    %2939 = vmatpush.msra.mxu0 0.0
    %2940 = vmatpush.msra.mxu0 0.0
    %v2941 = vand.u32 %v2821, 4294901760
    %2942 = vmatpush.msra.mxu0 %v2941
    %v2943 = vand.u32 %v2820, 4294901760
    %2944 = vmatpush.msra.mxu0 %v2943
    %v2945 = vand.u32 %v2819, 4294901760
    %2946 = vmatpush.msra.mxu0 %v2945
    %v2947 = vand.u32 %v2818, 4294901760
    %2948 = vmatpush.msra.mxu0 %v2947
    %v2949 = vand.u32 %v2827, 4294901760
    %v2950 = vsub.f32 %v2827, %v2949
    %v2951 = vand.u32 %v2950, 4294901760
    %2952 = vmatmul.f32.gmra.mxu0 %v2951
    %v2953 = vpop.f32.mrf.mxu0
    %v2954 = vadd.f32 %v2927, %v2953
    %2955 = vdwg.mxu0
    %2956 = vmatpush.msra.mxu0 0.0
    %2957 = vmatpush.msra.mxu0 0.0
    %2958 = vmatpush.msra.mxu0 0.0
    %2959 = vmatpush.msra.mxu0 0.0
    %2960 = vmatpush.msra.mxu0 0.0
    %2961 = vmatpush.msra.mxu0 0.0
    %2962 = vmatpush.msra.mxu0 0.0
    %2963 = vmatpush.msra.mxu0 0.0
    %2964 = vmatpush.msra.mxu0 0.0
    %2965 = vmatpush.msra.mxu0 0.0
    %2966 = vmatpush.msra.mxu0 0.0
    %2967 = vmatpush.msra.mxu0 0.0
    %v2968 = vand.u32 %v2821, 4294901760
    %v2969 = vsub.f32 %v2821, %v2968
    %v2970 = vand.u32 %v2969, 4294901760
    %2971 = vmatpush.msra.mxu0 %v2970
    %v2972 = vand.u32 %v2820, 4294901760
    %v2973 = vsub.f32 %v2820, %v2972
    %v2974 = vand.u32 %v2973, 4294901760
    %2975 = vmatpush.msra.mxu0 %v2974
    %v2976 = vand.u32 %v2819, 4294901760
    %v2977 = vsub.f32 %v2819, %v2976
    %v2978 = vand.u32 %v2977, 4294901760
    %2979 = vmatpush.msra.mxu0 %v2978
    %v2980 = vand.u32 %v2818, 4294901760
    %v2981 = vsub.f32 %v2818, %v2980
    %v2982 = vand.u32 %v2981, 4294901760
    %2983 = vmatpush.msra.mxu0 %v2982
    %v2984 = vand.u32 %v2827, 4294901760
    %2985 = vmatmul.f32.gmra.mxu0 %v2984
    %v2986 = vpop.f32.mrf.mxu0
    %v2987 = vadd.f32 %v2954, %v2986
    %2988 = vdwg.mxu0
    %2989 = vmatpush.msra.mxu0 0.0
    %2990 = vmatpush.msra.mxu0 0.0
    %2991 = vmatpush.msra.mxu0 0.0
    %2992 = vmatpush.msra.mxu0 0.0
    %2993 = vmatpush.msra.mxu0 0.0
    %2994 = vmatpush.msra.mxu0 0.0
    %2995 = vmatpush.msra.mxu0 0.0
    %2996 = vmatpush.msra.mxu0 0.0
    %2997 = vmatpush.msra.mxu0 0.0
    %2998 = vmatpush.msra.mxu0 0.0
    %2999 = vmatpush.msra.mxu0 0.0
    %3000 = vmatpush.msra.mxu0 0.0
    %v3001 = vand.u32 %v2821, 4294901760
    %3002 = vmatpush.msra.mxu0 %v3001
    %v3003 = vand.u32 %v2820, 4294901760
    %3004 = vmatpush.msra.mxu0 %v3003
    %v3005 = vand.u32 %v2819, 4294901760
    %3006 = vmatpush.msra.mxu0 %v3005
    %v3007 = vand.u32 %v2818, 4294901760
    %3008 = vmatpush.msra.mxu0 %v3007
    %v3009 = vand.u32 %v2827, 4294901760
    %3010 = vmatmul.f32.gmra.mxu0 %v3009
    %v3011 = vpop.f32.mrf.mxu0
    %v3012 = vadd.f32 %v2987, %v3011
    %3013 = vdwg.mxu0
    %vm3014 = vcmask 58368
    %3015 = vst.msk [vmem:[#allocation8] sm:$0x3] %vm3014, %v3012
    // Predicated region
    $region18: #{skip_encoder_forward.1} parent=1 // pred_check
      _
    $region19: #{skip_encoder_forward.1} parent=1 // pred_check_branch
      %3017 = sbr.rel (0) target = $region21
    $region20: #{skip_encoder_forward.1} parent=1 // pred_region
      %3019 = vsyncadd [#allocation5], 0
      %s3021 = sshll.u32 [#allocation8], 4
      %s3022 = int_to_ptr.vmem [resolvable:$true] %s3021
      %s3023 = sshll.u32 %s2, 4
      %s3024 = int_to_ptr.hbm [resolvable:$true] %s3023
      %3026 = dma.vmem_to_hbm [thread:$0]  %s3022, 32, %s3024, [#allocation5]
    $region21: #{skip_encoder_forward.1} parent=1 // pred_fallthru
      _
    // Predicated region
    $region22: #{skip_encoder_forward.1} parent=1 // pred_check
      _
    $region23: #{skip_encoder_forward.1} parent=1 // pred_check_branch
      %3028 = sbr.rel (0) target = $region25
    $region24: #{skip_encoder_forward.1} parent=1 // pred_region
      %3030 = dma.done [#allocation5], 32
    $region25: #{skip_encoder_forward.1} parent=1 // pred_fallthru
      _
    %3031 = vsyncpa [#allocation4], 1
    %3032 = vsyncpa [#allocation7], 1
    %3033 = vsyncpa [#allocation5], 1

</llo_original>
